<compile_context>
chip_gen: v7x
topology: tpu7x:2x2x1
jax: 0.10.0
libtpu: 0.0.40
codegen_flags: <defaults>
</compile_context>

<pallas_src>
import jax
import jax.numpy as jnp
import numpy as np
from jax.experimental import pallas as pl
from jax.experimental.pallas import tpu as pltpu

NEG_SLOPE = 0.1          # LeakyReLU(0.1)
L_IN = 24                # forced by LSTM input size: 64 * (L_IN + 1) = 1600
HIDDEN = 128


def _leaky(x):
    return jnp.where(x >= 0, x, NEG_SLOPE * x)


# ---------------------------------------------------------------------------
# Fused kernel: conv stack + flatten + LSTMCell + all linear heads.
# Whole batch in one program; activations are (rows = l*B + b, lanes = C).
# ---------------------------------------------------------------------------
def _fused_kernel(xp_ref, w1_ref, b1_ref, w2_ref, b2_ref, w3_ref, b3_ref,
                  w4_ref, b4_ref, wih_ref, whh_ref, bl_ref, hx_ref, cx_ref,
                  wh_ref, bh_ref,
                  heads_ref, hxo_ref, cxo_ref,
                  pad_ref, feat_ref):
    B = hx_ref.shape[0]
    NH = heads_ref.shape[1]          # 3 + 2*A
    A = (NH - 3) // 2
    n24 = L_IN * B                   # rows covering 24 output positions
    n25 = (L_IN + 1) * B             # rows covering 25 output positions

    # ---- conv1: im2col over K=3 taps (contiguous row slabs) + single dot ----
    cols1 = jnp.concatenate(
        [xp_ref[k * B:k * B + n24, :] for k in range(3)], axis=1)
    h1 = _leaky(jnp.dot(cols1, w1_ref[...],
                        preferred_element_type=jnp.float32) + b1_ref[...])

    # ---- shared padded-activation scratch for conv2 / conv3 ----
    # rows [0,B) and [25B,26B) are the per-sample zero padding slabs.
    pad_ref[0:B, :] = jnp.zeros((B, 32), jnp.float32)
    pad_ref[n25:n25 + B, :] = jnp.zeros((B, 32), jnp.float32)
    pad_ref[B:B + n24, :] = h1

    # ---- conv2: K=3, pad=1 ----
    cols2 = jnp.concatenate(
        [pad_ref[k * B:k * B + n24, :] for k in range(3)], axis=1)
    h2 = _leaky(jnp.dot(cols2, w2_ref[...],
                        preferred_element_type=jnp.float32) + b2_ref[...])

    # ---- conv3: K=2, pad=1 -> 25 output positions ----
    pad_ref[B:B + n24, :] = h2
    cols3 = jnp.concatenate(
        [pad_ref[k * B:k * B + n25, :] for k in range(2)], axis=1)
    h3 = _leaky(jnp.dot(cols3, w3_ref[...],
                        preferred_element_type=jnp.float32) + b3_ref[...])

    # ---- conv4: K=1 (pointwise) ----
    h4 = _leaky(jnp.dot(h3, w4_ref[...],
                        preferred_element_type=jnp.float32) + b4_ref[...])

    # ---- flatten to lane-dense (B, 1600); wih rows are pre-permuted so this
    #      (l, c) ordering reproduces PyTorch's channel-major x.view(B, -1) ----
    for l in range(L_IN + 1):
        feat_ref[:, l * 64:(l + 1) * 64] = h4[l * B:(l + 1) * B, :]

    # ---- LSTM cell: one big (B,1600)@(1600,512) dot + (B,128)@(128,512) ----
    gates = (jnp.dot(feat_ref[...], wih_ref[...],
                     preferred_element_type=jnp.float32)
             + jnp.dot(hx_ref[...], whh_ref[...],
                       preferred_element_type=jnp.float32)
             + bl_ref[...])
    i = jax.nn.sigmoid(gates[:, 0:HIDDEN])
    f = jax.nn.sigmoid(gates[:, HIDDEN:2 * HIDDEN])
    g = jnp.tanh(gates[:, 2 * HIDDEN:3 * HIDDEN])
    o = jax.nn.sigmoid(gates[:, 3 * HIDDEN:4 * HIDDEN])
    c_new = f * cx_ref[...] + i * g
    h_new = o * jnp.tanh(c_new)
    hxo_ref[...] = h_new
    cxo_ref[...] = c_new

    # ---- all heads fused into one matmul AND one output store:
    #      columns [critic | actor(A) | actor2(A) | terminal | reward]
    heads = (jnp.dot(h_new, wh_ref[...], preferred_element_type=jnp.float32)
             + bh_ref[...])
    # softsign only on the actor lanes, selected by a lane-index mask
    col = jax.lax.broadcasted_iota(jnp.int32, heads.shape, 1)
    soft = heads * pl.reciprocal(1.0 + jnp.abs(heads), approx=True)
    heads_ref[...] = jnp.where((col >= 1) & (col < 1 + A), soft, heads)


# ---------------------------------------------------------------------------
# Wrapper
# ---------------------------------------------------------------------------
def a3c_conv_forward(kp, x, hx, cx):
    B, cin, L = x.shape
    assert L == L_IN
    NH = kp['w_heads'].shape[1]
    A = (NH - 3) // 2

    # (B, Cin, 24) -> (24, B, Cin) -> zero-pad one l-slab each side -> 2D rows
    xp = jnp.pad(jnp.transpose(x, (2, 0, 1)), ((1, 1), (0, 0), (0, 0)))
    xp = xp.reshape((L_IN + 2) * B, cin)

    heads, hx_new, cx_new = pl.pallas_call(
        _fused_kernel,
        out_shape=(
            jax.ShapeDtypeStruct((B, NH), jnp.float32),      # fused heads slab
            jax.ShapeDtypeStruct((B, HIDDEN), jnp.float32),  # hx
            jax.ShapeDtypeStruct((B, HIDDEN), jnp.float32),  # cx
        ),
        scratch_shapes=[
            pltpu.VMEM(((L_IN + 2) * B, 32), jnp.float32),   # padded conv act.
            pltpu.VMEM((B, 64 * (L_IN + 1)), jnp.float32),   # flattened feat
        ],
    )(xp, kp['w1c'], kp['b1'], kp['w2c'], kp['b2'], kp['w3c'], kp['b3'],
      kp['w4c'], kp['b4'], kp['wih'], kp['whh'], kp['b_lstm'], hx, cx,
      kp['w_heads'], kp['b_heads'])

    critic = heads[:, 0:1]
    actor = heads[:, 1:1 + A]                 # softsign already applied in-kernel
    actor2 = heads[:, 1 + A:1 + 2 * A]
    term = heads[:, 1 + 2 * A:2 + 2 * A]
    rew = heads[:, 2 + 2 * A:3 + 2 * A]
    return critic, actor, actor2, (hx_new, cx_new), term, rew


# ---------------------------------------------------------------------------
# Parameters: PyTorch-layout "raw" weights + kernel-layout copies.
# ---------------------------------------------------------------------------
def init_raw_params(key, num_inputs, num_actions):
    ks = jax.random.split(key, 16)

    def rnd(k, shape, scale):
        return scale * jax.random.normal(k, shape, jnp.float32)

    return dict(
        w1=rnd(ks[0], (32, num_inputs, 3), 0.30),
        w2=rnd(ks[1], (32, 32, 3), 0.15),
        w3=rnd(ks[2], (64, 32, 2), 0.15),
        w4=rnd(ks[3], (64, 64, 1), 0.12),
        b1=rnd(ks[4], (32,), 0.05),
        b2=rnd(ks[5], (32,), 0.05),
        b3=rnd(ks[6], (64,), 0.05),
        b4=rnd(ks[7], (64,), 0.05),
        w_ih=rnd(ks[8], (4 * HIDDEN, 64 * (L_IN + 1)), 0.02),
        w_hh=rnd(ks[9], (4 * HIDDEN, HIDDEN), 0.08),
        b_ih=jnp.zeros((4 * HIDDEN,), jnp.float32),    # lstm.bias_ih.fill_(0)
        b_hh=jnp.zeros((4 * HIDDEN,), jnp.float32),    # lstm.bias_hh.fill_(0)
        w_c=rnd(ks[10], (1, HIDDEN), 0.09),            # norm_col_init std=1.0
        w_a=rnd(ks[11], (num_actions, HIDDEN), 0.001),  # norm_col_init std=0.01
        w_a2=rnd(ks[12], (num_actions, HIDDEN), 0.001),
        w_t=rnd(ks[13], (1, HIDDEN), 0.09),
        w_r=rnd(ks[14], (1, HIDDEN), 0.09),
        b_c=jnp.zeros((1,), jnp.float32),
        b_a=jnp.zeros((num_actions,), jnp.float32),
        b_a2=jnp.zeros((num_actions,), jnp.float32),
        b_t=jnp.zeros((1,), jnp.float32),
        b_r=jnp.zeros((1,), jnp.float32),
    )


def prep_kernel_params(raw):
    def conv_cat(w):  # (Cout, Cin, K) -> (K*Cin, Cout): row k*Cin+ci = W[:,ci,k]
        cout, cin, k = w.shape
        return jnp.transpose(w, (2, 1, 0)).reshape(k * cin, cout)

    # Permute W_ih^T rows from PyTorch flatten order (c*25 + l) to our in-kernel
    # flatten order (l*64 + c).
    g4 = 4 * HIDDEN
    wih_lc = jnp.transpose(raw['w_ih'].T.reshape(64, L_IN + 1, g4),
                           (1, 0, 2)).reshape(64 * (L_IN + 1), g4)

    w_heads = jnp.concatenate([raw['w_c'].T, raw['w_a'].T, raw['w_a2'].T,
                               raw['w_t'].T, raw['w_r'].T], axis=1)
    b_heads = jnp.concatenate([raw['b_c'], raw['b_a'], raw['b_a2'],
                               raw['b_t'], raw['b_r']]).reshape(1, -1)

    return dict(
        w1c=conv_cat(raw['w1']), b1=raw['b1'].reshape(1, -1),
        w2c=conv_cat(raw['w2']), b2=raw['b2'].reshape(1, -1),
        w3c=conv_cat(raw['w3']), b3=raw['b3'].reshape(1, -1),
        w4c=conv_cat(raw['w4']), b4=raw['b4'].reshape(1, -1),
        wih=wih_lc, whh=raw['w_hh'].T,
        b_lstm=(raw['b_ih'] + raw['b_hh']).reshape(1, -1),
        w_heads=w_heads, b_heads=b_heads,
    )


# ---------------------------------------------------------------------------
# Pure-JAX reference (mirrors the PyTorch forward) for the correctness check.
# ---------------------------------------------------------------------------
def ref_forward(raw, x, hx, cx):
    def conv1d(xx, w, b, pad):
        K = w.shape[2]
        xp = jnp.pad(xx, ((0, 0), (0, 0), (pad, pad)))
        Lout = xp.shape[2] - K + 1
        out = jnp.zeros((xx.shape[0], w.shape[0], Lout), jnp.float32)
        for k in range(K):
            out = out + jnp.einsum('bcl,oc->bol', xp[:, :, k:k + Lout], w[:, :, k])
        return out + b[None, :, None]

    lk = lambda v: jnp.where(v >= 0, v, NEG_SLOPE * v)
    h = lk(conv1d(x, raw['w1'], raw['b1'], 1))
    h = lk(conv1d(h, raw['w2'], raw['b2'], 1))
    h = lk(conv1d(h, raw['w3'], raw['b3'], 1))
    h = lk(conv1d(h, raw['w4'], raw['b4'], 0))
    feat = h.reshape(h.shape[0], -1)

    gates = (feat @ raw['w_ih'].T + raw['b_ih']
             + hx @ raw['w_hh'].T + raw['b_hh'])
    i, f, g, o = jnp.split(gates, 4, axis=1)
    i, f, o = jax.nn.sigmoid(i), jax.nn.sigmoid(f), jax.nn.sigmoid(o)
    g = jnp.tanh(g)
    c = f * cx + i * g
    hn = o * jnp.tanh(c)

    critic = hn @ raw['w_c'].T + raw['b_c']
    a = hn @ raw['w_a'].T + raw['b_a']
    actor = a / (1.0 + jnp.abs(a))
    actor2 = hn @ raw['w_a2'].T + raw['b_a2']
    term = hn @ raw['w_t'].T + raw['b_t']
    rew = hn @ raw['w_r'].T + raw['b_r']
    return critic, actor, actor2, (hn, c), term, rew


if __name__ == "__main__":
    B, num_inputs, num_actions = 2, 4, 6
    key = jax.random.PRNGKey(0)
    k_x, k_h, k_c, k_p = jax.random.split(key, 4)

    x = jax.random.normal(k_x, (B, num_inputs, L_IN), jnp.float32)  # NCL
    hx = 0.1 * jax.random.normal(k_h, (B, HIDDEN), jnp.float32)
    cx = 0.1 * jax.random.normal(k_c, (B, HIDDEN), jnp.float32)

    raw = init_raw_params(k_p, num_inputs, num_actions)
    kern = prep_kernel_params(raw)

    out = a3c_conv_forward(kern, x, hx, cx)
    out = jax.block_until_ready(out)

    ref = ref_forward(raw, x, hx, cx)
    critic, actor, actor2, (hx_n, cx_n), term, rew = out
    rcritic, ractor, ractor2, (rhx, rcx), rterm, rrew = ref
    for got, want in [(critic, rcritic), (actor, ractor), (actor2, ractor2),
                      (hx_n, rhx), (cx_n, rcx), (term, rterm), (rew, rrew)]:
        np.testing.assert_allclose(np.asarray(got), np.asarray(want),
                                   rtol=2e-2, atol=2e-2)

    print("KERNEL_OK")
</pallas_src>

<mosaic_0001>
module attributes {stable_mosaic.version = 11 : i64} {
  func.func @_fused_kernel(%arg0: memref<52x4xf32, #tpu.memory_space<vmem>>, %arg1: memref<12x32xf32, #tpu.memory_space<vmem>>, %arg2: memref<1x32xf32, #tpu.memory_space<vmem>>, %arg3: memref<96x32xf32, #tpu.memory_space<vmem>>, %arg4: memref<1x32xf32, #tpu.memory_space<vmem>>, %arg5: memref<64x64xf32, #tpu.memory_space<vmem>>, %arg6: memref<1x64xf32, #tpu.memory_space<vmem>>, %arg7: memref<64x64xf32, #tpu.memory_space<vmem>>, %arg8: memref<1x64xf32, #tpu.memory_space<vmem>>, %arg9: memref<1600x512xf32, #tpu.memory_space<vmem>>, %arg10: memref<128x512xf32, #tpu.memory_space<vmem>>, %arg11: memref<1x512xf32, #tpu.memory_space<vmem>>, %arg12: memref<2x128xf32, #tpu.memory_space<vmem>>, %arg13: memref<2x128xf32, #tpu.memory_space<vmem>>, %arg14: memref<128x15xf32, #tpu.memory_space<vmem>>, %arg15: memref<1x15xf32, #tpu.memory_space<vmem>>, %arg16: memref<2x15xf32, #tpu.memory_space<vmem>>, %arg17: memref<2x128xf32, #tpu.memory_space<vmem>>, %arg18: memref<2x128xf32, #tpu.memory_space<vmem>>, %arg19: memref<52x32xf32, #tpu.memory_space<vmem>>, %arg20: memref<2x1600xf32, #tpu.memory_space<vmem>>) attributes {dimension_semantics = [], scalar_prefetch = 0 : i64, scratch_operands = 2 : i64, tpu.core_type = #tpu.core_type<tc>} {
    %c0 = arith.constant 0 : index
    %c0_0 = arith.constant 0 : index
    %0 = vector.load %arg0[%c0, %c0_0] : memref<52x4xf32, #tpu.memory_space<vmem>>, vector<48x4xf32>
    %c2 = arith.constant 2 : index
    %c0_1 = arith.constant 0 : index
    %1 = vector.load %arg0[%c2, %c0_1] : memref<52x4xf32, #tpu.memory_space<vmem>>, vector<48x4xf32>
    %c4 = arith.constant 4 : index
    %c0_2 = arith.constant 0 : index
    %2 = vector.load %arg0[%c4, %c0_2] : memref<52x4xf32, #tpu.memory_space<vmem>>, vector<48x4xf32>
    %3 = tpu.concatenate %0, %1, %2 in 1 : vector<48x4xf32>, vector<48x4xf32>, vector<48x4xf32> -> vector<48x12xf32>
    %c0_3 = arith.constant 0 : index
    %c0_4 = arith.constant 0 : index
    %4 = vector.load %arg1[%c0_3, %c0_4] : memref<12x32xf32, #tpu.memory_space<vmem>>, vector<12x32xf32>
    %cst = arith.constant dense<0.000000e+00> : vector<48x32xf32>
    %5 = tpu.matmul %3, %4, %cst {dimension_numbers = #tpu.dot_dimension_numbers<[1], [0], [0], [1], [0, 0, 1, 1], [], []>} : vector<48x12xf32>, vector<12x32xf32>, vector<48x32xf32> -> vector<48x32xf32>
    %c0_5 = arith.constant 0 : index
    %c0_6 = arith.constant 0 : index
    %6 = vector.load %arg2[%c0_5, %c0_6] : memref<1x32xf32, #tpu.memory_space<vmem>>, vector<1x32xf32>
    %7 = vector.broadcast %6 : vector<1x32xf32> to vector<48x32xf32>
    %8 = arith.addf %5, %7 : vector<48x32xf32>
    %cst_7 = arith.constant 0.000000e+00 : f32
    %9 = vector.broadcast %cst_7 : f32 to vector<48x32xf32>
    %10 = arith.cmpf oge, %8, %9 : vector<48x32xf32>
    %cst_8 = arith.constant 1.000000e-01 : f32
    %11 = vector.broadcast %cst_8 : f32 to vector<48x32xf32>
    %12 = arith.mulf %11, %8 : vector<48x32xf32>
    %13 = arith.select %10, %8, %12 : vector<48x32xi1>, vector<48x32xf32>
    %cst_9 = arith.constant 0.000000e+00 : f32
    %14 = vector.broadcast %cst_9 : f32 to vector<2x32xf32>
    %c0_10 = arith.constant 0 : index
    %c0_11 = arith.constant 0 : index
    %15 = vector.load %arg19[%c0_10, %c0_11] : memref<52x32xf32, #tpu.memory_space<vmem>>, vector<2x32xf32>
    tpu.vector_store %arg19[%c0_10, %c0_11], %14 {strides = array<i32>} : memref<52x32xf32, #tpu.memory_space<vmem>>, vector<2x32xf32>,
    %cst_12 = arith.constant 0.000000e+00 : f32
    %16 = vector.broadcast %cst_12 : f32 to vector<2x32xf32>
    %c50 = arith.constant 50 : index
    %c0_13 = arith.constant 0 : index
    %17 = vector.load %arg19[%c50, %c0_13] : memref<52x32xf32, #tpu.memory_space<vmem>>, vector<2x32xf32>
    tpu.vector_store %arg19[%c50, %c0_13], %16 {strides = array<i32>} : memref<52x32xf32, #tpu.memory_space<vmem>>, vector<2x32xf32>,
    %c2_14 = arith.constant 2 : index
    %c0_15 = arith.constant 0 : index
    %18 = vector.load %arg19[%c2_14, %c0_15] : memref<52x32xf32, #tpu.memory_space<vmem>>, vector<48x32xf32>
    tpu.vector_store %arg19[%c2_14, %c0_15], %13 {strides = array<i32>} : memref<52x32xf32, #tpu.memory_space<vmem>>, vector<48x32xf32>,
    %c0_16 = arith.constant 0 : index
    %c0_17 = arith.constant 0 : index
    %19 = vector.load %arg19[%c0_16, %c0_17] : memref<52x32xf32, #tpu.memory_space<vmem>>, vector<48x32xf32>
    %c2_18 = arith.constant 2 : index
    %c0_19 = arith.constant 0 : index
    %20 = vector.load %arg19[%c2_18, %c0_19] : memref<52x32xf32, #tpu.memory_space<vmem>>, vector<48x32xf32>
    %c4_20 = arith.constant 4 : index
    %c0_21 = arith.constant 0 : index
    %21 = vector.load %arg19[%c4_20, %c0_21] : memref<52x32xf32, #tpu.memory_space<vmem>>, vector<48x32xf32>
    %22 = tpu.concatenate %19, %20, %21 in 1 : vector<48x32xf32>, vector<48x32xf32>, vector<48x32xf32> -> vector<48x96xf32>
    %c0_22 = arith.constant 0 : index
    %c0_23 = arith.constant 0 : index
    %23 = vector.load %arg3[%c0_22, %c0_23] : memref<96x32xf32, #tpu.memory_space<vmem>>, vector<96x32xf32>
    %cst_24 = arith.constant dense<0.000000e+00> : vector<48x32xf32>
    %24 = tpu.matmul %22, %23, %cst_24 {dimension_numbers = #tpu.dot_dimension_numbers<[1], [0], [0], [1], [0, 0, 1, 1], [], []>} : vector<48x96xf32>, vector<96x32xf32>, vector<48x32xf32> -> vector<48x32xf32>
    %c0_25 = arith.constant 0 : index
    %c0_26 = arith.constant 0 : index
    %25 = vector.load %arg4[%c0_25, %c0_26] : memref<1x32xf32, #tpu.memory_space<vmem>>, vector<1x32xf32>
    %26 = vector.broadcast %25 : vector<1x32xf32> to vector<48x32xf32>
    %27 = arith.addf %24, %26 : vector<48x32xf32>
    %cst_27 = arith.constant 0.000000e+00 : f32
    %28 = vector.broadcast %cst_27 : f32 to vector<48x32xf32>
    %29 = arith.cmpf oge, %27, %28 : vector<48x32xf32>
    %cst_28 = arith.constant 1.000000e-01 : f32
    %30 = vector.broadcast %cst_28 : f32 to vector<48x32xf32>
    %31 = arith.mulf %30, %27 : vector<48x32xf32>
    %32 = arith.select %29, %27, %31 : vector<48x32xi1>, vector<48x32xf32>
    %c2_29 = arith.constant 2 : index
    %c0_30 = arith.constant 0 : index
    %33 = vector.load %arg19[%c2_29, %c0_30] : memref<52x32xf32, #tpu.memory_space<vmem>>, vector<48x32xf32>
    tpu.vector_store %arg19[%c2_29, %c0_30], %32 {strides = array<i32>} : memref<52x32xf32, #tpu.memory_space<vmem>>, vector<48x32xf32>,
    %c0_31 = arith.constant 0 : index
    %c0_32 = arith.constant 0 : index
    %34 = vector.load %arg19[%c0_31, %c0_32] : memref<52x32xf32, #tpu.memory_space<vmem>>, vector<50x32xf32>
    %c2_33 = arith.constant 2 : index
    %c0_34 = arith.constant 0 : index
    %35 = vector.load %arg19[%c2_33, %c0_34] : memref<52x32xf32, #tpu.memory_space<vmem>>, vector<50x32xf32>
    %36 = tpu.concatenate %34, %35 in 1 : vector<50x32xf32>, vector<50x32xf32> -> vector<50x64xf32>
    %c0_35 = arith.constant 0 : index
    %c0_36 = arith.constant 0 : index
    %37 = vector.load %arg5[%c0_35, %c0_36] : memref<64x64xf32, #tpu.memory_space<vmem>>, vector<64x64xf32>
    %cst_37 = arith.constant dense<0.000000e+00> : vector<50x64xf32>
    %38 = tpu.matmul %36, %37, %cst_37 {dimension_numbers = #tpu.dot_dimension_numbers<[1], [0], [0], [1], [0, 0, 1, 1], [], []>} : vector<50x64xf32>, vector<64x64xf32>, vector<50x64xf32> -> vector<50x64xf32>
    %c0_38 = arith.constant 0 : index
    %c0_39 = arith.constant 0 : index
    %39 = vector.load %arg6[%c0_38, %c0_39] : memref<1x64xf32, #tpu.memory_space<vmem>>, vector<1x64xf32>
    %40 = vector.broadcast %39 : vector<1x64xf32> to vector<50x64xf32>
    %41 = arith.addf %38, %40 : vector<50x64xf32>
    %cst_40 = arith.constant 0.000000e+00 : f32
    %42 = vector.broadcast %cst_40 : f32 to vector<50x64xf32>
    %43 = arith.cmpf oge, %41, %42 : vector<50x64xf32>
    %cst_41 = arith.constant 1.000000e-01 : f32
    %44 = vector.broadcast %cst_41 : f32 to vector<50x64xf32>
    %45 = arith.mulf %44, %41 : vector<50x64xf32>
    %46 = arith.select %43, %41, %45 : vector<50x64xi1>, vector<50x64xf32>
    %c0_42 = arith.constant 0 : index
    %c0_43 = arith.constant 0 : index
    %47 = vector.load %arg7[%c0_42, %c0_43] : memref<64x64xf32, #tpu.memory_space<vmem>>, vector<64x64xf32>
    %cst_44 = arith.constant dense<0.000000e+00> : vector<50x64xf32>
    %48 = tpu.matmul %46, %47, %cst_44 {dimension_numbers = #tpu.dot_dimension_numbers<[1], [0], [0], [1], [0, 0, 1, 1], [], []>} : vector<50x64xf32>, vector<64x64xf32>, vector<50x64xf32> -> vector<50x64xf32>
    %c0_45 = arith.constant 0 : index
    %c0_46 = arith.constant 0 : index
    %49 = vector.load %arg8[%c0_45, %c0_46] : memref<1x64xf32, #tpu.memory_space<vmem>>, vector<1x64xf32>
    %50 = vector.broadcast %49 : vector<1x64xf32> to vector<50x64xf32>
    %51 = arith.addf %48, %50 : vector<50x64xf32>
    %cst_47 = arith.constant 0.000000e+00 : f32
    %52 = vector.broadcast %cst_47 : f32 to vector<50x64xf32>
    %53 = arith.cmpf oge, %51, %52 : vector<50x64xf32>
    %cst_48 = arith.constant 1.000000e-01 : f32
    %54 = vector.broadcast %cst_48 : f32 to vector<50x64xf32>
    %55 = arith.mulf %54, %51 : vector<50x64xf32>
    %56 = arith.select %53, %51, %55 : vector<50x64xi1>, vector<50x64xf32>
    %57 = vector.extract_strided_slice %56 {offsets = [0, 0], sizes = [2, 64], strides = [1, 1]} : vector<50x64xf32> to vector<2x64xf32>
    %c0_49 = arith.constant 0 : index
    %c0_50 = arith.constant 0 : index
    %58 = vector.load %arg20[%c0_49, %c0_50] : memref<2x1600xf32, #tpu.memory_space<vmem>>, vector<2x64xf32>
    tpu.vector_store %arg20[%c0_49, %c0_50], %57 {strides = array<i32>} : memref<2x1600xf32, #tpu.memory_space<vmem>>, vector<2x64xf32>,
    %59 = vector.extract_strided_slice %56 {offsets = [2, 0], sizes = [2, 64], strides = [1, 1]} : vector<50x64xf32> to vector<2x64xf32>
    %c0_51 = arith.constant 0 : index
    %c64 = arith.constant 64 : index
    %60 = vector.load %arg20[%c0_51, %c64] : memref<2x1600xf32, #tpu.memory_space<vmem>>, vector<2x64xf32>
    tpu.vector_store %arg20[%c0_51, %c64], %59 {strides = array<i32>} : memref<2x1600xf32, #tpu.memory_space<vmem>>, vector<2x64xf32>,
    %61 = vector.extract_strided_slice %56 {offsets = [4, 0], sizes = [2, 64], strides = [1, 1]} : vector<50x64xf32> to vector<2x64xf32>
    %c0_52 = arith.constant 0 : index
    %c128 = arith.constant 128 : index
    %62 = vector.load %arg20[%c0_52, %c128] : memref<2x1600xf32, #tpu.memory_space<vmem>>, vector<2x64xf32>
    tpu.vector_store %arg20[%c0_52, %c128], %61 {strides = array<i32>} : memref<2x1600xf32, #tpu.memory_space<vmem>>, vector<2x64xf32>,
    %63 = vector.extract_strided_slice %56 {offsets = [6, 0], sizes = [2, 64], strides = [1, 1]} : vector<50x64xf32> to vector<2x64xf32>
    %c0_53 = arith.constant 0 : index
    %c192 = arith.constant 192 : index
    %64 = vector.load %arg20[%c0_53, %c192] : memref<2x1600xf32, #tpu.memory_space<vmem>>, vector<2x64xf32>
    tpu.vector_store %arg20[%c0_53, %c192], %63 {strides = array<i32>} : memref<2x1600xf32, #tpu.memory_space<vmem>>, vector<2x64xf32>,
    %65 = vector.extract_strided_slice %56 {offsets = [8, 0], sizes = [2, 64], strides = [1, 1]} : vector<50x64xf32> to vector<2x64xf32>
    %c0_54 = arith.constant 0 : index
    %c256 = arith.constant 256 : index
    %66 = vector.load %arg20[%c0_54, %c256] : memref<2x1600xf32, #tpu.memory_space<vmem>>, vector<2x64xf32>
    tpu.vector_store %arg20[%c0_54, %c256], %65 {strides = array<i32>} : memref<2x1600xf32, #tpu.memory_space<vmem>>, vector<2x64xf32>,
    %67 = vector.extract_strided_slice %56 {offsets = [10, 0], sizes = [2, 64], strides = [1, 1]} : vector<50x64xf32> to vector<2x64xf32>
    %c0_55 = arith.constant 0 : index
    %c320 = arith.constant 320 : index
    %68 = vector.load %arg20[%c0_55, %c320] : memref<2x1600xf32, #tpu.memory_space<vmem>>, vector<2x64xf32>
    tpu.vector_store %arg20[%c0_55, %c320], %67 {strides = array<i32>} : memref<2x1600xf32, #tpu.memory_space<vmem>>, vector<2x64xf32>,
    %69 = vector.extract_strided_slice %56 {offsets = [12, 0], sizes = [2, 64], strides = [1, 1]} : vector<50x64xf32> to vector<2x64xf32>
    %c0_56 = arith.constant 0 : index
    %c384 = arith.constant 384 : index
    %70 = vector.load %arg20[%c0_56, %c384] : memref<2x1600xf32, #tpu.memory_space<vmem>>, vector<2x64xf32>
    tpu.vector_store %arg20[%c0_56, %c384], %69 {strides = array<i32>} : memref<2x1600xf32, #tpu.memory_space<vmem>>, vector<2x64xf32>,
    %71 = vector.extract_strided_slice %56 {offsets = [14, 0], sizes = [2, 64], strides = [1, 1]} : vector<50x64xf32> to vector<2x64xf32>
    %c0_57 = arith.constant 0 : index
    %c448 = arith.constant 448 : index
    %72 = vector.load %arg20[%c0_57, %c448] : memref<2x1600xf32, #tpu.memory_space<vmem>>, vector<2x64xf32>
    tpu.vector_store %arg20[%c0_57, %c448], %71 {strides = array<i32>} : memref<2x1600xf32, #tpu.memory_space<vmem>>, vector<2x64xf32>,
    %73 = vector.extract_strided_slice %56 {offsets = [16, 0], sizes = [2, 64], strides = [1, 1]} : vector<50x64xf32> to vector<2x64xf32>
    %c0_58 = arith.constant 0 : index
    %c512 = arith.constant 512 : index
    %74 = vector.load %arg20[%c0_58, %c512] : memref<2x1600xf32, #tpu.memory_space<vmem>>, vector<2x64xf32>
    tpu.vector_store %arg20[%c0_58, %c512], %73 {strides = array<i32>} : memref<2x1600xf32, #tpu.memory_space<vmem>>, vector<2x64xf32>,
    %75 = vector.extract_strided_slice %56 {offsets = [18, 0], sizes = [2, 64], strides = [1, 1]} : vector<50x64xf32> to vector<2x64xf32>
    %c0_59 = arith.constant 0 : index
    %c576 = arith.constant 576 : index
    %76 = vector.load %arg20[%c0_59, %c576] : memref<2x1600xf32, #tpu.memory_space<vmem>>, vector<2x64xf32>
    tpu.vector_store %arg20[%c0_59, %c576], %75 {strides = array<i32>} : memref<2x1600xf32, #tpu.memory_space<vmem>>, vector<2x64xf32>,
    %77 = vector.extract_strided_slice %56 {offsets = [20, 0], sizes = [2, 64], strides = [1, 1]} : vector<50x64xf32> to vector<2x64xf32>
    %c0_60 = arith.constant 0 : index
    %c640 = arith.constant 640 : index
    %78 = vector.load %arg20[%c0_60, %c640] : memref<2x1600xf32, #tpu.memory_space<vmem>>, vector<2x64xf32>
    tpu.vector_store %arg20[%c0_60, %c640], %77 {strides = array<i32>} : memref<2x1600xf32, #tpu.memory_space<vmem>>, vector<2x64xf32>,
    %79 = vector.extract_strided_slice %56 {offsets = [22, 0], sizes = [2, 64], strides = [1, 1]} : vector<50x64xf32> to vector<2x64xf32>
    %c0_61 = arith.constant 0 : index
    %c704 = arith.constant 704 : index
    %80 = vector.load %arg20[%c0_61, %c704] : memref<2x1600xf32, #tpu.memory_space<vmem>>, vector<2x64xf32>
    tpu.vector_store %arg20[%c0_61, %c704], %79 {strides = array<i32>} : memref<2x1600xf32, #tpu.memory_space<vmem>>, vector<2x64xf32>,
    %81 = vector.extract_strided_slice %56 {offsets = [24, 0], sizes = [2, 64], strides = [1, 1]} : vector<50x64xf32> to vector<2x64xf32>
    %c0_62 = arith.constant 0 : index
    %c768 = arith.constant 768 : index
    %82 = vector.load %arg20[%c0_62, %c768] : memref<2x1600xf32, #tpu.memory_space<vmem>>, vector<2x64xf32>
    tpu.vector_store %arg20[%c0_62, %c768], %81 {strides = array<i32>} : memref<2x1600xf32, #tpu.memory_space<vmem>>, vector<2x64xf32>,
    %83 = vector.extract_strided_slice %56 {offsets = [26, 0], sizes = [2, 64], strides = [1, 1]} : vector<50x64xf32> to vector<2x64xf32>
    %c0_63 = arith.constant 0 : index
    %c832 = arith.constant 832 : index
    %84 = vector.load %arg20[%c0_63, %c832] : memref<2x1600xf32, #tpu.memory_space<vmem>>, vector<2x64xf32>
    tpu.vector_store %arg20[%c0_63, %c832], %83 {strides = array<i32>} : memref<2x1600xf32, #tpu.memory_space<vmem>>, vector<2x64xf32>,
    %85 = vector.extract_strided_slice %56 {offsets = [28, 0], sizes = [2, 64], strides = [1, 1]} : vector<50x64xf32> to vector<2x64xf32>
    %c0_64 = arith.constant 0 : index
    %c896 = arith.constant 896 : index
    %86 = vector.load %arg20[%c0_64, %c896] : memref<2x1600xf32, #tpu.memory_space<vmem>>, vector<2x64xf32>
    tpu.vector_store %arg20[%c0_64, %c896], %85 {strides = array<i32>} : memref<2x1600xf32, #tpu.memory_space<vmem>>, vector<2x64xf32>,
    %87 = vector.extract_strided_slice %56 {offsets = [30, 0], sizes = [2, 64], strides = [1, 1]} : vector<50x64xf32> to vector<2x64xf32>
    %c0_65 = arith.constant 0 : index
    %c960 = arith.constant 960 : index
    %88 = vector.load %arg20[%c0_65, %c960] : memref<2x1600xf32, #tpu.memory_space<vmem>>, vector<2x64xf32>
    tpu.vector_store %arg20[%c0_65, %c960], %87 {strides = array<i32>} : memref<2x1600xf32, #tpu.memory_space<vmem>>, vector<2x64xf32>,
    %89 = vector.extract_strided_slice %56 {offsets = [32, 0], sizes = [2, 64], strides = [1, 1]} : vector<50x64xf32> to vector<2x64xf32>
    %c0_66 = arith.constant 0 : index
    %c1024 = arith.constant 1024 : index
    %90 = vector.load %arg20[%c0_66, %c1024] : memref<2x1600xf32, #tpu.memory_space<vmem>>, vector<2x64xf32>
    tpu.vector_store %arg20[%c0_66, %c1024], %89 {strides = array<i32>} : memref<2x1600xf32, #tpu.memory_space<vmem>>, vector<2x64xf32>,
    %91 = vector.extract_strided_slice %56 {offsets = [34, 0], sizes = [2, 64], strides = [1, 1]} : vector<50x64xf32> to vector<2x64xf32>
    %c0_67 = arith.constant 0 : index
    %c1088 = arith.constant 1088 : index
    %92 = vector.load %arg20[%c0_67, %c1088] : memref<2x1600xf32, #tpu.memory_space<vmem>>, vector<2x64xf32>
    tpu.vector_store %arg20[%c0_67, %c1088], %91 {strides = array<i32>} : memref<2x1600xf32, #tpu.memory_space<vmem>>, vector<2x64xf32>,
    %93 = vector.extract_strided_slice %56 {offsets = [36, 0], sizes = [2, 64], strides = [1, 1]} : vector<50x64xf32> to vector<2x64xf32>
    %c0_68 = arith.constant 0 : index
    %c1152 = arith.constant 1152 : index
    %94 = vector.load %arg20[%c0_68, %c1152] : memref<2x1600xf32, #tpu.memory_space<vmem>>, vector<2x64xf32>
    tpu.vector_store %arg20[%c0_68, %c1152], %93 {strides = array<i32>} : memref<2x1600xf32, #tpu.memory_space<vmem>>, vector<2x64xf32>,
    %95 = vector.extract_strided_slice %56 {offsets = [38, 0], sizes = [2, 64], strides = [1, 1]} : vector<50x64xf32> to vector<2x64xf32>
    %c0_69 = arith.constant 0 : index
    %c1216 = arith.constant 1216 : index
    %96 = vector.load %arg20[%c0_69, %c1216] : memref<2x1600xf32, #tpu.memory_space<vmem>>, vector<2x64xf32>
    tpu.vector_store %arg20[%c0_69, %c1216], %95 {strides = array<i32>} : memref<2x1600xf32, #tpu.memory_space<vmem>>, vector<2x64xf32>,
    %97 = vector.extract_strided_slice %56 {offsets = [40, 0], sizes = [2, 64], strides = [1, 1]} : vector<50x64xf32> to vector<2x64xf32>
    %c0_70 = arith.constant 0 : index
    %c1280 = arith.constant 1280 : index
    %98 = vector.load %arg20[%c0_70, %c1280] : memref<2x1600xf32, #tpu.memory_space<vmem>>, vector<2x64xf32>
    tpu.vector_store %arg20[%c0_70, %c1280], %97 {strides = array<i32>} : memref<2x1600xf32, #tpu.memory_space<vmem>>, vector<2x64xf32>,
    %99 = vector.extract_strided_slice %56 {offsets = [42, 0], sizes = [2, 64], strides = [1, 1]} : vector<50x64xf32> to vector<2x64xf32>
    %c0_71 = arith.constant 0 : index
    %c1344 = arith.constant 1344 : index
    %100 = vector.load %arg20[%c0_71, %c1344] : memref<2x1600xf32, #tpu.memory_space<vmem>>, vector<2x64xf32>
    tpu.vector_store %arg20[%c0_71, %c1344], %99 {strides = array<i32>} : memref<2x1600xf32, #tpu.memory_space<vmem>>, vector<2x64xf32>,
    %101 = vector.extract_strided_slice %56 {offsets = [44, 0], sizes = [2, 64], strides = [1, 1]} : vector<50x64xf32> to vector<2x64xf32>
    %c0_72 = arith.constant 0 : index
    %c1408 = arith.constant 1408 : index
    %102 = vector.load %arg20[%c0_72, %c1408] : memref<2x1600xf32, #tpu.memory_space<vmem>>, vector<2x64xf32>
    tpu.vector_store %arg20[%c0_72, %c1408], %101 {strides = array<i32>} : memref<2x1600xf32, #tpu.memory_space<vmem>>, vector<2x64xf32>,
    %103 = vector.extract_strided_slice %56 {offsets = [46, 0], sizes = [2, 64], strides = [1, 1]} : vector<50x64xf32> to vector<2x64xf32>
    %c0_73 = arith.constant 0 : index
    %c1472 = arith.constant 1472 : index
    %104 = vector.load %arg20[%c0_73, %c1472] : memref<2x1600xf32, #tpu.memory_space<vmem>>, vector<2x64xf32>
    tpu.vector_store %arg20[%c0_73, %c1472], %103 {strides = array<i32>} : memref<2x1600xf32, #tpu.memory_space<vmem>>, vector<2x64xf32>,
    %105 = vector.extract_strided_slice %56 {offsets = [48, 0], sizes = [2, 64], strides = [1, 1]} : vector<50x64xf32> to vector<2x64xf32>
    %c0_74 = arith.constant 0 : index
    %c1536 = arith.constant 1536 : index
    %106 = vector.load %arg20[%c0_74, %c1536] : memref<2x1600xf32, #tpu.memory_space<vmem>>, vector<2x64xf32>
    tpu.vector_store %arg20[%c0_74, %c1536], %105 {strides = array<i32>} : memref<2x1600xf32, #tpu.memory_space<vmem>>, vector<2x64xf32>,
    %c0_75 = arith.constant 0 : index
    %c0_76 = arith.constant 0 : index
    %107 = vector.load %arg20[%c0_75, %c0_76] : memref<2x1600xf32, #tpu.memory_space<vmem>>, vector<2x1600xf32>
    %c0_77 = arith.constant 0 : index
    %c0_78 = arith.constant 0 : index
    %108 = vector.load %arg9[%c0_77, %c0_78] : memref<1600x512xf32, #tpu.memory_space<vmem>>, vector<1600x512xf32>
    %cst_79 = arith.constant dense<0.000000e+00> : vector<2x512xf32>
    %109 = tpu.matmul %107, %108, %cst_79 {dimension_numbers = #tpu.dot_dimension_numbers<[1], [0], [0], [1], [0, 0, 1, 1], [], []>} : vector<2x1600xf32>, vector<1600x512xf32>, vector<2x512xf32> -> vector<2x512xf32>
    %c0_80 = arith.constant 0 : index
    %c0_81 = arith.constant 0 : index
    %110 = vector.load %arg12[%c0_80, %c0_81] : memref<2x128xf32, #tpu.memory_space<vmem>>, vector<2x128xf32>
    %c0_82 = arith.constant 0 : index
    %c0_83 = arith.constant 0 : index
    %111 = vector.load %arg10[%c0_82, %c0_83] : memref<128x512xf32, #tpu.memory_space<vmem>>, vector<128x512xf32>
    %cst_84 = arith.constant dense<0.000000e+00> : vector<2x512xf32>
    %112 = tpu.matmul %110, %111, %cst_84 {dimension_numbers = #tpu.dot_dimension_numbers<[1], [0], [0], [1], [0, 0, 1, 1], [], []>} : vector<2x128xf32>, vector<128x512xf32>, vector<2x512xf32> -> vector<2x512xf32>
    %113 = arith.addf %109, %112 : vector<2x512xf32>
    %c0_85 = arith.constant 0 : index
    %c0_86 = arith.constant 0 : index
    %114 = vector.load %arg11[%c0_85, %c0_86] : memref<1x512xf32, #tpu.memory_space<vmem>>, vector<1x512xf32>
    %115 = vector.broadcast %114 : vector<1x512xf32> to vector<2x512xf32>
    %116 = arith.addf %113, %115 : vector<2x512xf32>
    %117 = vector.extract_strided_slice %116 {offsets = [0, 0], sizes = [2, 128], strides = [1, 1]} : vector<2x512xf32> to vector<2x128xf32>
    %118 = arith.negf %117 : vector<2x128xf32>
    %119 = math.exp %118 : vector<2x128xf32>
    %cst_87 = arith.constant 1.000000e+00 : f32
    %120 = vector.broadcast %cst_87 : f32 to vector<2x128xf32>
    %121 = arith.addf %120, %119 : vector<2x128xf32>
    %122 = arith.divf %120, %121 : vector<2x128xf32>
    %123 = vector.extract_strided_slice %116 {offsets = [0, 128], sizes = [2, 128], strides = [1, 1]} : vector<2x512xf32> to vector<2x128xf32>
    %124 = arith.negf %123 : vector<2x128xf32>
    %125 = math.exp %124 : vector<2x128xf32>
    %cst_88 = arith.constant 1.000000e+00 : f32
    %126 = vector.broadcast %cst_88 : f32 to vector<2x128xf32>
    %127 = arith.addf %126, %125 : vector<2x128xf32>
    %128 = arith.divf %126, %127 : vector<2x128xf32>
    %129 = vector.extract_strided_slice %116 {offsets = [0, 256], sizes = [2, 128], strides = [1, 1]} : vector<2x512xf32> to vector<2x128xf32>
    %130 = math.tanh %129 : vector<2x128xf32>
    %131 = vector.extract_strided_slice %116 {offsets = [0, 384], sizes = [2, 128], strides = [1, 1]} : vector<2x512xf32> to vector<2x128xf32>
    %132 = arith.negf %131 : vector<2x128xf32>
    %133 = math.exp %132 : vector<2x128xf32>
    %cst_89 = arith.constant 1.000000e+00 : f32
    %134 = vector.broadcast %cst_89 : f32 to vector<2x128xf32>
    %135 = arith.addf %134, %133 : vector<2x128xf32>
    %136 = arith.divf %134, %135 : vector<2x128xf32>
    %c0_90 = arith.constant 0 : index
    %c0_91 = arith.constant 0 : index
    %137 = vector.load %arg13[%c0_90, %c0_91] : memref<2x128xf32, #tpu.memory_space<vmem>>, vector<2x128xf32>
    %138 = arith.mulf %128, %137 : vector<2x128xf32>
    %139 = arith.mulf %122, %130 : vector<2x128xf32>
    %140 = arith.addf %138, %139 : vector<2x128xf32>
    %141 = math.tanh %140 : vector<2x128xf32>
    %142 = arith.mulf %136, %141 : vector<2x128xf32>
    %c0_92 = arith.constant 0 : index
    %c0_93 = arith.constant 0 : index
    %143 = vector.load %arg17[%c0_92, %c0_93] : memref<2x128xf32, #tpu.memory_space<vmem>>, vector<2x128xf32>
    tpu.vector_store %arg17[%c0_92, %c0_93], %142 {strides = array<i32>} : memref<2x128xf32, #tpu.memory_space<vmem>>, vector<2x128xf32>,
    %c0_94 = arith.constant 0 : index
    %c0_95 = arith.constant 0 : index
    %144 = vector.load %arg18[%c0_94, %c0_95] : memref<2x128xf32, #tpu.memory_space<vmem>>, vector<2x128xf32>
    tpu.vector_store %arg18[%c0_94, %c0_95], %140 {strides = array<i32>} : memref<2x128xf32, #tpu.memory_space<vmem>>, vector<2x128xf32>,
    %c0_96 = arith.constant 0 : index
    %c0_97 = arith.constant 0 : index
    %145 = vector.load %arg14[%c0_96, %c0_97] : memref<128x15xf32, #tpu.memory_space<vmem>>, vector<128x15xf32>
    %cst_98 = arith.constant dense<0.000000e+00> : vector<2x15xf32>
    %146 = tpu.matmul %142, %145, %cst_98 {dimension_numbers = #tpu.dot_dimension_numbers<[1], [0], [0], [1], [0, 0, 1, 1], [], []>} : vector<2x128xf32>, vector<128x15xf32>, vector<2x15xf32> -> vector<2x15xf32>
    %c0_99 = arith.constant 0 : index
    %c0_100 = arith.constant 0 : index
    %147 = vector.load %arg15[%c0_99, %c0_100] : memref<1x15xf32, #tpu.memory_space<vmem>>, vector<1x15xf32>
    %148 = vector.broadcast %147 : vector<1x15xf32> to vector<2x15xf32>
    %149 = arith.addf %146, %148 : vector<2x15xf32>
    %150 = tpu.iota {dimensions = array<i32: 1>} : vector<2x15xi32>
    %151 = math.absf %149 : vector<2x15xf32>
    %cst_101 = arith.constant 1.000000e+00 : f32
    %152 = vector.broadcast %cst_101 : f32 to vector<2x15xf32>
    %153 = arith.addf %152, %151 : vector<2x15xf32>
    %154 = tpu.reciprocal %153 {approx = true} : vector<2x15xf32> -> vector<2x15xf32>
    %155 = arith.mulf %149, %154 : vector<2x15xf32>
    %c1_i32 = arith.constant 1 : i32
    %156 = vector.broadcast %c1_i32 : i32 to vector<2x15xi32>
    %157 = arith.cmpi sge, %150, %156 : vector<2x15xi32>
    %c7_i32 = arith.constant 7 : i32
    %158 = vector.broadcast %c7_i32 : i32 to vector<2x15xi32>
    %159 = arith.cmpi slt, %150, %158 : vector<2x15xi32>
    %160 = arith.andi %157, %159 : vector<2x15xi1>
    %161 = arith.select %160, %155, %149 : vector<2x15xi1>, vector<2x15xf32>
    %c0_102 = arith.constant 0 : index
    %c0_103 = arith.constant 0 : index
    %162 = vector.load %arg16[%c0_102, %c0_103] : memref<2x15xf32, #tpu.memory_space<vmem>>, vector<2x15xf32>
    tpu.vector_store %arg16[%c0_102, %c0_103], %161 {strides = array<i32>} : memref<2x15xf32, #tpu.memory_space<vmem>>, vector<2x15xf32>,
    return
  }
}

</mosaic_0001>

<llo_original>
// kernel: tpu_custom_call.1
$region0: #{tpu_custom_call.1}
  #allocation0 [shape = 'u32[]', space=smem, size = 0x4, offset = 0x4, fixed_abs, tag = 'smem constant byte address 0x4 - core index']
  #allocation1 [shape = 'u32[144,128]{1,0:T(1,128)}', space=vmem, size = 0x12000, scoped, tag = 'internal scratch']
  #allocation2 [shape = 'f32[52,32]{1,0:T(8,128)}', space=vmem, size = 0x7000, scoped, tag = 'scratch operand']
  #allocation3 [shape = 'f32[2,1600]{1,0:T(2,128)}', space=vmem, size = 0x3400, scoped, tag = 'scratch operand']
  %s0 = inlined_call_operand.vmem [shape: f32[52,4], index: 0, kind: input, shape index: {}]
  %s1 = inlined_call_operand.hbm [shape: f32[12,32], index: 1, kind: input, shape index: {}]
  %s2 = inlined_call_operand.hbm [shape: f32[1,32], index: 2, kind: input, shape index: {}]
  %s3 = inlined_call_operand.vmem [shape: f32[96,32], index: 3, kind: input, shape index: {}]
  %s4 = inlined_call_operand.hbm [shape: f32[1,32], index: 4, kind: input, shape index: {}]
  %s5 = inlined_call_operand.hbm [shape: f32[64,64], index: 5, kind: input, shape index: {}]
  %s6 = inlined_call_operand.hbm [shape: f32[1,64], index: 6, kind: input, shape index: {}]
  %s7 = inlined_call_operand.hbm [shape: f32[64,64], index: 7, kind: input, shape index: {}]
  %s8 = inlined_call_operand.hbm [shape: f32[1,64], index: 8, kind: input, shape index: {}]
  %s9 = inlined_call_operand.hbm [shape: f32[1600,512], index: 9, kind: input, shape index: {}]
  %s10 = inlined_call_operand.hbm [shape: f32[128,512], index: 10, kind: input, shape index: {}]
  %s11 = inlined_call_operand.hbm [shape: f32[1,512], index: 11, kind: input, shape index: {}]
  %s12 = inlined_call_operand.hbm [shape: f32[2,128], index: 12, kind: input, shape index: {}]
  %s13 = inlined_call_operand.hbm [shape: f32[2,128], index: 13, kind: input, shape index: {}]
  %s14 = inlined_call_operand.vmem [shape: f32[128,15], index: 14, kind: input, shape index: {}]
  %s15 = inlined_call_operand.hbm [shape: f32[1,15], index: 15, kind: input, shape index: {}]
  %s16 = inlined_call_operand.hbm [shape: f32[2,15], index: 16, kind: output, shape index: {0}]
  %s17 = inlined_call_operand.hbm [shape: f32[2,128], index: 17, kind: output, shape index: {1}]
  %s18 = inlined_call_operand.hbm [shape: f32[2,128], index: 18, kind: output, shape index: {2}]
  %19 = xla_tuple %s16, %s17, %s18
  %s20 = sld [smem:[#allocation0]]
  $region142: #{tpu_custom_call.1} parent=0
    _
  %s22 = ssub.s32 1, %s20
  %s23 = scalar_select 0, %s22, %s20
  $region1: #{tpu_custom_call.1} parent=0
    #allocation4 [shape = 'u8[8192]{0}', space=vmem, size = 0x2000, scoped, tag = 'input window, operand 1, single buffered']
    #allocation5 [shape = 's32[1]{0}', space=sflag, size = 0x4, scoped, tag = 'scoped memory for tpu_custom_call.1']
    #allocation6 [shape = 's32[1]{0}', space=sflag, size = 0x4, scoped, tag = 'scoped memory for tpu_custom_call.1']
    #allocation7 [shape = 'u8[512]{0}', space=vmem, size = 0x400, scoped, tag = 'input window, operand 2, single buffered']
    #allocation8 [shape = 's32[1]{0}', space=sflag, size = 0x4, scoped, tag = 'scoped memory for tpu_custom_call.1']
    #allocation9 [shape = 'u8[512]{0}', space=vmem, size = 0x400, scoped, tag = 'input window, operand 4, single buffered']
    #allocation10 [shape = 'u8[32768]{0}', space=vmem, size = 0x8000, scoped, tag = 'input window, operand 5, single buffered']
    #allocation11 [shape = 's32[1]{0}', space=sflag, size = 0x4, scoped, tag = 'scoped memory for tpu_custom_call.1']
    #allocation12 [shape = 'u8[512]{0}', space=vmem, size = 0x400, scoped, tag = 'input window, operand 6, single buffered']
    #allocation13 [shape = 'u8[32768]{0}', space=vmem, size = 0x8000, scoped, tag = 'input window, operand 7, single buffered']
    #allocation14 [shape = 's32[1]{0}', space=sflag, size = 0x4, scoped, tag = 'scoped memory for tpu_custom_call.1']
    #allocation15 [shape = 'u8[512]{0}', space=vmem, size = 0x400, scoped, tag = 'input window, operand 8, single buffered']
    #allocation16 [shape = 'u8[3276800]{0}', space=vmem, size = 0x320000, scoped, tag = 'input window, operand 9, single buffered']
    #allocation17 [shape = 's32[1]{0}', space=sflag, size = 0x4, scoped, tag = 'scoped memory for tpu_custom_call.1']
    #allocation18 [shape = 'u8[262144]{0}', space=vmem, size = 0x40000, scoped, tag = 'input window, operand 10, single buffered']
    #allocation19 [shape = 'u8[2048]{0}', space=vmem, size = 0x800, scoped, tag = 'input window, operand 11, single buffered']
    #allocation20 [shape = 's32[1]{0}', space=sflag, size = 0x4, scoped, tag = 'scoped memory for tpu_custom_call.1']
    #allocation21 [shape = 'u8[1024]{0}', space=vmem, size = 0x400, scoped, tag = 'input window, operand 12, single buffered']
    #allocation22 [shape = 'u8[1024]{0}', space=vmem, size = 0x400, scoped, tag = 'input window, operand 13, single buffered']
    #allocation23 [shape = 's32[1]{0}', space=sflag, size = 0x4, scoped, tag = 'scoped memory for tpu_custom_call.1']
    #allocation24 [shape = 'u8[512]{0}', space=vmem, size = 0x400, scoped, tag = 'input window, operand 15, single buffered']
    #allocation25 [shape = 'u8[1024]{0}', space=vmem, size = 0x400, scoped, tag = 'output window, operand 0, single buffered']
    #allocation26 [shape = 'u8[1024]{0}', space=vmem, size = 0x400, scoped, tag = 'output window, operand 1, single buffered']
    #allocation27 [shape = 's32[1]{0}', space=sflag, size = 0x4, scoped, tag = 'scoped memory for tpu_custom_call.1']
    #allocation28 [shape = 'u8[1024]{0}', space=vmem, size = 0x400, scoped, tag = 'output window, operand 2, single buffered']
    %24 = vsyncpa [#allocation5], 0
    %25 = vsyncpa [#allocation8], 0
    %26 = vsyncpa [#allocation11], 0
    %27 = vsyncpa [#allocation14], 0
    %28 = vsyncpa [#allocation17], 0
    %29 = vsyncpa [#allocation20], 0
    %30 = vsyncpa [#allocation23], 0
    %31 = vsyncpa [#allocation6], 0
    %32 = vsyncpa [#allocation27], 0
    // Predicated region
    $region2: #{tpu_custom_call.1} parent=1 // pred_check
      _
    $region3: #{tpu_custom_call.1} parent=1 // pred_check_branch
      %34 = sbr.rel (0) target = $region5
    $region4: #{tpu_custom_call.1} parent=1 // pred_region
      _
    $region5: #{tpu_custom_call.1} parent=1 // pred_fallthru
      _
    // Predicated region
    $region6: #{tpu_custom_call.1} parent=1 // pred_check
      _
    $region7: #{tpu_custom_call.1} parent=1 // pred_check_branch
      %36 = sbr.rel (0) target = $region9
    $region8: #{tpu_custom_call.1} parent=1 // pred_region
      %s38 = ssub.s32 256, 256
      %39 = vsyncadd [#allocation5], %s38
      %s40 = sshll.u32 [#allocation4], 4
      %s41 = int_to_ptr.vmem [resolvable:$true] %s40
      %46 = dma.hbm_to_vmem [thread:$0]  %s1, 256, %s41, [#allocation5], 128, 128, 8
    $region9: #{tpu_custom_call.1} parent=1 // pred_fallthru
      _
    // Predicated region
    $region10: #{tpu_custom_call.1} parent=1 // pred_check
      _
    $region11: #{tpu_custom_call.1} parent=1 // pred_check_branch
      %48 = sbr.rel (0) target = $region13
    $region12: #{tpu_custom_call.1} parent=1 // pred_region
      %s50 = ssub.s32 16, 16
      %51 = vsyncadd [#allocation8], %s50
      %s53 = sshll.u32 [#allocation7], 4
      %s54 = int_to_ptr.vmem [resolvable:$true] %s53
      %56 = dma.hbm_to_vmem [thread:$0]  %s2, 16, %s54, [#allocation8]
    $region13: #{tpu_custom_call.1} parent=1 // pred_fallthru
      _
    // Predicated region
    $region14: #{tpu_custom_call.1} parent=1 // pred_check
      _
    $region15: #{tpu_custom_call.1} parent=1 // pred_check_branch
      %58 = sbr.rel (0) target = $region17
    $region16: #{tpu_custom_call.1} parent=1 // pred_region
      _
    $region17: #{tpu_custom_call.1} parent=1 // pred_fallthru
      _
    // Predicated region
    $region18: #{tpu_custom_call.1} parent=1 // pred_check
      _
    $region19: #{tpu_custom_call.1} parent=1 // pred_check_branch
      %60 = sbr.rel (0) target = $region21
    $region20: #{tpu_custom_call.1} parent=1 // pred_region
      %s62 = ssub.s32 16, 16
      %63 = vsyncadd [#allocation8], %s62
      %s65 = sshll.u32 [#allocation9], 4
      %s66 = int_to_ptr.vmem [resolvable:$true] %s65
      %68 = dma.hbm_to_vmem [thread:$0]  %s4, 16, %s66, [#allocation8]
    $region21: #{tpu_custom_call.1} parent=1 // pred_fallthru
      _
    // Predicated region
    $region22: #{tpu_custom_call.1} parent=1 // pred_check
      _
    $region23: #{tpu_custom_call.1} parent=1 // pred_check_branch
      %70 = sbr.rel (0) target = $region25
    $region24: #{tpu_custom_call.1} parent=1 // pred_region
      %s72 = ssub.s32 1024, 1024
      %73 = vsyncadd [#allocation11], %s72
      %s74 = sshll.u32 [#allocation10], 4
      %s75 = int_to_ptr.vmem [resolvable:$true] %s74
      %80 = dma.hbm_to_vmem [thread:$0]  %s5, 1024, %s75, [#allocation11], 128, 128, 8
    $region25: #{tpu_custom_call.1} parent=1 // pred_fallthru
      _
    // Predicated region
    $region26: #{tpu_custom_call.1} parent=1 // pred_check
      _
    $region27: #{tpu_custom_call.1} parent=1 // pred_check_branch
      %82 = sbr.rel (0) target = $region29
    $region28: #{tpu_custom_call.1} parent=1 // pred_region
      %s84 = ssub.s32 16, 16
      %85 = vsyncadd [#allocation11], %s84
      %s87 = sshll.u32 [#allocation12], 4
      %s88 = int_to_ptr.vmem [resolvable:$true] %s87
      %90 = dma.hbm_to_vmem [thread:$0]  %s6, 16, %s88, [#allocation11]
    $region29: #{tpu_custom_call.1} parent=1 // pred_fallthru
      _
    // Predicated region
    $region30: #{tpu_custom_call.1} parent=1 // pred_check
      _
    $region31: #{tpu_custom_call.1} parent=1 // pred_check_branch
      %92 = sbr.rel (0) target = $region33
    $region32: #{tpu_custom_call.1} parent=1 // pred_region
      %s94 = ssub.s32 1024, 1024
      %95 = vsyncadd [#allocation14], %s94
      %s96 = sshll.u32 [#allocation13], 4
      %s97 = int_to_ptr.vmem [resolvable:$true] %s96
      %102 = dma.hbm_to_vmem [thread:$0]  %s7, 1024, %s97, [#allocation14], 128, 128, 8
    $region33: #{tpu_custom_call.1} parent=1 // pred_fallthru
      _
    // Predicated region
    $region34: #{tpu_custom_call.1} parent=1 // pred_check
      _
    $region35: #{tpu_custom_call.1} parent=1 // pred_check_branch
      %104 = sbr.rel (0) target = $region37
    $region36: #{tpu_custom_call.1} parent=1 // pred_region
      %s106 = ssub.s32 16, 16
      %107 = vsyncadd [#allocation14], %s106
      %s109 = sshll.u32 [#allocation15], 4
      %s110 = int_to_ptr.vmem [resolvable:$true] %s109
      %112 = dma.hbm_to_vmem [thread:$0]  %s8, 16, %s110, [#allocation14]
    $region37: #{tpu_custom_call.1} parent=1 // pred_fallthru
      _
    // Predicated region
    $region38: #{tpu_custom_call.1} parent=1 // pred_check
      _
    $region39: #{tpu_custom_call.1} parent=1 // pred_check_branch
      %114 = sbr.rel (0) target = $region41
    $region40: #{tpu_custom_call.1} parent=1 // pred_region
      %s116 = ssub.s32 102400, 102400
      %117 = vsyncadd [#allocation17], %s116
      %s118 = sshll.u32 [#allocation16], 4
      %s119 = int_to_ptr.vmem [resolvable:$true] %s118
      %124 = dma.hbm_to_vmem [thread:$0]  %s9, 102400, %s119, [#allocation17], 512, 512, 32
    $region41: #{tpu_custom_call.1} parent=1 // pred_fallthru
      _
    // Predicated region
    $region42: #{tpu_custom_call.1} parent=1 // pred_check
      _
    $region43: #{tpu_custom_call.1} parent=1 // pred_check_branch
      %126 = sbr.rel (0) target = $region45
    $region44: #{tpu_custom_call.1} parent=1 // pred_region
      %s128 = ssub.s32 8192, 8192
      %129 = vsyncadd [#allocation17], %s128
      %s130 = sshll.u32 [#allocation18], 4
      %s131 = int_to_ptr.vmem [resolvable:$true] %s130
      %136 = dma.hbm_to_vmem [thread:$0]  %s10, 8192, %s131, [#allocation17], 512, 512, 32
    $region45: #{tpu_custom_call.1} parent=1 // pred_fallthru
      _
    // Predicated region
    $region46: #{tpu_custom_call.1} parent=1 // pred_check
      _
    $region47: #{tpu_custom_call.1} parent=1 // pred_check_branch
      %138 = sbr.rel (0) target = $region49
    $region48: #{tpu_custom_call.1} parent=1 // pred_region
      %s140 = ssub.s32 64, 64
      %141 = vsyncadd [#allocation20], %s140
      %s143 = sshll.u32 [#allocation19], 4
      %s144 = int_to_ptr.vmem [resolvable:$true] %s143
      %146 = dma.hbm_to_vmem [thread:$0]  %s11, 64, %s144, [#allocation20]
    $region49: #{tpu_custom_call.1} parent=1 // pred_fallthru
      _
    // Predicated region
    $region50: #{tpu_custom_call.1} parent=1 // pred_check
      _
    $region51: #{tpu_custom_call.1} parent=1 // pred_check_branch
      %148 = sbr.rel (0) target = $region53
    $region52: #{tpu_custom_call.1} parent=1 // pred_region
      %s150 = ssub.s32 32, 32
      %151 = vsyncadd [#allocation20], %s150
      %s153 = sshll.u32 [#allocation21], 4
      %s154 = int_to_ptr.vmem [resolvable:$true] %s153
      %156 = dma.hbm_to_vmem [thread:$0]  %s12, 32, %s154, [#allocation20]
    $region53: #{tpu_custom_call.1} parent=1 // pred_fallthru
      _
    // Predicated region
    $region54: #{tpu_custom_call.1} parent=1 // pred_check
      _
    $region55: #{tpu_custom_call.1} parent=1 // pred_check_branch
      %158 = sbr.rel (0) target = $region57
    $region56: #{tpu_custom_call.1} parent=1 // pred_region
      %s160 = ssub.s32 32, 32
      %161 = vsyncadd [#allocation23], %s160
      %s163 = sshll.u32 [#allocation22], 4
      %s164 = int_to_ptr.vmem [resolvable:$true] %s163
      %166 = dma.hbm_to_vmem [thread:$0]  %s13, 32, %s164, [#allocation23]
    $region57: #{tpu_custom_call.1} parent=1 // pred_fallthru
      _
    // Predicated region
    $region58: #{tpu_custom_call.1} parent=1 // pred_check
      _
    $region59: #{tpu_custom_call.1} parent=1 // pred_check_branch
      %168 = sbr.rel (0) target = $region61
    $region60: #{tpu_custom_call.1} parent=1 // pred_region
      _
    $region61: #{tpu_custom_call.1} parent=1 // pred_fallthru
      _
    // Predicated region
    $region62: #{tpu_custom_call.1} parent=1 // pred_check
      _
    $region63: #{tpu_custom_call.1} parent=1 // pred_check_branch
      %170 = sbr.rel (0) target = $region65
    $region64: #{tpu_custom_call.1} parent=1 // pred_region
      %s172 = ssub.s32 16, 16
      %173 = vsyncadd [#allocation23], %s172
      %s175 = sshll.u32 [#allocation24], 4
      %s176 = int_to_ptr.vmem [resolvable:$true] %s175
      %178 = dma.hbm_to_vmem [thread:$0]  %s15, 16, %s176, [#allocation23]
    $region65: #{tpu_custom_call.1} parent=1 // pred_fallthru
      _
    // Predicated region
    $region66: #{tpu_custom_call.1} parent=1 // pred_check
      _
    $region67: #{tpu_custom_call.1} parent=1 // pred_check_branch
      %180 = sbr.rel (0) target = $region69
    $region68: #{tpu_custom_call.1} parent=1 // pred_region
      %181 = dma.done [#allocation5], 256
    $region69: #{tpu_custom_call.1} parent=1 // pred_fallthru
      _
    // Predicated region
    $region70: #{tpu_custom_call.1} parent=1 // pred_check
      _
    $region71: #{tpu_custom_call.1} parent=1 // pred_check_branch
      %183 = sbr.rel (0) target = $region73
    $region72: #{tpu_custom_call.1} parent=1 // pred_region
      %184 = dma.done [#allocation8], 16
    $region73: #{tpu_custom_call.1} parent=1 // pred_fallthru
      _
    // Predicated region
    $region74: #{tpu_custom_call.1} parent=1 // pred_check
      _
    $region75: #{tpu_custom_call.1} parent=1 // pred_check_branch
      %186 = sbr.rel (0) target = $region77
    $region76: #{tpu_custom_call.1} parent=1 // pred_region
      %187 = dma.done [#allocation8], 16
    $region77: #{tpu_custom_call.1} parent=1 // pred_fallthru
      _
    // Predicated region
    $region78: #{tpu_custom_call.1} parent=1 // pred_check
      _
    $region79: #{tpu_custom_call.1} parent=1 // pred_check_branch
      %189 = sbr.rel (0) target = $region81
    $region80: #{tpu_custom_call.1} parent=1 // pred_region
      %190 = dma.done [#allocation11], 1024
    $region81: #{tpu_custom_call.1} parent=1 // pred_fallthru
      _
    // Predicated region
    $region82: #{tpu_custom_call.1} parent=1 // pred_check
      _
    $region83: #{tpu_custom_call.1} parent=1 // pred_check_branch
      %192 = sbr.rel (0) target = $region85
    $region84: #{tpu_custom_call.1} parent=1 // pred_region
      %193 = dma.done [#allocation11], 16
    $region85: #{tpu_custom_call.1} parent=1 // pred_fallthru
      _
    // Predicated region
    $region86: #{tpu_custom_call.1} parent=1 // pred_check
      _
    $region87: #{tpu_custom_call.1} parent=1 // pred_check_branch
      %195 = sbr.rel (0) target = $region89
    $region88: #{tpu_custom_call.1} parent=1 // pred_region
      %196 = dma.done [#allocation14], 1024
    $region89: #{tpu_custom_call.1} parent=1 // pred_fallthru
      _
    // Predicated region
    $region90: #{tpu_custom_call.1} parent=1 // pred_check
      _
    $region91: #{tpu_custom_call.1} parent=1 // pred_check_branch
      %198 = sbr.rel (0) target = $region93
    $region92: #{tpu_custom_call.1} parent=1 // pred_region
      %199 = dma.done [#allocation14], 16
    $region93: #{tpu_custom_call.1} parent=1 // pred_fallthru
      _
    // Predicated region
    $region94: #{tpu_custom_call.1} parent=1 // pred_check
      _
    $region95: #{tpu_custom_call.1} parent=1 // pred_check_branch
      %201 = sbr.rel (0) target = $region97
    $region96: #{tpu_custom_call.1} parent=1 // pred_region
      %202 = dma.done [#allocation17], 102400
    $region97: #{tpu_custom_call.1} parent=1 // pred_fallthru
      _
    // Predicated region
    $region98: #{tpu_custom_call.1} parent=1 // pred_check
      _
    $region99: #{tpu_custom_call.1} parent=1 // pred_check_branch
      %204 = sbr.rel (0) target = $region101
    $region100: #{tpu_custom_call.1} parent=1 // pred_region
      %205 = dma.done [#allocation17], 8192
    $region101: #{tpu_custom_call.1} parent=1 // pred_fallthru
      _
    // Predicated region
    $region102: #{tpu_custom_call.1} parent=1 // pred_check
      _
    $region103: #{tpu_custom_call.1} parent=1 // pred_check_branch
      %207 = sbr.rel (0) target = $region105
    $region104: #{tpu_custom_call.1} parent=1 // pred_region
      %208 = dma.done [#allocation20], 64
    $region105: #{tpu_custom_call.1} parent=1 // pred_fallthru
      _
    // Predicated region
    $region106: #{tpu_custom_call.1} parent=1 // pred_check
      _
    $region107: #{tpu_custom_call.1} parent=1 // pred_check_branch
      %210 = sbr.rel (0) target = $region109
    $region108: #{tpu_custom_call.1} parent=1 // pred_region
      %211 = dma.done [#allocation20], 32
    $region109: #{tpu_custom_call.1} parent=1 // pred_fallthru
      _
    // Predicated region
    $region110: #{tpu_custom_call.1} parent=1 // pred_check
      _
    $region111: #{tpu_custom_call.1} parent=1 // pred_check_branch
      %213 = sbr.rel (0) target = $region113
    $region112: #{tpu_custom_call.1} parent=1 // pred_region
      %214 = dma.done [#allocation23], 32
    $region113: #{tpu_custom_call.1} parent=1 // pred_fallthru
      _
    // Predicated region
    $region114: #{tpu_custom_call.1} parent=1 // pred_check
      _
    $region115: #{tpu_custom_call.1} parent=1 // pred_check_branch
      %216 = sbr.rel (0) target = $region117
    $region116: #{tpu_custom_call.1} parent=1 // pred_region
      %217 = dma.done [#allocation23], 16
    $region117: #{tpu_custom_call.1} parent=1 // pred_fallthru
      _
    %v218 = vld [vmem:[%s0] sm:$0xff]
    %v219 = vld [vmem:[%s0 + $0x8] sm:$0xff]
    %v220 = vld [vmem:[%s0 + $0x10] sm:$0xff]
    %v221 = vld [vmem:[%s0 + $0x18] sm:$0xff]
    %v222 = vld [vmem:[%s0 + $0x20] sm:$0xff]
    %v223 = vld [vmem:[%s0 + $0x28] sm:$0xff]
    %v224 = vld [vmem:[%s0 + $0x2] sm:$0xff]
    %v225 = vld [vmem:[%s0 + $0xa] sm:$0xff]
    %v226 = vld [vmem:[%s0 + $0x12] sm:$0xff]
    %v227 = vld [vmem:[%s0 + $0x1a] sm:$0xff]
    %v228 = vld [vmem:[%s0 + $0x22] sm:$0xff]
    %v229 = vld [vmem:[%s0 + $0x2a] sm:$0xff]
    %v230 = vld [vmem:[%s0 + $0x4] sm:$0xff]
    %v231 = vld [vmem:[%s0 + $0xc] sm:$0xff]
    %v232 = vld [vmem:[%s0 + $0x14] sm:$0xff]
    %v233 = vld [vmem:[%s0 + $0x1c] sm:$0xff]
    %v234 = vld [vmem:[%s0 + $0x24] sm:$0xff]
    %v235 = vld [vmem:[%s0 + $0x2c] sm:$0xff]
    %242 = vrot.lane.b32.xlu0 %v224, 4
    %v243 = vpop.permute.xlu0 %242
    %244 = vrot.lane.b32.xlu0 %v225, 4
    %v245 = vpop.permute.xlu0 %244
    %246 = vrot.lane.b32.xlu0 %v226, 4
    %v247 = vpop.permute.xlu0 %246
    %248 = vrot.lane.b32.xlu0 %v227, 4
    %v249 = vpop.permute.xlu0 %248
    %250 = vrot.lane.b32.xlu0 %v228, 4
    %v251 = vpop.permute.xlu0 %250
    %252 = vrot.lane.b32.xlu0 %v229, 4
    %v253 = vpop.permute.xlu0 %252
    %266 = vrot.lane.b32.xlu0 %v230, 8
    %v267 = vpop.permute.xlu0 %266
    %268 = vrot.lane.b32.xlu0 %v231, 8
    %v269 = vpop.permute.xlu0 %268
    %270 = vrot.lane.b32.xlu0 %v232, 8
    %v271 = vpop.permute.xlu0 %270
    %272 = vrot.lane.b32.xlu0 %v233, 8
    %v273 = vpop.permute.xlu0 %272
    %274 = vrot.lane.b32.xlu0 %v234, 8
    %v275 = vpop.permute.xlu0 %274
    %276 = vrot.lane.b32.xlu0 %v235, 8
    %v277 = vpop.permute.xlu0 %276
    %vm284 = vcmask 31744
    %v285 = vsel %vm284, %v218, %v243
    %v286 = vsel %vm284, %v219, %v245
    %v287 = vsel %vm284, %v220, %v247
    %v288 = vsel %vm284, %v221, %v249
    %v289 = vsel %vm284, %v222, %v251
    %v290 = vsel %vm284, %v223, %v253
    %vm291 = vcmask 64512
    %v292 = vsel %vm291, %v285, %v267
    %v293 = vsel %vm291, %v286, %v269
    %v294 = vsel %vm291, %v287, %v271
    %v295 = vsel %vm291, %v288, %v273
    %v296 = vsel %vm291, %v289, %v275
    %v297 = vsel %vm291, %v290, %v277
    %v298 = vld [vmem:[#allocation4] sm:$0xff]
    %v299 = vld [vmem:[#allocation4 + $0x8] sm:$0xf]
    %v300 = vld [vmem:[#allocation7] sm:$0x1]
    %v302 = vlaneseq
    %v303 = vshrl.u32 %v302, 7
    %v304 = vsub.s32 0, %v303
    %v305 = vrot.slane %v300, %v304
    %vm307 = vcmask 97280
    %v309 = vsel %vm307, %v292, 0
    %v312 = vsel %vm307, %v293, 0
    %v315 = vsel %vm307, %v294, 0
    %v318 = vsel %vm307, %v295, 0
    %v321 = vsel %vm307, %v296, 0
    %v324 = vsel %vm307, %v297, 0
    %vm326 = vcmask 1043456
    %v328 = vsel %vm326, %v299, 0
    %330 = vmatprep.subr.mxu0 0.0
    %331 = vmatpush1.msra.mxu0 %v298
    %332 = vmatprep.subr.mxu0 0.0
    %333 = vmatpush1.msra.mxu0 %v328
    %334 = vmatprep.subr.mxu0 0.0
    %335 = vmatpush1.msra.mxu0 0.0
    %336 = vmatprep.subr.mxu0 0.0
    %337 = vmatpush1.msra.mxu0 0.0
    %338 = vmatprep.subr.mxu0 0.0
    %339 = vmatpush1.msra.mxu0 0.0
    %340 = vmatprep.subr.mxu0 0.0
    %341 = vmatpush1.msra.mxu0 0.0
    %342 = vmatprep.subr.mxu0 0.0
    %343 = vmatpush1.msra.mxu0 0.0
    %344 = vmatprep.subr.mxu0 0.0
    %345 = vmatpush1.msra.mxu0 0.0
    %346 = vmatprep.subr.mxu0 0.0
    %347 = vmatpush1.msra.mxu0 0.0
    %348 = vmatprep.subr.mxu0 0.0
    %349 = vmatpush1.msra.mxu0 0.0
    %350 = vmatprep.subr.mxu0 0.0
    %351 = vmatpush1.msra.mxu0 0.0
    %352 = vmatprep.subr.mxu0 0.0
    %353 = vmatpush1.msra.mxu0 0.0
    %354 = vmatprep.subr.mxu0 0.0
    %355 = vmatpush1.msra.mxu0 0.0
    %356 = vmatprep.subr.mxu0 0.0
    %357 = vmatpush1.msra.mxu0 0.0
    %358 = vmatprep.subr.mxu0 0.0
    %359 = vmatpush1.msra.mxu0 0.0
    %360 = vmatprep.subr.mxu0 0.0
    %361 = vmatpush1.msra.mxu0 0.0
    %362 = vmatprep.subr.mxu0 0.0
    %363 = vmatpush1.msra.mxu0 0.0
    %364 = vmatprep.subr.mxu0 0.0
    %365 = vmatpush1.msra.mxu0 0.0
    %366 = vmatprep.subr.mxu0 0.0
    %367 = vmatpush1.msra.mxu0 0.0
    %368 = vmatprep.subr.mxu0 0.0
    %369 = vmatpush1.msra.mxu0 0.0
    %370 = vmatprep.subr.mxu0 0.0
    %371 = vmatpush1.msra.mxu0 0.0
    %372 = vmatprep.subr.mxu0 0.0
    %373 = vmatpush1.msra.mxu0 0.0
    %374 = vmatprep.subr.mxu0 0.0
    %375 = vmatpush1.msra.mxu0 0.0
    %376 = vmatprep.subr.mxu0 0.0
    %377 = vmatpush1.msra.mxu0 0.0
    %378 = vmatprep.subr.mxu0 0.0
    %379 = vmatpush1.msra.mxu0 0.0
    %380 = vmatprep.subr.mxu0 0.0
    %381 = vmatpush1.msra.mxu0 0.0
    %382 = vmatprep.subr.mxu0 0.0
    %383 = vmatpush1.msra.mxu0 0.0
    %384 = vmatprep.subr.mxu0 0.0
    %385 = vmatpush1.msra.mxu0 0.0
    %386 = vmatprep.subr.mxu0 0.0
    %387 = vmatpush1.msra.mxu0 0.0
    %388 = vmatprep.subr.mxu0 0.0
    %389 = vmatpush1.msra.mxu0 0.0
    %390 = vmatprep.subr.mxu0 0.0
    %391 = vmatpush1.msra.mxu0 0.0
    %392 = vmatprep.subr.mxu0 0.0
    %393 = vmatpush1.msra.mxu0 0.0
    %394 = vmatprep.mubr.f32.mxu0 0.0
    %395 = vmatmul.mubr.f32.gmra.mrb[0].mxu0 %v309
    %v396 = vpop.f32.mrb[0].mxu0
    %v397 = vadd.f32 %v305, %v396
    %v398 = vpop.f32.mrb[0].mxu0
    %399 = vmatprep.mubr.f32.mxu0 0.0
    %400 = vmatmul.mubr.f32.gmra.mrb[0].mxu0 %v312
    %v401 = vpop.f32.mrb[0].mxu0
    %v402 = vadd.f32 %v305, %v401
    %v403 = vpop.f32.mrb[0].mxu0
    %404 = vmatprep.mubr.f32.mxu0 0.0
    %405 = vmatmul.mubr.f32.gmra.mrb[0].mxu0 %v315
    %v406 = vpop.f32.mrb[0].mxu0
    %v407 = vadd.f32 %v305, %v406
    %v408 = vpop.f32.mrb[0].mxu0
    %409 = vmatprep.mubr.f32.mxu0 0.0
    %410 = vmatmul.mubr.f32.gmra.mrb[0].mxu0 %v318
    %v411 = vpop.f32.mrb[0].mxu0
    %v412 = vadd.f32 %v305, %v411
    %v413 = vpop.f32.mrb[0].mxu0
    %414 = vmatprep.mubr.f32.mxu0 0.0
    %415 = vmatmul.mubr.f32.gmra.mrb[0].mxu0 %v321
    %v416 = vpop.f32.mrb[0].mxu0
    %v417 = vadd.f32 %v305, %v416
    %v418 = vpop.f32.mrb[0].mxu0
    %419 = vmatprep.mubr.f32.mxu0 0.0
    %420 = vmatmul.mubr.f32.gmra.mrb[0].mxu0 %v324
    %v421 = vpop.f32.mrb[0].mxu0
    %v422 = vadd.f32 %v305, %v421
    %v423 = vpop.f32.mrb[0].mxu0
    %424 = vdwg.mxu0
    %vm425 = vcmp.ge.f32.partialorder %v397, 0.0
    %vm426 = vcmp.ge.f32.partialorder %v402, 0.0
    %vm427 = vcmp.ge.f32.partialorder %v407, 0.0
    %vm428 = vcmp.ge.f32.partialorder %v412, 0.0
    %vm429 = vcmp.ge.f32.partialorder %v417, 0.0
    %vm430 = vcmp.ge.f32.partialorder %v422, 0.0
    %v431 = vmul.f32 %v397, 0.1
    %v432 = vmul.f32 %v402, 0.1
    %v433 = vmul.f32 %v407, 0.1
    %v434 = vmul.f32 %v412, 0.1
    %v435 = vmul.f32 %v417, 0.1
    %v436 = vmul.f32 %v422, 0.1
    %v437 = vsel %vm425, %v397, %v431
    %v438 = vsel %vm426, %v402, %v432
    %v439 = vsel %vm427, %v407, %v433
    %v440 = vsel %vm428, %v412, %v434
    %v441 = vsel %vm429, %v417, %v435
    %v442 = vsel %vm430, %v422, %v436
    %vm443 = vcmask 254976
    %444 = vst.msk [vmem:[#allocation2] sm:$0x3] %vm443, 0.0
    %445 = vst.msk [vmem:[#allocation2 + $0x32] sm:$0x3] %vm443, 0.0
    %vm446 = vcmask 261120
    %447 = vst.msk [vmem:[#allocation2 + $0x2] sm:$0xff] %vm446, %v437
    %448 = vst.msk [vmem:[#allocation2 + $0xa] sm:$0xff] %vm446, %v438
    %449 = vst.msk [vmem:[#allocation2 + $0x12] sm:$0xff] %vm446, %v439
    %450 = vst.msk [vmem:[#allocation2 + $0x1a] sm:$0xff] %vm446, %v440
    %451 = vst.msk [vmem:[#allocation2 + $0x22] sm:$0xff] %vm446, %v441
    %452 = vst.msk [vmem:[#allocation2 + $0x2a] sm:$0xff] %vm446, %v442
    %v453 = vld [vmem:[#allocation2] sm:$0xff]
    %v454 = vld [vmem:[#allocation2 + $0x8] sm:$0xff]
    %v455 = vld [vmem:[#allocation2 + $0x10] sm:$0xff]
    %v456 = vld [vmem:[#allocation2 + $0x18] sm:$0xff]
    %v457 = vld [vmem:[#allocation2 + $0x20] sm:$0xff]
    %v458 = vld [vmem:[#allocation2 + $0x28] sm:$0xff]
    %v459 = vld [vmem:[#allocation2 + $0x2] sm:$0xff]
    %v460 = vld [vmem:[#allocation2 + $0xa] sm:$0xff]
    %v461 = vld [vmem:[#allocation2 + $0x12] sm:$0xff]
    %v462 = vld [vmem:[#allocation2 + $0x1a] sm:$0xff]
    %v463 = vld [vmem:[#allocation2 + $0x22] sm:$0xff]
    %v464 = vld [vmem:[#allocation2 + $0x2a] sm:$0xff]
    %v465 = vld [vmem:[#allocation2 + $0x4] sm:$0xff]
    %v466 = vld [vmem:[#allocation2 + $0xc] sm:$0xff]
    %v467 = vld [vmem:[#allocation2 + $0x14] sm:$0xff]
    %v468 = vld [vmem:[#allocation2 + $0x1c] sm:$0xff]
    %v469 = vld [vmem:[#allocation2 + $0x24] sm:$0xff]
    %v470 = vld [vmem:[#allocation2 + $0x2c] sm:$0xff]
    %477 = vrot.lane.b32.xlu0 %v459, 32
    %v478 = vpop.permute.xlu0 %477
    %479 = vrot.lane.b32.xlu0 %v460, 32
    %v480 = vpop.permute.xlu0 %479
    %481 = vrot.lane.b32.xlu0 %v461, 32
    %v482 = vpop.permute.xlu0 %481
    %483 = vrot.lane.b32.xlu0 %v462, 32
    %v484 = vpop.permute.xlu0 %483
    %485 = vrot.lane.b32.xlu0 %v463, 32
    %v486 = vpop.permute.xlu0 %485
    %487 = vrot.lane.b32.xlu0 %v464, 32
    %v488 = vpop.permute.xlu0 %487
    %501 = vrot.lane.b32.xlu0 %v465, 64
    %v502 = vpop.permute.xlu0 %501
    %503 = vrot.lane.b32.xlu0 %v466, 64
    %v504 = vpop.permute.xlu0 %503
    %505 = vrot.lane.b32.xlu0 %v467, 64
    %v506 = vpop.permute.xlu0 %505
    %507 = vrot.lane.b32.xlu0 %v468, 64
    %v508 = vpop.permute.xlu0 %507
    %509 = vrot.lane.b32.xlu0 %v469, 64
    %v510 = vpop.permute.xlu0 %509
    %511 = vrot.lane.b32.xlu0 %v470, 64
    %v512 = vpop.permute.xlu0 %511
    %v519 = vsel %vm446, %v453, %v478
    %v520 = vsel %vm446, %v454, %v480
    %v521 = vsel %vm446, %v455, %v482
    %v522 = vsel %vm446, %v456, %v484
    %v523 = vsel %vm446, %v457, %v486
    %v524 = vsel %vm446, %v458, %v488
    %vm525 = vcmask 523264
    %v526 = vsel %vm525, %v519, %v502
    %v527 = vsel %vm525, %v520, %v504
    %v528 = vsel %vm525, %v521, %v506
    %v529 = vsel %vm525, %v522, %v508
    %v530 = vsel %vm525, %v523, %v510
    %v531 = vsel %vm525, %v524, %v512
    %v532 = vld [vmem:[%s3] sm:$0xff]
    %v533 = vld [vmem:[%s3 + $0x8] sm:$0xff]
    %v534 = vld [vmem:[%s3 + $0x10] sm:$0xff]
    %v535 = vld [vmem:[%s3 + $0x18] sm:$0xff]
    %v536 = vld [vmem:[%s3 + $0x20] sm:$0xff]
    %v537 = vld [vmem:[%s3 + $0x28] sm:$0xff]
    %v538 = vld [vmem:[%s3 + $0x30] sm:$0xff]
    %v539 = vld [vmem:[%s3 + $0x38] sm:$0xff]
    %v540 = vld [vmem:[%s3 + $0x40] sm:$0xff]
    %v541 = vld [vmem:[%s3 + $0x48] sm:$0xff]
    %v542 = vld [vmem:[%s3 + $0x50] sm:$0xff]
    %v543 = vld [vmem:[%s3 + $0x58] sm:$0xff]
    %v544 = vld [vmem:[#allocation9] sm:$0x1]
    %v546 = vlaneseq
    %v547 = vshrl.u32 %v546, 7
    %v548 = vsub.s32 0, %v547
    %v549 = vrot.slane %v544, %v548
    %vm551 = vcmask 785408
    %v553 = vsel %vm551, %v526, 0
    %v556 = vsel %vm551, %v527, 0
    %v559 = vsel %vm551, %v528, 0
    %v562 = vsel %vm551, %v529, 0
    %v565 = vsel %vm551, %v530, 0
    %v568 = vsel %vm551, %v531, 0
    %570 = vmatprep.subr.mxu0 0.0
    %571 = vmatpush1.msra.mxu0 %v532
    %572 = vmatprep.subr.mxu0 0.0
    %573 = vmatpush1.msra.mxu0 %v533
    %574 = vmatprep.subr.mxu0 0.0
    %575 = vmatpush1.msra.mxu0 %v534
    %576 = vmatprep.subr.mxu0 0.0
    %577 = vmatpush1.msra.mxu0 %v535
    %578 = vmatprep.subr.mxu0 0.0
    %579 = vmatpush1.msra.mxu0 %v536
    %580 = vmatprep.subr.mxu0 0.0
    %581 = vmatpush1.msra.mxu0 %v537
    %582 = vmatprep.subr.mxu0 0.0
    %583 = vmatpush1.msra.mxu0 %v538
    %584 = vmatprep.subr.mxu0 0.0
    %585 = vmatpush1.msra.mxu0 %v539
    %586 = vmatprep.subr.mxu0 0.0
    %587 = vmatpush1.msra.mxu0 %v540
    %588 = vmatprep.subr.mxu0 0.0
    %589 = vmatpush1.msra.mxu0 %v541
    %590 = vmatprep.subr.mxu0 0.0
    %591 = vmatpush1.msra.mxu0 %v542
    %592 = vmatprep.subr.mxu0 0.0
    %593 = vmatpush1.msra.mxu0 %v543
    %594 = vmatprep.subr.mxu0 0.0
    %595 = vmatpush1.msra.mxu0 0.0
    %596 = vmatprep.subr.mxu0 0.0
    %597 = vmatpush1.msra.mxu0 0.0
    %598 = vmatprep.subr.mxu0 0.0
    %599 = vmatpush1.msra.mxu0 0.0
    %600 = vmatprep.subr.mxu0 0.0
    %601 = vmatpush1.msra.mxu0 0.0
    %602 = vmatprep.subr.mxu0 0.0
    %603 = vmatpush1.msra.mxu0 0.0
    %604 = vmatprep.subr.mxu0 0.0
    %605 = vmatpush1.msra.mxu0 0.0
    %606 = vmatprep.subr.mxu0 0.0
    %607 = vmatpush1.msra.mxu0 0.0
    %608 = vmatprep.subr.mxu0 0.0
    %609 = vmatpush1.msra.mxu0 0.0
    %610 = vmatprep.subr.mxu0 0.0
    %611 = vmatpush1.msra.mxu0 0.0
    %612 = vmatprep.subr.mxu0 0.0
    %613 = vmatpush1.msra.mxu0 0.0
    %614 = vmatprep.subr.mxu0 0.0
    %615 = vmatpush1.msra.mxu0 0.0
    %616 = vmatprep.subr.mxu0 0.0
    %617 = vmatpush1.msra.mxu0 0.0
    %618 = vmatprep.subr.mxu0 0.0
    %619 = vmatpush1.msra.mxu0 0.0
    %620 = vmatprep.subr.mxu0 0.0
    %621 = vmatpush1.msra.mxu0 0.0
    %622 = vmatprep.subr.mxu0 0.0
    %623 = vmatpush1.msra.mxu0 0.0
    %624 = vmatprep.subr.mxu0 0.0
    %625 = vmatpush1.msra.mxu0 0.0
    %626 = vmatprep.subr.mxu0 0.0
    %627 = vmatpush1.msra.mxu0 0.0
    %628 = vmatprep.subr.mxu0 0.0
    %629 = vmatpush1.msra.mxu0 0.0
    %630 = vmatprep.subr.mxu0 0.0
    %631 = vmatpush1.msra.mxu0 0.0
    %632 = vmatprep.subr.mxu0 0.0
    %633 = vmatpush1.msra.mxu0 0.0
    %634 = vmatprep.mubr.f32.mxu0 0.0
    %635 = vmatmul.mubr.f32.gmra.mrb[0].mxu0 %v553
    %v636 = vpop.f32.mrb[0].mxu0
    %v637 = vadd.f32 %v549, %v636
    %v638 = vpop.f32.mrb[0].mxu0
    %639 = vmatprep.mubr.f32.mxu0 0.0
    %640 = vmatmul.mubr.f32.gmra.mrb[0].mxu0 %v556
    %v641 = vpop.f32.mrb[0].mxu0
    %v642 = vadd.f32 %v549, %v641
    %v643 = vpop.f32.mrb[0].mxu0
    %644 = vmatprep.mubr.f32.mxu0 0.0
    %645 = vmatmul.mubr.f32.gmra.mrb[0].mxu0 %v559
    %v646 = vpop.f32.mrb[0].mxu0
    %v647 = vadd.f32 %v549, %v646
    %v648 = vpop.f32.mrb[0].mxu0
    %649 = vmatprep.mubr.f32.mxu0 0.0
    %650 = vmatmul.mubr.f32.gmra.mrb[0].mxu0 %v562
    %v651 = vpop.f32.mrb[0].mxu0
    %v652 = vadd.f32 %v549, %v651
    %v653 = vpop.f32.mrb[0].mxu0
    %654 = vmatprep.mubr.f32.mxu0 0.0
    %655 = vmatmul.mubr.f32.gmra.mrb[0].mxu0 %v565
    %v656 = vpop.f32.mrb[0].mxu0
    %v657 = vadd.f32 %v549, %v656
    %v658 = vpop.f32.mrb[0].mxu0
    %659 = vmatprep.mubr.f32.mxu0 0.0
    %660 = vmatmul.mubr.f32.gmra.mrb[0].mxu0 %v568
    %v661 = vpop.f32.mrb[0].mxu0
    %v662 = vadd.f32 %v549, %v661
    %v663 = vpop.f32.mrb[0].mxu0
    %664 = vdwg.mxu0
    %vm665 = vcmp.ge.f32.partialorder %v637, 0.0
    %vm666 = vcmp.ge.f32.partialorder %v642, 0.0
    %vm667 = vcmp.ge.f32.partialorder %v647, 0.0
    %vm668 = vcmp.ge.f32.partialorder %v652, 0.0
    %vm669 = vcmp.ge.f32.partialorder %v657, 0.0
    %vm670 = vcmp.ge.f32.partialorder %v662, 0.0
    %v671 = vmul.f32 %v637, 0.1
    %v672 = vmul.f32 %v642, 0.1
    %v673 = vmul.f32 %v647, 0.1
    %v674 = vmul.f32 %v652, 0.1
    %v675 = vmul.f32 %v657, 0.1
    %v676 = vmul.f32 %v662, 0.1
    %v677 = vsel %vm665, %v637, %v671
    %v678 = vsel %vm666, %v642, %v672
    %v679 = vsel %vm667, %v647, %v673
    %v680 = vsel %vm668, %v652, %v674
    %v681 = vsel %vm669, %v657, %v675
    %v682 = vsel %vm670, %v662, %v676
    %683 = vst.msk [vmem:[#allocation2 + $0x2] sm:$0xff] %vm446, %v677
    %684 = vst.msk [vmem:[#allocation2 + $0xa] sm:$0xff] %vm446, %v678
    %685 = vst.msk [vmem:[#allocation2 + $0x12] sm:$0xff] %vm446, %v679
    %686 = vst.msk [vmem:[#allocation2 + $0x1a] sm:$0xff] %vm446, %v680
    %687 = vst.msk [vmem:[#allocation2 + $0x22] sm:$0xff] %vm446, %v681
    %688 = vst.msk [vmem:[#allocation2 + $0x2a] sm:$0xff] %vm446, %v682
    %v689 = vld [vmem:[#allocation2] sm:$0xff]
    %v690 = vld [vmem:[#allocation2 + $0x8] sm:$0xff]
    %v691 = vld [vmem:[#allocation2 + $0x10] sm:$0xff]
    %v692 = vld [vmem:[#allocation2 + $0x18] sm:$0xff]
    %v693 = vld [vmem:[#allocation2 + $0x20] sm:$0xff]
    %v694 = vld [vmem:[#allocation2 + $0x28] sm:$0xff]
    %v695 = vld [vmem:[#allocation2 + $0x30] sm:$0x3]
    %v696 = vld [vmem:[#allocation2 + $0x2] sm:$0xff]
    %v697 = vld [vmem:[#allocation2 + $0xa] sm:$0xff]
    %v698 = vld [vmem:[#allocation2 + $0x12] sm:$0xff]
    %v699 = vld [vmem:[#allocation2 + $0x1a] sm:$0xff]
    %v700 = vld [vmem:[#allocation2 + $0x22] sm:$0xff]
    %v701 = vld [vmem:[#allocation2 + $0x2a] sm:$0xff]
    %v702 = vld [vmem:[#allocation2 + $0x32] sm:$0x3]
    %710 = vrot.lane.b32.xlu0 %v696, 32
    %v711 = vpop.permute.xlu0 %710
    %712 = vrot.lane.b32.xlu0 %v697, 32
    %v713 = vpop.permute.xlu0 %712
    %714 = vrot.lane.b32.xlu0 %v698, 32
    %v715 = vpop.permute.xlu0 %714
    %716 = vrot.lane.b32.xlu0 %v699, 32
    %v717 = vpop.permute.xlu0 %716
    %718 = vrot.lane.b32.xlu0 %v700, 32
    %v719 = vpop.permute.xlu0 %718
    %720 = vrot.lane.b32.xlu0 %v701, 32
    %v721 = vpop.permute.xlu0 %720
    %722 = vrot.lane.b32.xlu0 %v702, 32
    %v723 = vpop.permute.xlu0 %722
    %v731 = vsel %vm446, %v689, %v711
    %v732 = vsel %vm446, %v690, %v713
    %v733 = vsel %vm446, %v691, %v715
    %v734 = vsel %vm446, %v692, %v717
    %v735 = vsel %vm446, %v693, %v719
    %v736 = vsel %vm446, %v694, %v721
    %v737 = vsel %vm446, %v695, %v723
    %v738 = vld [vmem:[#allocation10] sm:$0xff]
    %v739 = vld [vmem:[#allocation10 + $0x8] sm:$0xff]
    %v740 = vld [vmem:[#allocation10 + $0x10] sm:$0xff]
    %v741 = vld [vmem:[#allocation10 + $0x18] sm:$0xff]
    %v742 = vld [vmem:[#allocation10 + $0x20] sm:$0xff]
    %v743 = vld [vmem:[#allocation10 + $0x28] sm:$0xff]
    %v744 = vld [vmem:[#allocation10 + $0x30] sm:$0xff]
    %v745 = vld [vmem:[#allocation10 + $0x38] sm:$0xff]
    %v746 = vld [vmem:[#allocation12] sm:$0x1]
    %v748 = vlaneseq
    %v749 = vshrl.u32 %v748, 7
    %v750 = vsub.s32 0, %v749
    %v751 = vrot.slane %v746, %v750
    %v754 = vsel %vm525, %v731, 0
    %v757 = vsel %vm525, %v732, 0
    %v760 = vsel %vm525, %v733, 0
    %v763 = vsel %vm525, %v734, 0
    %v766 = vsel %vm525, %v735, 0
    %v769 = vsel %vm525, %v736, 0
    %v772 = vsel %vm525, %v737, 0
    %774 = vmatprep.subr.mxu0 0.0
    %775 = vmatpush1.msra.mxu0 %v738
    %776 = vmatprep.subr.mxu0 0.0
    %777 = vmatpush1.msra.mxu0 %v739
    %778 = vmatprep.subr.mxu0 0.0
    %779 = vmatpush1.msra.mxu0 %v740
    %780 = vmatprep.subr.mxu0 0.0
    %781 = vmatpush1.msra.mxu0 %v741
    %782 = vmatprep.subr.mxu0 0.0
    %783 = vmatpush1.msra.mxu0 %v742
    %784 = vmatprep.subr.mxu0 0.0
    %785 = vmatpush1.msra.mxu0 %v743
    %786 = vmatprep.subr.mxu0 0.0
    %787 = vmatpush1.msra.mxu0 %v744
    %788 = vmatprep.subr.mxu0 0.0
    %789 = vmatpush1.msra.mxu0 %v745
    %790 = vmatprep.subr.mxu0 0.0
    %791 = vmatpush1.msra.mxu0 0.0
    %792 = vmatprep.subr.mxu0 0.0
    %793 = vmatpush1.msra.mxu0 0.0
    %794 = vmatprep.subr.mxu0 0.0
    %795 = vmatpush1.msra.mxu0 0.0
    %796 = vmatprep.subr.mxu0 0.0
    %797 = vmatpush1.msra.mxu0 0.0
    %798 = vmatprep.subr.mxu0 0.0
    %799 = vmatpush1.msra.mxu0 0.0
    %800 = vmatprep.subr.mxu0 0.0
    %801 = vmatpush1.msra.mxu0 0.0
    %802 = vmatprep.subr.mxu0 0.0
    %803 = vmatpush1.msra.mxu0 0.0
    %804 = vmatprep.subr.mxu0 0.0
    %805 = vmatpush1.msra.mxu0 0.0
    %806 = vmatprep.subr.mxu0 0.0
    %807 = vmatpush1.msra.mxu0 0.0
    %808 = vmatprep.subr.mxu0 0.0
    %809 = vmatpush1.msra.mxu0 0.0
    %810 = vmatprep.subr.mxu0 0.0
    %811 = vmatpush1.msra.mxu0 0.0
    %812 = vmatprep.subr.mxu0 0.0
    %813 = vmatpush1.msra.mxu0 0.0
    %814 = vmatprep.subr.mxu0 0.0
    %815 = vmatpush1.msra.mxu0 0.0
    %816 = vmatprep.subr.mxu0 0.0
    %817 = vmatpush1.msra.mxu0 0.0
    %818 = vmatprep.subr.mxu0 0.0
    %819 = vmatpush1.msra.mxu0 0.0
    %820 = vmatprep.subr.mxu0 0.0
    %821 = vmatpush1.msra.mxu0 0.0
    %822 = vmatprep.subr.mxu0 0.0
    %823 = vmatpush1.msra.mxu0 0.0
    %824 = vmatprep.subr.mxu0 0.0
    %825 = vmatpush1.msra.mxu0 0.0
    %826 = vmatprep.subr.mxu0 0.0
    %827 = vmatpush1.msra.mxu0 0.0
    %828 = vmatprep.subr.mxu0 0.0
    %829 = vmatpush1.msra.mxu0 0.0
    %830 = vmatprep.subr.mxu0 0.0
    %831 = vmatpush1.msra.mxu0 0.0
    %832 = vmatprep.subr.mxu0 0.0
    %833 = vmatpush1.msra.mxu0 0.0
    %834 = vmatprep.subr.mxu0 0.0
    %835 = vmatpush1.msra.mxu0 0.0
    %836 = vmatprep.subr.mxu0 0.0
    %837 = vmatpush1.msra.mxu0 0.0
    %838 = vmatprep.mubr.f32.mxu0 0.0
    %839 = vmatmul.mubr.f32.gmra.mrb[0].mxu0 %v754
    %v840 = vpop.f32.mrb[0].mxu0
    %v841 = vadd.f32 %v751, %v840
    %v842 = vpop.f32.mrb[0].mxu0
    %843 = vmatprep.mubr.f32.mxu0 0.0
    %844 = vmatmul.mubr.f32.gmra.mrb[0].mxu0 %v757
    %v845 = vpop.f32.mrb[0].mxu0
    %v846 = vadd.f32 %v751, %v845
    %v847 = vpop.f32.mrb[0].mxu0
    %848 = vmatprep.mubr.f32.mxu0 0.0
    %849 = vmatmul.mubr.f32.gmra.mrb[0].mxu0 %v760
    %v850 = vpop.f32.mrb[0].mxu0
    %v851 = vadd.f32 %v751, %v850
    %v852 = vpop.f32.mrb[0].mxu0
    %853 = vmatprep.mubr.f32.mxu0 0.0
    %854 = vmatmul.mubr.f32.gmra.mrb[0].mxu0 %v763
    %v855 = vpop.f32.mrb[0].mxu0
    %v856 = vadd.f32 %v751, %v855
    %v857 = vpop.f32.mrb[0].mxu0
    %858 = vmatprep.mubr.f32.mxu0 0.0
    %859 = vmatmul.mubr.f32.gmra.mrb[0].mxu0 %v766
    %v860 = vpop.f32.mrb[0].mxu0
    %v861 = vadd.f32 %v751, %v860
    %v862 = vpop.f32.mrb[0].mxu0
    %863 = vmatprep.mubr.f32.mxu0 0.0
    %864 = vmatmul.mubr.f32.gmra.mrb[0].mxu0 %v769
    %v865 = vpop.f32.mrb[0].mxu0
    %v866 = vadd.f32 %v751, %v865
    %v867 = vpop.f32.mrb[0].mxu0
    %868 = vmatprep.mubr.f32.mxu0 0.0
    %869 = vmatmul.mubr.f32.gmra.mrb[0].mxu0 %v772
    %v870 = vpop.f32.mrb[0].mxu0
    %v871 = vadd.f32 %v751, %v870
    %v872 = vpop.f32.mrb[0].mxu0
    %873 = vdwg.mxu0
    %vm874 = vcmp.ge.f32.partialorder %v841, 0.0
    %vm875 = vcmp.ge.f32.partialorder %v846, 0.0
    %vm876 = vcmp.ge.f32.partialorder %v851, 0.0
    %vm877 = vcmp.ge.f32.partialorder %v856, 0.0
    %vm878 = vcmp.ge.f32.partialorder %v861, 0.0
    %vm879 = vcmp.ge.f32.partialorder %v866, 0.0
    %vm880 = vcmp.ge.f32.partialorder %v871, 0.0
    %v881 = vmul.f32 %v841, 0.1
    %v882 = vmul.f32 %v846, 0.1
    %v883 = vmul.f32 %v851, 0.1
    %v884 = vmul.f32 %v856, 0.1
    %v885 = vmul.f32 %v861, 0.1
    %v886 = vmul.f32 %v866, 0.1
    %v887 = vmul.f32 %v871, 0.1
    %v888 = vsel %vm874, %v841, %v881
    %v889 = vsel %vm875, %v846, %v882
    %v890 = vsel %vm876, %v851, %v883
    %v891 = vsel %vm877, %v856, %v884
    %v892 = vsel %vm878, %v861, %v885
    %v893 = vsel %vm879, %v866, %v886
    %v894 = vsel %vm880, %v871, %v887
    %v895 = vld [vmem:[#allocation13] sm:$0xff]
    %v896 = vld [vmem:[#allocation13 + $0x8] sm:$0xff]
    %v897 = vld [vmem:[#allocation13 + $0x10] sm:$0xff]
    %v898 = vld [vmem:[#allocation13 + $0x18] sm:$0xff]
    %v899 = vld [vmem:[#allocation13 + $0x20] sm:$0xff]
    %v900 = vld [vmem:[#allocation13 + $0x28] sm:$0xff]
    %v901 = vld [vmem:[#allocation13 + $0x30] sm:$0xff]
    %v902 = vld [vmem:[#allocation13 + $0x38] sm:$0xff]
    %v903 = vld [vmem:[#allocation15] sm:$0x1]
    %v905 = vlaneseq
    %v906 = vshrl.u32 %v905, 7
    %v907 = vsub.s32 0, %v906
    %v908 = vrot.slane %v903, %v907
    %v911 = vsel %vm525, %v888, 0
    %v914 = vsel %vm525, %v889, 0
    %v917 = vsel %vm525, %v890, 0
    %v920 = vsel %vm525, %v891, 0
    %v923 = vsel %vm525, %v892, 0
    %v926 = vsel %vm525, %v893, 0
    %v929 = vsel %vm525, %v894, 0
    %931 = vmatprep.subr.mxu0 0.0
    %932 = vmatpush1.msra.mxu0 %v895
    %933 = vmatprep.subr.mxu0 0.0
    %934 = vmatpush1.msra.mxu0 %v896
    %935 = vmatprep.subr.mxu0 0.0
    %936 = vmatpush1.msra.mxu0 %v897
    %937 = vmatprep.subr.mxu0 0.0
    %938 = vmatpush1.msra.mxu0 %v898
    %939 = vmatprep.subr.mxu0 0.0
    %940 = vmatpush1.msra.mxu0 %v899
    %941 = vmatprep.subr.mxu0 0.0
    %942 = vmatpush1.msra.mxu0 %v900
    %943 = vmatprep.subr.mxu0 0.0
    %944 = vmatpush1.msra.mxu0 %v901
    %945 = vmatprep.subr.mxu0 0.0
    %946 = vmatpush1.msra.mxu0 %v902
    %947 = vmatprep.subr.mxu0 0.0
    %948 = vmatpush1.msra.mxu0 0.0
    %949 = vmatprep.subr.mxu0 0.0
    %950 = vmatpush1.msra.mxu0 0.0
    %951 = vmatprep.subr.mxu0 0.0
    %952 = vmatpush1.msra.mxu0 0.0
    %953 = vmatprep.subr.mxu0 0.0
    %954 = vmatpush1.msra.mxu0 0.0
    %955 = vmatprep.subr.mxu0 0.0
    %956 = vmatpush1.msra.mxu0 0.0
    %957 = vmatprep.subr.mxu0 0.0
    %958 = vmatpush1.msra.mxu0 0.0
    %959 = vmatprep.subr.mxu0 0.0
    %960 = vmatpush1.msra.mxu0 0.0
    %961 = vmatprep.subr.mxu0 0.0
    %962 = vmatpush1.msra.mxu0 0.0
    %963 = vmatprep.subr.mxu0 0.0
    %964 = vmatpush1.msra.mxu0 0.0
    %965 = vmatprep.subr.mxu0 0.0
    %966 = vmatpush1.msra.mxu0 0.0
    %967 = vmatprep.subr.mxu0 0.0
    %968 = vmatpush1.msra.mxu0 0.0
    %969 = vmatprep.subr.mxu0 0.0
    %970 = vmatpush1.msra.mxu0 0.0
    %971 = vmatprep.subr.mxu0 0.0
    %972 = vmatpush1.msra.mxu0 0.0
    %973 = vmatprep.subr.mxu0 0.0
    %974 = vmatpush1.msra.mxu0 0.0
    %975 = vmatprep.subr.mxu0 0.0
    %976 = vmatpush1.msra.mxu0 0.0
    %977 = vmatprep.subr.mxu0 0.0
    %978 = vmatpush1.msra.mxu0 0.0
    %979 = vmatprep.subr.mxu0 0.0
    %980 = vmatpush1.msra.mxu0 0.0
    %981 = vmatprep.subr.mxu0 0.0
    %982 = vmatpush1.msra.mxu0 0.0
    %983 = vmatprep.subr.mxu0 0.0
    %984 = vmatpush1.msra.mxu0 0.0
    %985 = vmatprep.subr.mxu0 0.0
    %986 = vmatpush1.msra.mxu0 0.0
    %987 = vmatprep.subr.mxu0 0.0
    %988 = vmatpush1.msra.mxu0 0.0
    %989 = vmatprep.subr.mxu0 0.0
    %990 = vmatpush1.msra.mxu0 0.0
    %991 = vmatprep.subr.mxu0 0.0
    %992 = vmatpush1.msra.mxu0 0.0
    %993 = vmatprep.subr.mxu0 0.0
    %994 = vmatpush1.msra.mxu0 0.0
    %995 = vmatprep.mubr.f32.mxu0 0.0
    %996 = vmatmul.mubr.f32.gmra.mrb[0].mxu0 %v911
    %v997 = vpop.f32.mrb[0].mxu0
    %v998 = vadd.f32 %v908, %v997
    %v999 = vpop.f32.mrb[0].mxu0
    %1000 = vmatprep.mubr.f32.mxu0 0.0
    %1001 = vmatmul.mubr.f32.gmra.mrb[0].mxu0 %v914
    %v1002 = vpop.f32.mrb[0].mxu0
    %v1003 = vadd.f32 %v908, %v1002
    %v1004 = vpop.f32.mrb[0].mxu0
    %1005 = vmatprep.mubr.f32.mxu0 0.0
    %1006 = vmatmul.mubr.f32.gmra.mrb[0].mxu0 %v917
    %v1007 = vpop.f32.mrb[0].mxu0
    %v1008 = vadd.f32 %v908, %v1007
    %v1009 = vpop.f32.mrb[0].mxu0
    %1010 = vmatprep.mubr.f32.mxu0 0.0
    %1011 = vmatmul.mubr.f32.gmra.mrb[0].mxu0 %v920
    %v1012 = vpop.f32.mrb[0].mxu0
    %v1013 = vadd.f32 %v908, %v1012
    %v1014 = vpop.f32.mrb[0].mxu0
    %1015 = vmatprep.mubr.f32.mxu0 0.0
    %1016 = vmatmul.mubr.f32.gmra.mrb[0].mxu0 %v923
    %v1017 = vpop.f32.mrb[0].mxu0
    %v1018 = vadd.f32 %v908, %v1017
    %v1019 = vpop.f32.mrb[0].mxu0
    %1020 = vmatprep.mubr.f32.mxu0 0.0
    %1021 = vmatmul.mubr.f32.gmra.mrb[0].mxu0 %v926
    %v1022 = vpop.f32.mrb[0].mxu0
    %v1023 = vadd.f32 %v908, %v1022
    %v1024 = vpop.f32.mrb[0].mxu0
    %1025 = vmatprep.mubr.f32.mxu0 0.0
    %1026 = vmatmul.mubr.f32.gmra.mrb[0].mxu0 %v929
    %v1027 = vpop.f32.mrb[0].mxu0
    %v1028 = vadd.f32 %v908, %v1027
    %v1029 = vpop.f32.mrb[0].mxu0
    %1030 = vdwg.mxu0
    %vm1031 = vcmp.ge.f32.partialorder %v998, 0.0
    %vm1032 = vcmp.ge.f32.partialorder %v1003, 0.0
    %vm1033 = vcmp.ge.f32.partialorder %v1008, 0.0
    %vm1034 = vcmp.ge.f32.partialorder %v1013, 0.0
    %vm1035 = vcmp.ge.f32.partialorder %v1018, 0.0
    %vm1036 = vcmp.ge.f32.partialorder %v1023, 0.0
    %vm1037 = vcmp.ge.f32.partialorder %v1028, 0.0
    %v1038 = vmul.f32 %v998, 0.1
    %v1039 = vmul.f32 %v1003, 0.1
    %v1040 = vmul.f32 %v1008, 0.1
    %v1041 = vmul.f32 %v1013, 0.1
    %v1042 = vmul.f32 %v1018, 0.1
    %v1043 = vmul.f32 %v1023, 0.1
    %v1044 = vmul.f32 %v1028, 0.1
    %v1045 = vsel %vm1031, %v998, %v1038
    %v1046 = vsel %vm1032, %v1003, %v1039
    %v1047 = vsel %vm1033, %v1008, %v1040
    %v1048 = vsel %vm1034, %v1013, %v1041
    %v1049 = vsel %vm1035, %v1018, %v1042
    %v1050 = vsel %vm1036, %v1023, %v1043
    %v1051 = vsel %vm1037, %v1028, %v1044
    %vm1052 = vcmask 517120
    %1053 = vst.msk [vmem:[#allocation3] sm:$0x3] %vm1052, %v1045
    %v1056 = vunpack.c.l.s4 1983009808
    %v1057 = vunpack.c.0.s8 %v1056
    %v1058 = vlaneseq
    %v1059 = vshrl.u32 %v1058, 7
    %v1060 = vsub.s32 %v1057, %v1059
    %v1061 = vrot.slane %v1045, %v1060
    %v1062 = vcombine.high %v1061, %v1061
    %1063 = vrot.lane.b32.xlu0 %v1062, 64
    %v1064 = vpop.permute.xlu0 %1063
    %vm1066 = vcmask 1041920
    %1067 = vst.msk [vmem:[#allocation3] sm:$0x3] %vm1066, %v1064
    %v1068 = vcombine.high %v1045, %v1045
    %v1070 = vunpack.c.l.s4 1983009808
    %v1071 = vunpack.c.0.s8 %v1070
    %v1072 = vlaneseq
    %v1073 = vshrl.u32 %v1072, 7
    %v1074 = vsub.s32 %v1071, %v1073
    %v1075 = vrot.slane %v1068, %v1074
    %1077 = vst.msk [vmem:[#allocation3 + $0x2] sm:$0x3] %vm1052, %v1075
    %v1078 = vcombine.high %v1075, %v1075
    %1079 = vrot.lane.b32.xlu0 %v1078, 64
    %v1080 = vpop.permute.xlu0 %1079
    %1082 = vst.msk [vmem:[#allocation3 + $0x2] sm:$0x3] %vm1066, %v1080
    %1083 = vst.msk [vmem:[#allocation3 + $0x4] sm:$0x3] %vm1052, %v1046
    %v1086 = vunpack.c.l.s4 1983009808
    %v1087 = vunpack.c.0.s8 %v1086
    %v1088 = vlaneseq
    %v1089 = vshrl.u32 %v1088, 7
    %v1090 = vsub.s32 %v1087, %v1089
    %v1091 = vrot.slane %v1046, %v1090
    %v1092 = vcombine.high %v1091, %v1091
    %1093 = vrot.lane.b32.xlu0 %v1092, 64
    %v1094 = vpop.permute.xlu0 %1093
    %1096 = vst.msk [vmem:[#allocation3 + $0x4] sm:$0x3] %vm1066, %v1094
    %v1097 = vcombine.high %v1046, %v1046
    %v1099 = vunpack.c.l.s4 1983009808
    %v1100 = vunpack.c.0.s8 %v1099
    %v1101 = vlaneseq
    %v1102 = vshrl.u32 %v1101, 7
    %v1103 = vsub.s32 %v1100, %v1102
    %v1104 = vrot.slane %v1097, %v1103
    %1106 = vst.msk [vmem:[#allocation3 + $0x6] sm:$0x3] %vm1052, %v1104
    %v1107 = vcombine.high %v1104, %v1104
    %1108 = vrot.lane.b32.xlu0 %v1107, 64
    %v1109 = vpop.permute.xlu0 %1108
    %1111 = vst.msk [vmem:[#allocation3 + $0x6] sm:$0x3] %vm1066, %v1109
    %1112 = vst.msk [vmem:[#allocation3 + $0x8] sm:$0x3] %vm1052, %v1047
    %v1115 = vunpack.c.l.s4 1983009808
    %v1116 = vunpack.c.0.s8 %v1115
    %v1117 = vlaneseq
    %v1118 = vshrl.u32 %v1117, 7
    %v1119 = vsub.s32 %v1116, %v1118
    %v1120 = vrot.slane %v1047, %v1119
    %v1121 = vcombine.high %v1120, %v1120
    %1122 = vrot.lane.b32.xlu0 %v1121, 64
    %v1123 = vpop.permute.xlu0 %1122
    %1125 = vst.msk [vmem:[#allocation3 + $0x8] sm:$0x3] %vm1066, %v1123
    %v1126 = vcombine.high %v1047, %v1047
    %v1128 = vunpack.c.l.s4 1983009808
    %v1129 = vunpack.c.0.s8 %v1128
    %v1130 = vlaneseq
    %v1131 = vshrl.u32 %v1130, 7
    %v1132 = vsub.s32 %v1129, %v1131
    %v1133 = vrot.slane %v1126, %v1132
    %1135 = vst.msk [vmem:[#allocation3 + $0xa] sm:$0x3] %vm1052, %v1133
    %v1136 = vcombine.high %v1133, %v1133
    %1137 = vrot.lane.b32.xlu0 %v1136, 64
    %v1138 = vpop.permute.xlu0 %1137
    %1140 = vst.msk [vmem:[#allocation3 + $0xa] sm:$0x3] %vm1066, %v1138
    %1141 = vst.msk [vmem:[#allocation3 + $0xc] sm:$0x3] %vm1052, %v1048
    %v1144 = vunpack.c.l.s4 1983009808
    %v1145 = vunpack.c.0.s8 %v1144
    %v1146 = vlaneseq
    %v1147 = vshrl.u32 %v1146, 7
    %v1148 = vsub.s32 %v1145, %v1147
    %v1149 = vrot.slane %v1048, %v1148
    %v1150 = vcombine.high %v1149, %v1149
    %1151 = vrot.lane.b32.xlu0 %v1150, 64
    %v1152 = vpop.permute.xlu0 %1151
    %1154 = vst.msk [vmem:[#allocation3 + $0xc] sm:$0x3] %vm1066, %v1152
    %v1155 = vcombine.high %v1048, %v1048
    %v1157 = vunpack.c.l.s4 1983009808
    %v1158 = vunpack.c.0.s8 %v1157
    %v1159 = vlaneseq
    %v1160 = vshrl.u32 %v1159, 7
    %v1161 = vsub.s32 %v1158, %v1160
    %v1162 = vrot.slane %v1155, %v1161
    %1164 = vst.msk [vmem:[#allocation3 + $0xe] sm:$0x3] %vm1052, %v1162
    %v1165 = vcombine.high %v1162, %v1162
    %1166 = vrot.lane.b32.xlu0 %v1165, 64
    %v1167 = vpop.permute.xlu0 %1166
    %1169 = vst.msk [vmem:[#allocation3 + $0xe] sm:$0x3] %vm1066, %v1167
    %1170 = vst.msk [vmem:[#allocation3 + $0x10] sm:$0x3] %vm1052, %v1049
    %v1173 = vunpack.c.l.s4 1983009808
    %v1174 = vunpack.c.0.s8 %v1173
    %v1175 = vlaneseq
    %v1176 = vshrl.u32 %v1175, 7
    %v1177 = vsub.s32 %v1174, %v1176
    %v1178 = vrot.slane %v1049, %v1177
    %v1179 = vcombine.high %v1178, %v1178
    %1180 = vrot.lane.b32.xlu0 %v1179, 64
    %v1181 = vpop.permute.xlu0 %1180
    %1183 = vst.msk [vmem:[#allocation3 + $0x10] sm:$0x3] %vm1066, %v1181
    %v1184 = vcombine.high %v1049, %v1049
    %v1186 = vunpack.c.l.s4 1983009808
    %v1187 = vunpack.c.0.s8 %v1186
    %v1188 = vlaneseq
    %v1189 = vshrl.u32 %v1188, 7
    %v1190 = vsub.s32 %v1187, %v1189
    %v1191 = vrot.slane %v1184, %v1190
    %1193 = vst.msk [vmem:[#allocation3 + $0x12] sm:$0x3] %vm1052, %v1191
    %v1194 = vcombine.high %v1191, %v1191
    %1195 = vrot.lane.b32.xlu0 %v1194, 64
    %v1196 = vpop.permute.xlu0 %1195
    %1198 = vst.msk [vmem:[#allocation3 + $0x12] sm:$0x3] %vm1066, %v1196
    %1199 = vst.msk [vmem:[#allocation3 + $0x14] sm:$0x3] %vm1052, %v1050
    %v1202 = vunpack.c.l.s4 1983009808
    %v1203 = vunpack.c.0.s8 %v1202
    %v1204 = vlaneseq
    %v1205 = vshrl.u32 %v1204, 7
    %v1206 = vsub.s32 %v1203, %v1205
    %v1207 = vrot.slane %v1050, %v1206
    %v1208 = vcombine.high %v1207, %v1207
    %1209 = vrot.lane.b32.xlu0 %v1208, 64
    %v1210 = vpop.permute.xlu0 %1209
    %1212 = vst.msk [vmem:[#allocation3 + $0x14] sm:$0x3] %vm1066, %v1210
    %v1213 = vcombine.high %v1050, %v1050
    %v1215 = vunpack.c.l.s4 1983009808
    %v1216 = vunpack.c.0.s8 %v1215
    %v1217 = vlaneseq
    %v1218 = vshrl.u32 %v1217, 7
    %v1219 = vsub.s32 %v1216, %v1218
    %v1220 = vrot.slane %v1213, %v1219
    %1222 = vst.msk [vmem:[#allocation3 + $0x16] sm:$0x3] %vm1052, %v1220
    %v1223 = vcombine.high %v1220, %v1220
    %1224 = vrot.lane.b32.xlu0 %v1223, 64
    %v1225 = vpop.permute.xlu0 %1224
    %1227 = vst.msk [vmem:[#allocation3 + $0x16] sm:$0x3] %vm1066, %v1225
    %1228 = vst.msk [vmem:[#allocation3 + $0x18] sm:$0x3] %vm1052, %v1051
    %v1229 = vld [vmem:[#allocation3] sm:$0xff]
    %v1230 = vld [vmem:[#allocation3 + $0x8] sm:$0xff]
    %v1231 = vld [vmem:[#allocation3 + $0x10] sm:$0xff]
    %v1232 = vld [vmem:[#allocation3 + $0x18] sm:$0x3]
    %v1233 = vld [vmem:[#allocation16] sm:$0xff]
    %v1234 = vld [vmem:[#allocation16 + $0x8] sm:$0xff]
    %v1235 = vld [vmem:[#allocation16 + $0x10] sm:$0xff]
    %v1236 = vld [vmem:[#allocation16 + $0x18] sm:$0xff]
    %v1237 = vld [vmem:[#allocation16 + $0x20] sm:$0xff]
    %v1238 = vld [vmem:[#allocation16 + $0x28] sm:$0xff]
    %v1239 = vld [vmem:[#allocation16 + $0x30] sm:$0xff]
    %v1240 = vld [vmem:[#allocation16 + $0x38] sm:$0xff]
    %v1241 = vld [vmem:[#allocation16 + $0x40] sm:$0xff]
    %v1242 = vld [vmem:[#allocation16 + $0x48] sm:$0xff]
    %v1243 = vld [vmem:[#allocation16 + $0x50] sm:$0xff]
    %v1244 = vld [vmem:[#allocation16 + $0x58] sm:$0xff]
    %v1245 = vld [vmem:[#allocation16 + $0x60] sm:$0xff]
    %v1246 = vld [vmem:[#allocation16 + $0x68] sm:$0xff]
    %v1247 = vld [vmem:[#allocation16 + $0x70] sm:$0xff]
    %v1248 = vld [vmem:[#allocation16 + $0x78] sm:$0xff]
    %v1249 = vld [vmem:[#allocation16 + $0x80] sm:$0xff]
    %v1250 = vld [vmem:[#allocation16 + $0x88] sm:$0xff]
    %v1251 = vld [vmem:[#allocation16 + $0x90] sm:$0xff]
    %v1252 = vld [vmem:[#allocation16 + $0x98] sm:$0xff]
    %v1253 = vld [vmem:[#allocation16 + $0xa0] sm:$0xff]
    %v1254 = vld [vmem:[#allocation16 + $0xa8] sm:$0xff]
    %v1255 = vld [vmem:[#allocation16 + $0xb0] sm:$0xff]
    %v1256 = vld [vmem:[#allocation16 + $0xb8] sm:$0xff]
    %v1257 = vld [vmem:[#allocation16 + $0xc0] sm:$0xff]
    %v1258 = vld [vmem:[#allocation16 + $0xc8] sm:$0xff]
    %v1259 = vld [vmem:[#allocation16 + $0xd0] sm:$0xff]
    %v1260 = vld [vmem:[#allocation16 + $0xd8] sm:$0xff]
    %v1261 = vld [vmem:[#allocation16 + $0xe0] sm:$0xff]
    %v1262 = vld [vmem:[#allocation16 + $0xe8] sm:$0xff]
    %v1263 = vld [vmem:[#allocation16 + $0xf0] sm:$0xff]
    %v1264 = vld [vmem:[#allocation16 + $0xf8] sm:$0xff]
    %v1265 = vld [vmem:[#allocation16 + $0x100] sm:$0xff]
    %v1266 = vld [vmem:[#allocation16 + $0x108] sm:$0xff]
    %v1267 = vld [vmem:[#allocation16 + $0x110] sm:$0xff]
    %v1268 = vld [vmem:[#allocation16 + $0x118] sm:$0xff]
    %v1269 = vld [vmem:[#allocation16 + $0x120] sm:$0xff]
    %v1270 = vld [vmem:[#allocation16 + $0x128] sm:$0xff]
    %v1271 = vld [vmem:[#allocation16 + $0x130] sm:$0xff]
    %v1272 = vld [vmem:[#allocation16 + $0x138] sm:$0xff]
    %v1273 = vld [vmem:[#allocation16 + $0x140] sm:$0xff]
    %v1274 = vld [vmem:[#allocation16 + $0x148] sm:$0xff]
    %v1275 = vld [vmem:[#allocation16 + $0x150] sm:$0xff]
    %v1276 = vld [vmem:[#allocation16 + $0x158] sm:$0xff]
    %v1277 = vld [vmem:[#allocation16 + $0x160] sm:$0xff]
    %v1278 = vld [vmem:[#allocation16 + $0x168] sm:$0xff]
    %v1279 = vld [vmem:[#allocation16 + $0x170] sm:$0xff]
    %v1280 = vld [vmem:[#allocation16 + $0x178] sm:$0xff]
    %v1281 = vld [vmem:[#allocation16 + $0x180] sm:$0xff]
    %v1282 = vld [vmem:[#allocation16 + $0x188] sm:$0xff]
    %v1283 = vld [vmem:[#allocation16 + $0x190] sm:$0xff]
    %v1284 = vld [vmem:[#allocation16 + $0x198] sm:$0xff]
    %v1285 = vld [vmem:[#allocation16 + $0x1a0] sm:$0xff]
    %v1286 = vld [vmem:[#allocation16 + $0x1a8] sm:$0xff]
    %v1287 = vld [vmem:[#allocation16 + $0x1b0] sm:$0xff]
    %v1288 = vld [vmem:[#allocation16 + $0x1b8] sm:$0xff]
    %v1289 = vld [vmem:[#allocation16 + $0x1c0] sm:$0xff]
    %v1290 = vld [vmem:[#allocation16 + $0x1c8] sm:$0xff]
    %v1291 = vld [vmem:[#allocation16 + $0x1d0] sm:$0xff]
    %v1292 = vld [vmem:[#allocation16 + $0x1d8] sm:$0xff]
    %v1293 = vld [vmem:[#allocation16 + $0x1e0] sm:$0xff]
    %v1294 = vld [vmem:[#allocation16 + $0x1e8] sm:$0xff]
    %v1295 = vld [vmem:[#allocation16 + $0x1f0] sm:$0xff]
    %v1296 = vld [vmem:[#allocation16 + $0x1f8] sm:$0xff]
    %v1297 = vld [vmem:[#allocation16 + $0x200] sm:$0xff]
    %v1298 = vld [vmem:[#allocation16 + $0x208] sm:$0xff]
    %v1299 = vld [vmem:[#allocation16 + $0x210] sm:$0xff]
    %v1300 = vld [vmem:[#allocation16 + $0x218] sm:$0xff]
    %v1301 = vld [vmem:[#allocation16 + $0x220] sm:$0xff]
    %v1302 = vld [vmem:[#allocation16 + $0x228] sm:$0xff]
    %v1303 = vld [vmem:[#allocation16 + $0x230] sm:$0xff]
    %v1304 = vld [vmem:[#allocation16 + $0x238] sm:$0xff]
    %v1305 = vld [vmem:[#allocation16 + $0x240] sm:$0xff]
    %v1306 = vld [vmem:[#allocation16 + $0x248] sm:$0xff]
    %v1307 = vld [vmem:[#allocation16 + $0x250] sm:$0xff]
    %v1308 = vld [vmem:[#allocation16 + $0x258] sm:$0xff]
    %v1309 = vld [vmem:[#allocation16 + $0x260] sm:$0xff]
    %v1310 = vld [vmem:[#allocation16 + $0x268] sm:$0xff]
    %v1311 = vld [vmem:[#allocation16 + $0x270] sm:$0xff]
    %v1312 = vld [vmem:[#allocation16 + $0x278] sm:$0xff]
    %v1313 = vld [vmem:[#allocation16 + $0x280] sm:$0xff]
    %v1314 = vld [vmem:[#allocation16 + $0x288] sm:$0xff]
    %v1315 = vld [vmem:[#allocation16 + $0x290] sm:$0xff]
    %v1316 = vld [vmem:[#allocation16 + $0x298] sm:$0xff]
    %v1317 = vld [vmem:[#allocation16 + $0x2a0] sm:$0xff]
    %v1318 = vld [vmem:[#allocation16 + $0x2a8] sm:$0xff]
    %v1319 = vld [vmem:[#allocation16 + $0x2b0] sm:$0xff]
    %v1320 = vld [vmem:[#allocation16 + $0x2b8] sm:$0xff]
    %v1321 = vld [vmem:[#allocation16 + $0x2c0] sm:$0xff]
    %v1322 = vld [vmem:[#allocation16 + $0x2c8] sm:$0xff]
    %v1323 = vld [vmem:[#allocation16 + $0x2d0] sm:$0xff]
    %v1324 = vld [vmem:[#allocation16 + $0x2d8] sm:$0xff]
    %v1325 = vld [vmem:[#allocation16 + $0x2e0] sm:$0xff]
    %v1326 = vld [vmem:[#allocation16 + $0x2e8] sm:$0xff]
    %v1327 = vld [vmem:[#allocation16 + $0x2f0] sm:$0xff]
    %v1328 = vld [vmem:[#allocation16 + $0x2f8] sm:$0xff]
    %v1329 = vld [vmem:[#allocation16 + $0x300] sm:$0xff]
    %v1330 = vld [vmem:[#allocation16 + $0x308] sm:$0xff]
    %v1331 = vld [vmem:[#allocation16 + $0x310] sm:$0xff]
    %v1332 = vld [vmem:[#allocation16 + $0x318] sm:$0xff]
    %v1333 = vld [vmem:[#allocation16 + $0x320] sm:$0xff]
    %v1334 = vld [vmem:[#allocation16 + $0x328] sm:$0xff]
    %v1335 = vld [vmem:[#allocation16 + $0x330] sm:$0xff]
    %v1336 = vld [vmem:[#allocation16 + $0x338] sm:$0xff]
    %v1337 = vld [vmem:[#allocation16 + $0x340] sm:$0xff]
    %v1338 = vld [vmem:[#allocation16 + $0x348] sm:$0xff]
    %v1339 = vld [vmem:[#allocation16 + $0x350] sm:$0xff]
    %v1340 = vld [vmem:[#allocation16 + $0x358] sm:$0xff]
    %v1341 = vld [vmem:[#allocation16 + $0x360] sm:$0xff]
    %v1342 = vld [vmem:[#allocation16 + $0x368] sm:$0xff]
    %v1343 = vld [vmem:[#allocation16 + $0x370] sm:$0xff]
    %v1344 = vld [vmem:[#allocation16 + $0x378] sm:$0xff]
    %v1345 = vld [vmem:[#allocation16 + $0x380] sm:$0xff]
    %v1346 = vld [vmem:[#allocation16 + $0x388] sm:$0xff]
    %v1347 = vld [vmem:[#allocation16 + $0x390] sm:$0xff]
    %v1348 = vld [vmem:[#allocation16 + $0x398] sm:$0xff]
    %v1349 = vld [vmem:[#allocation16 + $0x3a0] sm:$0xff]
    %v1350 = vld [vmem:[#allocation16 + $0x3a8] sm:$0xff]
    %v1351 = vld [vmem:[#allocation16 + $0x3b0] sm:$0xff]
    %v1352 = vld [vmem:[#allocation16 + $0x3b8] sm:$0xff]
    %v1353 = vld [vmem:[#allocation16 + $0x3c0] sm:$0xff]
    %v1354 = vld [vmem:[#allocation16 + $0x3c8] sm:$0xff]
    %v1355 = vld [vmem:[#allocation16 + $0x3d0] sm:$0xff]
    %v1356 = vld [vmem:[#allocation16 + $0x3d8] sm:$0xff]
    %v1357 = vld [vmem:[#allocation16 + $0x3e0] sm:$0xff]
    %v1358 = vld [vmem:[#allocation16 + $0x3e8] sm:$0xff]
    %v1359 = vld [vmem:[#allocation16 + $0x3f0] sm:$0xff]
    %v1360 = vld [vmem:[#allocation16 + $0x3f8] sm:$0xff]
    %v1361 = vld [vmem:[#allocation16 + $0x400] sm:$0xff]
    %v1362 = vld [vmem:[#allocation16 + $0x408] sm:$0xff]
    %v1363 = vld [vmem:[#allocation16 + $0x410] sm:$0xff]
    %v1364 = vld [vmem:[#allocation16 + $0x418] sm:$0xff]
    %v1365 = vld [vmem:[#allocation16 + $0x420] sm:$0xff]
    %v1366 = vld [vmem:[#allocation16 + $0x428] sm:$0xff]
    %v1367 = vld [vmem:[#allocation16 + $0x430] sm:$0xff]
    %v1368 = vld [vmem:[#allocation16 + $0x438] sm:$0xff]
    %v1369 = vld [vmem:[#allocation16 + $0x440] sm:$0xff]
    %v1370 = vld [vmem:[#allocation16 + $0x448] sm:$0xff]
    %v1371 = vld [vmem:[#allocation16 + $0x450] sm:$0xff]
    %v1372 = vld [vmem:[#allocation16 + $0x458] sm:$0xff]
    %v1373 = vld [vmem:[#allocation16 + $0x460] sm:$0xff]
    %v1374 = vld [vmem:[#allocation16 + $0x468] sm:$0xff]
    %v1375 = vld [vmem:[#allocation16 + $0x470] sm:$0xff]
    %v1376 = vld [vmem:[#allocation16 + $0x478] sm:$0xff]
    %v1377 = vld [vmem:[#allocation16 + $0x480] sm:$0xff]
    %v1378 = vld [vmem:[#allocation16 + $0x488] sm:$0xff]
    %v1379 = vld [vmem:[#allocation16 + $0x490] sm:$0xff]
    %v1380 = vld [vmem:[#allocation16 + $0x498] sm:$0xff]
    %v1381 = vld [vmem:[#allocation16 + $0x4a0] sm:$0xff]
    %v1382 = vld [vmem:[#allocation16 + $0x4a8] sm:$0xff]
    %v1383 = vld [vmem:[#allocation16 + $0x4b0] sm:$0xff]
    %v1384 = vld [vmem:[#allocation16 + $0x4b8] sm:$0xff]
    %v1385 = vld [vmem:[#allocation16 + $0x4c0] sm:$0xff]
    %v1386 = vld [vmem:[#allocation16 + $0x4c8] sm:$0xff]
    %v1387 = vld [vmem:[#allocation16 + $0x4d0] sm:$0xff]
    %v1388 = vld [vmem:[#allocation16 + $0x4d8] sm:$0xff]
    %v1389 = vld [vmem:[#allocation16 + $0x4e0] sm:$0xff]
    %v1390 = vld [vmem:[#allocation16 + $0x4e8] sm:$0xff]
    %v1391 = vld [vmem:[#allocation16 + $0x4f0] sm:$0xff]
    %v1392 = vld [vmem:[#allocation16 + $0x4f8] sm:$0xff]
    %v1393 = vld [vmem:[#allocation16 + $0x500] sm:$0xff]
    %v1394 = vld [vmem:[#allocation16 + $0x508] sm:$0xff]
    %v1395 = vld [vmem:[#allocation16 + $0x510] sm:$0xff]
    %v1396 = vld [vmem:[#allocation16 + $0x518] sm:$0xff]
    %v1397 = vld [vmem:[#allocation16 + $0x520] sm:$0xff]
    %v1398 = vld [vmem:[#allocation16 + $0x528] sm:$0xff]
    %v1399 = vld [vmem:[#allocation16 + $0x530] sm:$0xff]
    %v1400 = vld [vmem:[#allocation16 + $0x538] sm:$0xff]
    %v1401 = vld [vmem:[#allocation16 + $0x540] sm:$0xff]
    %v1402 = vld [vmem:[#allocation16 + $0x548] sm:$0xff]
    %v1403 = vld [vmem:[#allocation16 + $0x550] sm:$0xff]
    %v1404 = vld [vmem:[#allocation16 + $0x558] sm:$0xff]
    %v1405 = vld [vmem:[#allocation16 + $0x560] sm:$0xff]
    %v1406 = vld [vmem:[#allocation16 + $0x568] sm:$0xff]
    %v1407 = vld [vmem:[#allocation16 + $0x570] sm:$0xff]
    %v1408 = vld [vmem:[#allocation16 + $0x578] sm:$0xff]
    %v1409 = vld [vmem:[#allocation16 + $0x580] sm:$0xff]
    %v1410 = vld [vmem:[#allocation16 + $0x588] sm:$0xff]
    %v1411 = vld [vmem:[#allocation16 + $0x590] sm:$0xff]
    %v1412 = vld [vmem:[#allocation16 + $0x598] sm:$0xff]
    %v1413 = vld [vmem:[#allocation16 + $0x5a0] sm:$0xff]
    %v1414 = vld [vmem:[#allocation16 + $0x5a8] sm:$0xff]
    %v1415 = vld [vmem:[#allocation16 + $0x5b0] sm:$0xff]
    %v1416 = vld [vmem:[#allocation16 + $0x5b8] sm:$0xff]
    %v1417 = vld [vmem:[#allocation16 + $0x5c0] sm:$0xff]
    %v1418 = vld [vmem:[#allocation16 + $0x5c8] sm:$0xff]
    %v1419 = vld [vmem:[#allocation16 + $0x5d0] sm:$0xff]
    %v1420 = vld [vmem:[#allocation16 + $0x5d8] sm:$0xff]
    %v1421 = vld [vmem:[#allocation16 + $0x5e0] sm:$0xff]
    %v1422 = vld [vmem:[#allocation16 + $0x5e8] sm:$0xff]
    %v1423 = vld [vmem:[#allocation16 + $0x5f0] sm:$0xff]
    %v1424 = vld [vmem:[#allocation16 + $0x5f8] sm:$0xff]
    %v1425 = vld [vmem:[#allocation16 + $0x600] sm:$0xff]
    %v1426 = vld [vmem:[#allocation16 + $0x608] sm:$0xff]
    %v1427 = vld [vmem:[#allocation16 + $0x610] sm:$0xff]
    %v1428 = vld [vmem:[#allocation16 + $0x618] sm:$0xff]
    %v1429 = vld [vmem:[#allocation16 + $0x620] sm:$0xff]
    %v1430 = vld [vmem:[#allocation16 + $0x628] sm:$0xff]
    %v1431 = vld [vmem:[#allocation16 + $0x630] sm:$0xff]
    %v1432 = vld [vmem:[#allocation16 + $0x638] sm:$0xff]
    %v1433 = vld [vmem:[#allocation16 + $0x640] sm:$0xff]
    %v1434 = vld [vmem:[#allocation16 + $0x648] sm:$0xff]
    %v1435 = vld [vmem:[#allocation16 + $0x650] sm:$0xff]
    %v1436 = vld [vmem:[#allocation16 + $0x658] sm:$0xff]
    %v1437 = vld [vmem:[#allocation16 + $0x660] sm:$0xff]
    %v1438 = vld [vmem:[#allocation16 + $0x668] sm:$0xff]
    %v1439 = vld [vmem:[#allocation16 + $0x670] sm:$0xff]
    %v1440 = vld [vmem:[#allocation16 + $0x678] sm:$0xff]
    %v1441 = vld [vmem:[#allocation16 + $0x680] sm:$0xff]
    %v1442 = vld [vmem:[#allocation16 + $0x688] sm:$0xff]
    %v1443 = vld [vmem:[#allocation16 + $0x690] sm:$0xff]
    %v1444 = vld [vmem:[#allocation16 + $0x698] sm:$0xff]
    %v1445 = vld [vmem:[#allocation16 + $0x6a0] sm:$0xff]
    %v1446 = vld [vmem:[#allocation16 + $0x6a8] sm:$0xff]
    %v1447 = vld [vmem:[#allocation16 + $0x6b0] sm:$0xff]
    %v1448 = vld [vmem:[#allocation16 + $0x6b8] sm:$0xff]
    %v1449 = vld [vmem:[#allocation16 + $0x6c0] sm:$0xff]
    %v1450 = vld [vmem:[#allocation16 + $0x6c8] sm:$0xff]
    %v1451 = vld [vmem:[#allocation16 + $0x6d0] sm:$0xff]
    %v1452 = vld [vmem:[#allocation16 + $0x6d8] sm:$0xff]
    %v1453 = vld [vmem:[#allocation16 + $0x6e0] sm:$0xff]
    %v1454 = vld [vmem:[#allocation16 + $0x6e8] sm:$0xff]
    %v1455 = vld [vmem:[#allocation16 + $0x6f0] sm:$0xff]
    %v1456 = vld [vmem:[#allocation16 + $0x6f8] sm:$0xff]
    %v1457 = vld [vmem:[#allocation16 + $0x700] sm:$0xff]
    %v1458 = vld [vmem:[#allocation16 + $0x708] sm:$0xff]
    %v1459 = vld [vmem:[#allocation16 + $0x710] sm:$0xff]
    %v1460 = vld [vmem:[#allocation16 + $0x718] sm:$0xff]
    %v1461 = vld [vmem:[#allocation16 + $0x720] sm:$0xff]
    %v1462 = vld [vmem:[#allocation16 + $0x728] sm:$0xff]
    %v1463 = vld [vmem:[#allocation16 + $0x730] sm:$0xff]
    %v1464 = vld [vmem:[#allocation16 + $0x738] sm:$0xff]
    %v1465 = vld [vmem:[#allocation16 + $0x740] sm:$0xff]
    %v1466 = vld [vmem:[#allocation16 + $0x748] sm:$0xff]
    %v1467 = vld [vmem:[#allocation16 + $0x750] sm:$0xff]
    %v1468 = vld [vmem:[#allocation16 + $0x758] sm:$0xff]
    %v1469 = vld [vmem:[#allocation16 + $0x760] sm:$0xff]
    %v1470 = vld [vmem:[#allocation16 + $0x768] sm:$0xff]
    %v1471 = vld [vmem:[#allocation16 + $0x770] sm:$0xff]
    %v1472 = vld [vmem:[#allocation16 + $0x778] sm:$0xff]
    %v1473 = vld [vmem:[#allocation16 + $0x780] sm:$0xff]
    %v1474 = vld [vmem:[#allocation16 + $0x788] sm:$0xff]
    %v1475 = vld [vmem:[#allocation16 + $0x790] sm:$0xff]
    %v1476 = vld [vmem:[#allocation16 + $0x798] sm:$0xff]
    %v1477 = vld [vmem:[#allocation16 + $0x7a0] sm:$0xff]
    %v1478 = vld [vmem:[#allocation16 + $0x7a8] sm:$0xff]
    %v1479 = vld [vmem:[#allocation16 + $0x7b0] sm:$0xff]
    %v1480 = vld [vmem:[#allocation16 + $0x7b8] sm:$0xff]
    %v1481 = vld [vmem:[#allocation16 + $0x7c0] sm:$0xff]
    %v1482 = vld [vmem:[#allocation16 + $0x7c8] sm:$0xff]
    %v1483 = vld [vmem:[#allocation16 + $0x7d0] sm:$0xff]
    %v1484 = vld [vmem:[#allocation16 + $0x7d8] sm:$0xff]
    %v1485 = vld [vmem:[#allocation16 + $0x7e0] sm:$0xff]
    %v1486 = vld [vmem:[#allocation16 + $0x7e8] sm:$0xff]
    %v1487 = vld [vmem:[#allocation16 + $0x7f0] sm:$0xff]
    %v1488 = vld [vmem:[#allocation16 + $0x7f8] sm:$0xff]
    %v1489 = vld [vmem:[#allocation16 + $0x800] sm:$0xff]
    %v1490 = vld [vmem:[#allocation16 + $0x808] sm:$0xff]
    %v1491 = vld [vmem:[#allocation16 + $0x810] sm:$0xff]
    %v1492 = vld [vmem:[#allocation16 + $0x818] sm:$0xff]
    %v1493 = vld [vmem:[#allocation16 + $0x820] sm:$0xff]
    %v1494 = vld [vmem:[#allocation16 + $0x828] sm:$0xff]
    %v1495 = vld [vmem:[#allocation16 + $0x830] sm:$0xff]
    %v1496 = vld [vmem:[#allocation16 + $0x838] sm:$0xff]
    %v1497 = vld [vmem:[#allocation16 + $0x840] sm:$0xff]
    %v1498 = vld [vmem:[#allocation16 + $0x848] sm:$0xff]
    %v1499 = vld [vmem:[#allocation16 + $0x850] sm:$0xff]
    %v1500 = vld [vmem:[#allocation16 + $0x858] sm:$0xff]
    %v1501 = vld [vmem:[#allocation16 + $0x860] sm:$0xff]
    %v1502 = vld [vmem:[#allocation16 + $0x868] sm:$0xff]
    %v1503 = vld [vmem:[#allocation16 + $0x870] sm:$0xff]
    %v1504 = vld [vmem:[#allocation16 + $0x878] sm:$0xff]
    %v1505 = vld [vmem:[#allocation16 + $0x880] sm:$0xff]
    %v1506 = vld [vmem:[#allocation16 + $0x888] sm:$0xff]
    %v1507 = vld [vmem:[#allocation16 + $0x890] sm:$0xff]
    %v1508 = vld [vmem:[#allocation16 + $0x898] sm:$0xff]
    %v1509 = vld [vmem:[#allocation16 + $0x8a0] sm:$0xff]
    %v1510 = vld [vmem:[#allocation16 + $0x8a8] sm:$0xff]
    %v1511 = vld [vmem:[#allocation16 + $0x8b0] sm:$0xff]
    %v1512 = vld [vmem:[#allocation16 + $0x8b8] sm:$0xff]
    %v1513 = vld [vmem:[#allocation16 + $0x8c0] sm:$0xff]
    %v1514 = vld [vmem:[#allocation16 + $0x8c8] sm:$0xff]
    %v1515 = vld [vmem:[#allocation16 + $0x8d0] sm:$0xff]
    %v1516 = vld [vmem:[#allocation16 + $0x8d8] sm:$0xff]
    %v1517 = vld [vmem:[#allocation16 + $0x8e0] sm:$0xff]
    %v1518 = vld [vmem:[#allocation16 + $0x8e8] sm:$0xff]
    %v1519 = vld [vmem:[#allocation16 + $0x8f0] sm:$0xff]
    %v1520 = vld [vmem:[#allocation16 + $0x8f8] sm:$0xff]
    %v1521 = vld [vmem:[#allocation16 + $0x900] sm:$0xff]
    %v1522 = vld [vmem:[#allocation16 + $0x908] sm:$0xff]
    %v1523 = vld [vmem:[#allocation16 + $0x910] sm:$0xff]
    %v1524 = vld [vmem:[#allocation16 + $0x918] sm:$0xff]
    %v1525 = vld [vmem:[#allocation16 + $0x920] sm:$0xff]
    %v1526 = vld [vmem:[#allocation16 + $0x928] sm:$0xff]
    %v1527 = vld [vmem:[#allocation16 + $0x930] sm:$0xff]
    %v1528 = vld [vmem:[#allocation16 + $0x938] sm:$0xff]
    %v1529 = vld [vmem:[#allocation16 + $0x940] sm:$0xff]
    %v1530 = vld [vmem:[#allocation16 + $0x948] sm:$0xff]
    %v1531 = vld [vmem:[#allocation16 + $0x950] sm:$0xff]
    %v1532 = vld [vmem:[#allocation16 + $0x958] sm:$0xff]
    %v1533 = vld [vmem:[#allocation16 + $0x960] sm:$0xff]
    %v1534 = vld [vmem:[#allocation16 + $0x968] sm:$0xff]
    %v1535 = vld [vmem:[#allocation16 + $0x970] sm:$0xff]
    %v1536 = vld [vmem:[#allocation16 + $0x978] sm:$0xff]
    %v1537 = vld [vmem:[#allocation16 + $0x980] sm:$0xff]
    %v1538 = vld [vmem:[#allocation16 + $0x988] sm:$0xff]
    %v1539 = vld [vmem:[#allocation16 + $0x990] sm:$0xff]
    %v1540 = vld [vmem:[#allocation16 + $0x998] sm:$0xff]
    %v1541 = vld [vmem:[#allocation16 + $0x9a0] sm:$0xff]
    %v1542 = vld [vmem:[#allocation16 + $0x9a8] sm:$0xff]
    %v1543 = vld [vmem:[#allocation16 + $0x9b0] sm:$0xff]
    %v1544 = vld [vmem:[#allocation16 + $0x9b8] sm:$0xff]
    %v1545 = vld [vmem:[#allocation16 + $0x9c0] sm:$0xff]
    %v1546 = vld [vmem:[#allocation16 + $0x9c8] sm:$0xff]
    %v1547 = vld [vmem:[#allocation16 + $0x9d0] sm:$0xff]
    %v1548 = vld [vmem:[#allocation16 + $0x9d8] sm:$0xff]
    %v1549 = vld [vmem:[#allocation16 + $0x9e0] sm:$0xff]
    %v1550 = vld [vmem:[#allocation16 + $0x9e8] sm:$0xff]
    %v1551 = vld [vmem:[#allocation16 + $0x9f0] sm:$0xff]
    %v1552 = vld [vmem:[#allocation16 + $0x9f8] sm:$0xff]
    %v1553 = vld [vmem:[#allocation16 + $0xa00] sm:$0xff]
    %v1554 = vld [vmem:[#allocation16 + $0xa08] sm:$0xff]
    %v1555 = vld [vmem:[#allocation16 + $0xa10] sm:$0xff]
    %v1556 = vld [vmem:[#allocation16 + $0xa18] sm:$0xff]
    %v1557 = vld [vmem:[#allocation16 + $0xa20] sm:$0xff]
    %v1558 = vld [vmem:[#allocation16 + $0xa28] sm:$0xff]
    %v1559 = vld [vmem:[#allocation16 + $0xa30] sm:$0xff]
    %v1560 = vld [vmem:[#allocation16 + $0xa38] sm:$0xff]
    %v1561 = vld [vmem:[#allocation16 + $0xa40] sm:$0xff]
    %v1562 = vld [vmem:[#allocation16 + $0xa48] sm:$0xff]
    %v1563 = vld [vmem:[#allocation16 + $0xa50] sm:$0xff]
    %v1564 = vld [vmem:[#allocation16 + $0xa58] sm:$0xff]
    %v1565 = vld [vmem:[#allocation16 + $0xa60] sm:$0xff]
    %v1566 = vld [vmem:[#allocation16 + $0xa68] sm:$0xff]
    %v1567 = vld [vmem:[#allocation16 + $0xa70] sm:$0xff]
    %v1568 = vld [vmem:[#allocation16 + $0xa78] sm:$0xff]
    %v1569 = vld [vmem:[#allocation16 + $0xa80] sm:$0xff]
    %v1570 = vld [vmem:[#allocation16 + $0xa88] sm:$0xff]
    %v1571 = vld [vmem:[#allocation16 + $0xa90] sm:$0xff]
    %v1572 = vld [vmem:[#allocation16 + $0xa98] sm:$0xff]
    %v1573 = vld [vmem:[#allocation16 + $0xaa0] sm:$0xff]
    %v1574 = vld [vmem:[#allocation16 + $0xaa8] sm:$0xff]
    %v1575 = vld [vmem:[#allocation16 + $0xab0] sm:$0xff]
    %v1576 = vld [vmem:[#allocation16 + $0xab8] sm:$0xff]
    %v1577 = vld [vmem:[#allocation16 + $0xac0] sm:$0xff]
    %v1578 = vld [vmem:[#allocation16 + $0xac8] sm:$0xff]
    %v1579 = vld [vmem:[#allocation16 + $0xad0] sm:$0xff]
    %v1580 = vld [vmem:[#allocation16 + $0xad8] sm:$0xff]
    %v1581 = vld [vmem:[#allocation16 + $0xae0] sm:$0xff]
    %v1582 = vld [vmem:[#allocation16 + $0xae8] sm:$0xff]
    %v1583 = vld [vmem:[#allocation16 + $0xaf0] sm:$0xff]
    %v1584 = vld [vmem:[#allocation16 + $0xaf8] sm:$0xff]
    %v1585 = vld [vmem:[#allocation16 + $0xb00] sm:$0xff]
    %v1586 = vld [vmem:[#allocation16 + $0xb08] sm:$0xff]
    %v1587 = vld [vmem:[#allocation16 + $0xb10] sm:$0xff]
    %v1588 = vld [vmem:[#allocation16 + $0xb18] sm:$0xff]
    %v1589 = vld [vmem:[#allocation16 + $0xb20] sm:$0xff]
    %v1590 = vld [vmem:[#allocation16 + $0xb28] sm:$0xff]
    %v1591 = vld [vmem:[#allocation16 + $0xb30] sm:$0xff]
    %v1592 = vld [vmem:[#allocation16 + $0xb38] sm:$0xff]
    %v1593 = vld [vmem:[#allocation16 + $0xb40] sm:$0xff]
    %v1594 = vld [vmem:[#allocation16 + $0xb48] sm:$0xff]
    %v1595 = vld [vmem:[#allocation16 + $0xb50] sm:$0xff]
    %v1596 = vld [vmem:[#allocation16 + $0xb58] sm:$0xff]
    %v1597 = vld [vmem:[#allocation16 + $0xb60] sm:$0xff]
    %v1598 = vld [vmem:[#allocation16 + $0xb68] sm:$0xff]
    %v1599 = vld [vmem:[#allocation16 + $0xb70] sm:$0xff]
    %v1600 = vld [vmem:[#allocation16 + $0xb78] sm:$0xff]
    %v1601 = vld [vmem:[#allocation16 + $0xb80] sm:$0xff]
    %v1602 = vld [vmem:[#allocation16 + $0xb88] sm:$0xff]
    %v1603 = vld [vmem:[#allocation16 + $0xb90] sm:$0xff]
    %v1604 = vld [vmem:[#allocation16 + $0xb98] sm:$0xff]
    %v1605 = vld [vmem:[#allocation16 + $0xba0] sm:$0xff]
    %v1606 = vld [vmem:[#allocation16 + $0xba8] sm:$0xff]
    %v1607 = vld [vmem:[#allocation16 + $0xbb0] sm:$0xff]
    %v1608 = vld [vmem:[#allocation16 + $0xbb8] sm:$0xff]
    %v1609 = vld [vmem:[#allocation16 + $0xbc0] sm:$0xff]
    %v1610 = vld [vmem:[#allocation16 + $0xbc8] sm:$0xff]
    %v1611 = vld [vmem:[#allocation16 + $0xbd0] sm:$0xff]
    %v1612 = vld [vmem:[#allocation16 + $0xbd8] sm:$0xff]
    %v1613 = vld [vmem:[#allocation16 + $0xbe0] sm:$0xff]
    %v1614 = vld [vmem:[#allocation16 + $0xbe8] sm:$0xff]
    %v1615 = vld [vmem:[#allocation16 + $0xbf0] sm:$0xff]
    %v1616 = vld [vmem:[#allocation16 + $0xbf8] sm:$0xff]
    %v1617 = vld [vmem:[#allocation16 + $0xc00] sm:$0xff]
    %v1618 = vld [vmem:[#allocation16 + $0xc08] sm:$0xff]
    %v1619 = vld [vmem:[#allocation16 + $0xc10] sm:$0xff]
    %v1620 = vld [vmem:[#allocation16 + $0xc18] sm:$0xff]
    %v1621 = vld [vmem:[#allocation16 + $0xc20] sm:$0xff]
    %v1622 = vld [vmem:[#allocation16 + $0xc28] sm:$0xff]
    %v1623 = vld [vmem:[#allocation16 + $0xc30] sm:$0xff]
    %v1624 = vld [vmem:[#allocation16 + $0xc38] sm:$0xff]
    %v1625 = vld [vmem:[#allocation16 + $0xc40] sm:$0xff]
    %v1626 = vld [vmem:[#allocation16 + $0xc48] sm:$0xff]
    %v1627 = vld [vmem:[#allocation16 + $0xc50] sm:$0xff]
    %v1628 = vld [vmem:[#allocation16 + $0xc58] sm:$0xff]
    %v1629 = vld [vmem:[#allocation16 + $0xc60] sm:$0xff]
    %v1630 = vld [vmem:[#allocation16 + $0xc68] sm:$0xff]
    %v1631 = vld [vmem:[#allocation16 + $0xc70] sm:$0xff]
    %v1632 = vld [vmem:[#allocation16 + $0xc78] sm:$0xff]
    %v1633 = vld [vmem:[#allocation16 + $0xc80] sm:$0xff]
    %v1634 = vld [vmem:[#allocation16 + $0xc88] sm:$0xff]
    %v1635 = vld [vmem:[#allocation16 + $0xc90] sm:$0xff]
    %v1636 = vld [vmem:[#allocation16 + $0xc98] sm:$0xff]
    %v1637 = vld [vmem:[#allocation16 + $0xca0] sm:$0xff]
    %v1638 = vld [vmem:[#allocation16 + $0xca8] sm:$0xff]
    %v1639 = vld [vmem:[#allocation16 + $0xcb0] sm:$0xff]
    %v1640 = vld [vmem:[#allocation16 + $0xcb8] sm:$0xff]
    %v1641 = vld [vmem:[#allocation16 + $0xcc0] sm:$0xff]
    %v1642 = vld [vmem:[#allocation16 + $0xcc8] sm:$0xff]
    %v1643 = vld [vmem:[#allocation16 + $0xcd0] sm:$0xff]
    %v1644 = vld [vmem:[#allocation16 + $0xcd8] sm:$0xff]
    %v1645 = vld [vmem:[#allocation16 + $0xce0] sm:$0xff]
    %v1646 = vld [vmem:[#allocation16 + $0xce8] sm:$0xff]
    %v1647 = vld [vmem:[#allocation16 + $0xcf0] sm:$0xff]
    %v1648 = vld [vmem:[#allocation16 + $0xcf8] sm:$0xff]
    %v1649 = vld [vmem:[#allocation16 + $0xd00] sm:$0xff]
    %v1650 = vld [vmem:[#allocation16 + $0xd08] sm:$0xff]
    %v1651 = vld [vmem:[#allocation16 + $0xd10] sm:$0xff]
    %v1652 = vld [vmem:[#allocation16 + $0xd18] sm:$0xff]
    %v1653 = vld [vmem:[#allocation16 + $0xd20] sm:$0xff]
    %v1654 = vld [vmem:[#allocation16 + $0xd28] sm:$0xff]
    %v1655 = vld [vmem:[#allocation16 + $0xd30] sm:$0xff]
    %v1656 = vld [vmem:[#allocation16 + $0xd38] sm:$0xff]
    %v1657 = vld [vmem:[#allocation16 + $0xd40] sm:$0xff]
    %v1658 = vld [vmem:[#allocation16 + $0xd48] sm:$0xff]
    %v1659 = vld [vmem:[#allocation16 + $0xd50] sm:$0xff]
    %v1660 = vld [vmem:[#allocation16 + $0xd58] sm:$0xff]
    %v1661 = vld [vmem:[#allocation16 + $0xd60] sm:$0xff]
    %v1662 = vld [vmem:[#allocation16 + $0xd68] sm:$0xff]
    %v1663 = vld [vmem:[#allocation16 + $0xd70] sm:$0xff]
    %v1664 = vld [vmem:[#allocation16 + $0xd78] sm:$0xff]
    %v1665 = vld [vmem:[#allocation16 + $0xd80] sm:$0xff]
    %v1666 = vld [vmem:[#allocation16 + $0xd88] sm:$0xff]
    %v1667 = vld [vmem:[#allocation16 + $0xd90] sm:$0xff]
    %v1668 = vld [vmem:[#allocation16 + $0xd98] sm:$0xff]
    %v1669 = vld [vmem:[#allocation16 + $0xda0] sm:$0xff]
    %v1670 = vld [vmem:[#allocation16 + $0xda8] sm:$0xff]
    %v1671 = vld [vmem:[#allocation16 + $0xdb0] sm:$0xff]
    %v1672 = vld [vmem:[#allocation16 + $0xdb8] sm:$0xff]
    %v1673 = vld [vmem:[#allocation16 + $0xdc0] sm:$0xff]
    %v1674 = vld [vmem:[#allocation16 + $0xdc8] sm:$0xff]
    %v1675 = vld [vmem:[#allocation16 + $0xdd0] sm:$0xff]
    %v1676 = vld [vmem:[#allocation16 + $0xdd8] sm:$0xff]
    %v1677 = vld [vmem:[#allocation16 + $0xde0] sm:$0xff]
    %v1678 = vld [vmem:[#allocation16 + $0xde8] sm:$0xff]
    %v1679 = vld [vmem:[#allocation16 + $0xdf0] sm:$0xff]
    %v1680 = vld [vmem:[#allocation16 + $0xdf8] sm:$0xff]
    %v1681 = vld [vmem:[#allocation16 + $0xe00] sm:$0xff]
    %v1682 = vld [vmem:[#allocation16 + $0xe08] sm:$0xff]
    %v1683 = vld [vmem:[#allocation16 + $0xe10] sm:$0xff]
    %v1684 = vld [vmem:[#allocation16 + $0xe18] sm:$0xff]
    %v1685 = vld [vmem:[#allocation16 + $0xe20] sm:$0xff]
    %v1686 = vld [vmem:[#allocation16 + $0xe28] sm:$0xff]
    %v1687 = vld [vmem:[#allocation16 + $0xe30] sm:$0xff]
    %v1688 = vld [vmem:[#allocation16 + $0xe38] sm:$0xff]
    %v1689 = vld [vmem:[#allocation16 + $0xe40] sm:$0xff]
    %v1690 = vld [vmem:[#allocation16 + $0xe48] sm:$0xff]
    %v1691 = vld [vmem:[#allocation16 + $0xe50] sm:$0xff]
    %v1692 = vld [vmem:[#allocation16 + $0xe58] sm:$0xff]
    %v1693 = vld [vmem:[#allocation16 + $0xe60] sm:$0xff]
    %v1694 = vld [vmem:[#allocation16 + $0xe68] sm:$0xff]
    %v1695 = vld [vmem:[#allocation16 + $0xe70] sm:$0xff]
    %v1696 = vld [vmem:[#allocation16 + $0xe78] sm:$0xff]
    %v1697 = vld [vmem:[#allocation16 + $0xe80] sm:$0xff]
    %v1698 = vld [vmem:[#allocation16 + $0xe88] sm:$0xff]
    %v1699 = vld [vmem:[#allocation16 + $0xe90] sm:$0xff]
    %v1700 = vld [vmem:[#allocation16 + $0xe98] sm:$0xff]
    %v1701 = vld [vmem:[#allocation16 + $0xea0] sm:$0xff]
    %v1702 = vld [vmem:[#allocation16 + $0xea8] sm:$0xff]
    %v1703 = vld [vmem:[#allocation16 + $0xeb0] sm:$0xff]
    %v1704 = vld [vmem:[#allocation16 + $0xeb8] sm:$0xff]
    %v1705 = vld [vmem:[#allocation16 + $0xec0] sm:$0xff]
    %v1706 = vld [vmem:[#allocation16 + $0xec8] sm:$0xff]
    %v1707 = vld [vmem:[#allocation16 + $0xed0] sm:$0xff]
    %v1708 = vld [vmem:[#allocation16 + $0xed8] sm:$0xff]
    %v1709 = vld [vmem:[#allocation16 + $0xee0] sm:$0xff]
    %v1710 = vld [vmem:[#allocation16 + $0xee8] sm:$0xff]
    %v1711 = vld [vmem:[#allocation16 + $0xef0] sm:$0xff]
    %v1712 = vld [vmem:[#allocation16 + $0xef8] sm:$0xff]
    %v1713 = vld [vmem:[#allocation16 + $0xf00] sm:$0xff]
    %v1714 = vld [vmem:[#allocation16 + $0xf08] sm:$0xff]
    %v1715 = vld [vmem:[#allocation16 + $0xf10] sm:$0xff]
    %v1716 = vld [vmem:[#allocation16 + $0xf18] sm:$0xff]
    %v1717 = vld [vmem:[#allocation16 + $0xf20] sm:$0xff]
    %v1718 = vld [vmem:[#allocation16 + $0xf28] sm:$0xff]
    %v1719 = vld [vmem:[#allocation16 + $0xf30] sm:$0xff]
    %v1720 = vld [vmem:[#allocation16 + $0xf38] sm:$0xff]
    %v1721 = vld [vmem:[#allocation16 + $0xf40] sm:$0xff]
    %v1722 = vld [vmem:[#allocation16 + $0xf48] sm:$0xff]
    %v1723 = vld [vmem:[#allocation16 + $0xf50] sm:$0xff]
    %v1724 = vld [vmem:[#allocation16 + $0xf58] sm:$0xff]
    %v1725 = vld [vmem:[#allocation16 + $0xf60] sm:$0xff]
    %v1726 = vld [vmem:[#allocation16 + $0xf68] sm:$0xff]
    %v1727 = vld [vmem:[#allocation16 + $0xf70] sm:$0xff]
    %v1728 = vld [vmem:[#allocation16 + $0xf78] sm:$0xff]
    %v1729 = vld [vmem:[#allocation16 + $0xf80] sm:$0xff]
    %v1730 = vld [vmem:[#allocation16 + $0xf88] sm:$0xff]
    %v1731 = vld [vmem:[#allocation16 + $0xf90] sm:$0xff]
    %v1732 = vld [vmem:[#allocation16 + $0xf98] sm:$0xff]
    %v1733 = vld [vmem:[#allocation16 + $0xfa0] sm:$0xff]
    %v1734 = vld [vmem:[#allocation16 + $0xfa8] sm:$0xff]
    %v1735 = vld [vmem:[#allocation16 + $0xfb0] sm:$0xff]
    %v1736 = vld [vmem:[#allocation16 + $0xfb8] sm:$0xff]
    %v1737 = vld [vmem:[#allocation16 + $0xfc0] sm:$0xff]
    %v1738 = vld [vmem:[#allocation16 + $0xfc8] sm:$0xff]
    %v1739 = vld [vmem:[#allocation16 + $0xfd0] sm:$0xff]
    %v1740 = vld [vmem:[#allocation16 + $0xfd8] sm:$0xff]
    %v1741 = vld [vmem:[#allocation16 + $0xfe0] sm:$0xff]
    %v1742 = vld [vmem:[#allocation16 + $0xfe8] sm:$0xff]
    %v1743 = vld [vmem:[#allocation16 + $0xff0] sm:$0xff]
    %v1744 = vld [vmem:[#allocation16 + $0xff8] sm:$0xff]
    %v1745 = vld [vmem:[#allocation16 + $0x1000] sm:$0xff]
    %v1746 = vld [vmem:[#allocation16 + $0x1008] sm:$0xff]
    %v1747 = vld [vmem:[#allocation16 + $0x1010] sm:$0xff]
    %v1748 = vld [vmem:[#allocation16 + $0x1018] sm:$0xff]
    %v1749 = vld [vmem:[#allocation16 + $0x1020] sm:$0xff]
    %v1750 = vld [vmem:[#allocation16 + $0x1028] sm:$0xff]
    %v1751 = vld [vmem:[#allocation16 + $0x1030] sm:$0xff]
    %v1752 = vld [vmem:[#allocation16 + $0x1038] sm:$0xff]
    %v1753 = vld [vmem:[#allocation16 + $0x1040] sm:$0xff]
    %v1754 = vld [vmem:[#allocation16 + $0x1048] sm:$0xff]
    %v1755 = vld [vmem:[#allocation16 + $0x1050] sm:$0xff]
    %v1756 = vld [vmem:[#allocation16 + $0x1058] sm:$0xff]
    %v1757 = vld [vmem:[#allocation16 + $0x1060] sm:$0xff]
    %v1758 = vld [vmem:[#allocation16 + $0x1068] sm:$0xff]
    %v1759 = vld [vmem:[#allocation16 + $0x1070] sm:$0xff]
    %v1760 = vld [vmem:[#allocation16 + $0x1078] sm:$0xff]
    %v1761 = vld [vmem:[#allocation16 + $0x1080] sm:$0xff]
    %v1762 = vld [vmem:[#allocation16 + $0x1088] sm:$0xff]
    %v1763 = vld [vmem:[#allocation16 + $0x1090] sm:$0xff]
    %v1764 = vld [vmem:[#allocation16 + $0x1098] sm:$0xff]
    %v1765 = vld [vmem:[#allocation16 + $0x10a0] sm:$0xff]
    %v1766 = vld [vmem:[#allocation16 + $0x10a8] sm:$0xff]
    %v1767 = vld [vmem:[#allocation16 + $0x10b0] sm:$0xff]
    %v1768 = vld [vmem:[#allocation16 + $0x10b8] sm:$0xff]
    %v1769 = vld [vmem:[#allocation16 + $0x10c0] sm:$0xff]
    %v1770 = vld [vmem:[#allocation16 + $0x10c8] sm:$0xff]
    %v1771 = vld [vmem:[#allocation16 + $0x10d0] sm:$0xff]
    %v1772 = vld [vmem:[#allocation16 + $0x10d8] sm:$0xff]
    %v1773 = vld [vmem:[#allocation16 + $0x10e0] sm:$0xff]
    %v1774 = vld [vmem:[#allocation16 + $0x10e8] sm:$0xff]
    %v1775 = vld [vmem:[#allocation16 + $0x10f0] sm:$0xff]
    %v1776 = vld [vmem:[#allocation16 + $0x10f8] sm:$0xff]
    %v1777 = vld [vmem:[#allocation16 + $0x1100] sm:$0xff]
    %v1778 = vld [vmem:[#allocation16 + $0x1108] sm:$0xff]
    %v1779 = vld [vmem:[#allocation16 + $0x1110] sm:$0xff]
    %v1780 = vld [vmem:[#allocation16 + $0x1118] sm:$0xff]
    %v1781 = vld [vmem:[#allocation16 + $0x1120] sm:$0xff]
    %v1782 = vld [vmem:[#allocation16 + $0x1128] sm:$0xff]
    %v1783 = vld [vmem:[#allocation16 + $0x1130] sm:$0xff]
    %v1784 = vld [vmem:[#allocation16 + $0x1138] sm:$0xff]
    %v1785 = vld [vmem:[#allocation16 + $0x1140] sm:$0xff]
    %v1786 = vld [vmem:[#allocation16 + $0x1148] sm:$0xff]
    %v1787 = vld [vmem:[#allocation16 + $0x1150] sm:$0xff]
    %v1788 = vld [vmem:[#allocation16 + $0x1158] sm:$0xff]
    %v1789 = vld [vmem:[#allocation16 + $0x1160] sm:$0xff]
    %v1790 = vld [vmem:[#allocation16 + $0x1168] sm:$0xff]
    %v1791 = vld [vmem:[#allocation16 + $0x1170] sm:$0xff]
    %v1792 = vld [vmem:[#allocation16 + $0x1178] sm:$0xff]
    %v1793 = vld [vmem:[#allocation16 + $0x1180] sm:$0xff]
    %v1794 = vld [vmem:[#allocation16 + $0x1188] sm:$0xff]
    %v1795 = vld [vmem:[#allocation16 + $0x1190] sm:$0xff]
    %v1796 = vld [vmem:[#allocation16 + $0x1198] sm:$0xff]
    %v1797 = vld [vmem:[#allocation16 + $0x11a0] sm:$0xff]
    %v1798 = vld [vmem:[#allocation16 + $0x11a8] sm:$0xff]
    %v1799 = vld [vmem:[#allocation16 + $0x11b0] sm:$0xff]
    %v1800 = vld [vmem:[#allocation16 + $0x11b8] sm:$0xff]
    %v1801 = vld [vmem:[#allocation16 + $0x11c0] sm:$0xff]
    %v1802 = vld [vmem:[#allocation16 + $0x11c8] sm:$0xff]
    %v1803 = vld [vmem:[#allocation16 + $0x11d0] sm:$0xff]
    %v1804 = vld [vmem:[#allocation16 + $0x11d8] sm:$0xff]
    %v1805 = vld [vmem:[#allocation16 + $0x11e0] sm:$0xff]
    %v1806 = vld [vmem:[#allocation16 + $0x11e8] sm:$0xff]
    %v1807 = vld [vmem:[#allocation16 + $0x11f0] sm:$0xff]
    %v1808 = vld [vmem:[#allocation16 + $0x11f8] sm:$0xff]
    %v1809 = vld [vmem:[#allocation16 + $0x1200] sm:$0xff]
    %v1810 = vld [vmem:[#allocation16 + $0x1208] sm:$0xff]
    %v1811 = vld [vmem:[#allocation16 + $0x1210] sm:$0xff]
    %v1812 = vld [vmem:[#allocation16 + $0x1218] sm:$0xff]
    %v1813 = vld [vmem:[#allocation16 + $0x1220] sm:$0xff]
    %v1814 = vld [vmem:[#allocation16 + $0x1228] sm:$0xff]
    %v1815 = vld [vmem:[#allocation16 + $0x1230] sm:$0xff]
    %v1816 = vld [vmem:[#allocation16 + $0x1238] sm:$0xff]
    %v1817 = vld [vmem:[#allocation16 + $0x1240] sm:$0xff]
    %v1818 = vld [vmem:[#allocation16 + $0x1248] sm:$0xff]
    %v1819 = vld [vmem:[#allocation16 + $0x1250] sm:$0xff]
    %v1820 = vld [vmem:[#allocation16 + $0x1258] sm:$0xff]
    %v1821 = vld [vmem:[#allocation16 + $0x1260] sm:$0xff]
    %v1822 = vld [vmem:[#allocation16 + $0x1268] sm:$0xff]
    %v1823 = vld [vmem:[#allocation16 + $0x1270] sm:$0xff]
    %v1824 = vld [vmem:[#allocation16 + $0x1278] sm:$0xff]
    %v1825 = vld [vmem:[#allocation16 + $0x1280] sm:$0xff]
    %v1826 = vld [vmem:[#allocation16 + $0x1288] sm:$0xff]
    %v1827 = vld [vmem:[#allocation16 + $0x1290] sm:$0xff]
    %v1828 = vld [vmem:[#allocation16 + $0x1298] sm:$0xff]
    %v1829 = vld [vmem:[#allocation16 + $0x12a0] sm:$0xff]
    %v1830 = vld [vmem:[#allocation16 + $0x12a8] sm:$0xff]
    %v1831 = vld [vmem:[#allocation16 + $0x12b0] sm:$0xff]
    %v1832 = vld [vmem:[#allocation16 + $0x12b8] sm:$0xff]
    %v1833 = vld [vmem:[#allocation16 + $0x12c0] sm:$0xff]
    %v1834 = vld [vmem:[#allocation16 + $0x12c8] sm:$0xff]
    %v1835 = vld [vmem:[#allocation16 + $0x12d0] sm:$0xff]
    %v1836 = vld [vmem:[#allocation16 + $0x12d8] sm:$0xff]
    %v1837 = vld [vmem:[#allocation16 + $0x12e0] sm:$0xff]
    %v1838 = vld [vmem:[#allocation16 + $0x12e8] sm:$0xff]
    %v1839 = vld [vmem:[#allocation16 + $0x12f0] sm:$0xff]
    %v1840 = vld [vmem:[#allocation16 + $0x12f8] sm:$0xff]
    %v1841 = vld [vmem:[#allocation16 + $0x1300] sm:$0xff]
    %v1842 = vld [vmem:[#allocation16 + $0x1308] sm:$0xff]
    %v1843 = vld [vmem:[#allocation16 + $0x1310] sm:$0xff]
    %v1844 = vld [vmem:[#allocation16 + $0x1318] sm:$0xff]
    %v1845 = vld [vmem:[#allocation16 + $0x1320] sm:$0xff]
    %v1846 = vld [vmem:[#allocation16 + $0x1328] sm:$0xff]
    %v1847 = vld [vmem:[#allocation16 + $0x1330] sm:$0xff]
    %v1848 = vld [vmem:[#allocation16 + $0x1338] sm:$0xff]
    %v1849 = vld [vmem:[#allocation16 + $0x1340] sm:$0xff]
    %v1850 = vld [vmem:[#allocation16 + $0x1348] sm:$0xff]
    %v1851 = vld [vmem:[#allocation16 + $0x1350] sm:$0xff]
    %v1852 = vld [vmem:[#allocation16 + $0x1358] sm:$0xff]
    %v1853 = vld [vmem:[#allocation16 + $0x1360] sm:$0xff]
    %v1854 = vld [vmem:[#allocation16 + $0x1368] sm:$0xff]
    %v1855 = vld [vmem:[#allocation16 + $0x1370] sm:$0xff]
    %v1856 = vld [vmem:[#allocation16 + $0x1378] sm:$0xff]
    %v1857 = vld [vmem:[#allocation16 + $0x1380] sm:$0xff]
    %v1858 = vld [vmem:[#allocation16 + $0x1388] sm:$0xff]
    %v1859 = vld [vmem:[#allocation16 + $0x1390] sm:$0xff]
    %v1860 = vld [vmem:[#allocation16 + $0x1398] sm:$0xff]
    %v1861 = vld [vmem:[#allocation16 + $0x13a0] sm:$0xff]
    %v1862 = vld [vmem:[#allocation16 + $0x13a8] sm:$0xff]
    %v1863 = vld [vmem:[#allocation16 + $0x13b0] sm:$0xff]
    %v1864 = vld [vmem:[#allocation16 + $0x13b8] sm:$0xff]
    %v1865 = vld [vmem:[#allocation16 + $0x13c0] sm:$0xff]
    %v1866 = vld [vmem:[#allocation16 + $0x13c8] sm:$0xff]
    %v1867 = vld [vmem:[#allocation16 + $0x13d0] sm:$0xff]
    %v1868 = vld [vmem:[#allocation16 + $0x13d8] sm:$0xff]
    %v1869 = vld [vmem:[#allocation16 + $0x13e0] sm:$0xff]
    %v1870 = vld [vmem:[#allocation16 + $0x13e8] sm:$0xff]
    %v1871 = vld [vmem:[#allocation16 + $0x13f0] sm:$0xff]
    %v1872 = vld [vmem:[#allocation16 + $0x13f8] sm:$0xff]
    %v1873 = vld [vmem:[#allocation16 + $0x1400] sm:$0xff]
    %v1874 = vld [vmem:[#allocation16 + $0x1408] sm:$0xff]
    %v1875 = vld [vmem:[#allocation16 + $0x1410] sm:$0xff]
    %v1876 = vld [vmem:[#allocation16 + $0x1418] sm:$0xff]
    %v1877 = vld [vmem:[#allocation16 + $0x1420] sm:$0xff]
    %v1878 = vld [vmem:[#allocation16 + $0x1428] sm:$0xff]
    %v1879 = vld [vmem:[#allocation16 + $0x1430] sm:$0xff]
    %v1880 = vld [vmem:[#allocation16 + $0x1438] sm:$0xff]
    %v1881 = vld [vmem:[#allocation16 + $0x1440] sm:$0xff]
    %v1882 = vld [vmem:[#allocation16 + $0x1448] sm:$0xff]
    %v1883 = vld [vmem:[#allocation16 + $0x1450] sm:$0xff]
    %v1884 = vld [vmem:[#allocation16 + $0x1458] sm:$0xff]
    %v1885 = vld [vmem:[#allocation16 + $0x1460] sm:$0xff]
    %v1886 = vld [vmem:[#allocation16 + $0x1468] sm:$0xff]
    %v1887 = vld [vmem:[#allocation16 + $0x1470] sm:$0xff]
    %v1888 = vld [vmem:[#allocation16 + $0x1478] sm:$0xff]
    %v1889 = vld [vmem:[#allocation16 + $0x1480] sm:$0xff]
    %v1890 = vld [vmem:[#allocation16 + $0x1488] sm:$0xff]
    %v1891 = vld [vmem:[#allocation16 + $0x1490] sm:$0xff]
    %v1892 = vld [vmem:[#allocation16 + $0x1498] sm:$0xff]
    %v1893 = vld [vmem:[#allocation16 + $0x14a0] sm:$0xff]
    %v1894 = vld [vmem:[#allocation16 + $0x14a8] sm:$0xff]
    %v1895 = vld [vmem:[#allocation16 + $0x14b0] sm:$0xff]
    %v1896 = vld [vmem:[#allocation16 + $0x14b8] sm:$0xff]
    %v1897 = vld [vmem:[#allocation16 + $0x14c0] sm:$0xff]
    %v1898 = vld [vmem:[#allocation16 + $0x14c8] sm:$0xff]
    %v1899 = vld [vmem:[#allocation16 + $0x14d0] sm:$0xff]
    %v1900 = vld [vmem:[#allocation16 + $0x14d8] sm:$0xff]
    %v1901 = vld [vmem:[#allocation16 + $0x14e0] sm:$0xff]
    %v1902 = vld [vmem:[#allocation16 + $0x14e8] sm:$0xff]
    %v1903 = vld [vmem:[#allocation16 + $0x14f0] sm:$0xff]
    %v1904 = vld [vmem:[#allocation16 + $0x14f8] sm:$0xff]
    %v1905 = vld [vmem:[#allocation16 + $0x1500] sm:$0xff]
    %v1906 = vld [vmem:[#allocation16 + $0x1508] sm:$0xff]
    %v1907 = vld [vmem:[#allocation16 + $0x1510] sm:$0xff]
    %v1908 = vld [vmem:[#allocation16 + $0x1518] sm:$0xff]
    %v1909 = vld [vmem:[#allocation16 + $0x1520] sm:$0xff]
    %v1910 = vld [vmem:[#allocation16 + $0x1528] sm:$0xff]
    %v1911 = vld [vmem:[#allocation16 + $0x1530] sm:$0xff]
    %v1912 = vld [vmem:[#allocation16 + $0x1538] sm:$0xff]
    %v1913 = vld [vmem:[#allocation16 + $0x1540] sm:$0xff]
    %v1914 = vld [vmem:[#allocation16 + $0x1548] sm:$0xff]
    %v1915 = vld [vmem:[#allocation16 + $0x1550] sm:$0xff]
    %v1916 = vld [vmem:[#allocation16 + $0x1558] sm:$0xff]
    %v1917 = vld [vmem:[#allocation16 + $0x1560] sm:$0xff]
    %v1918 = vld [vmem:[#allocation16 + $0x1568] sm:$0xff]
    %v1919 = vld [vmem:[#allocation16 + $0x1570] sm:$0xff]
    %v1920 = vld [vmem:[#allocation16 + $0x1578] sm:$0xff]
    %v1921 = vld [vmem:[#allocation16 + $0x1580] sm:$0xff]
    %v1922 = vld [vmem:[#allocation16 + $0x1588] sm:$0xff]
    %v1923 = vld [vmem:[#allocation16 + $0x1590] sm:$0xff]
    %v1924 = vld [vmem:[#allocation16 + $0x1598] sm:$0xff]
    %v1925 = vld [vmem:[#allocation16 + $0x15a0] sm:$0xff]
    %v1926 = vld [vmem:[#allocation16 + $0x15a8] sm:$0xff]
    %v1927 = vld [vmem:[#allocation16 + $0x15b0] sm:$0xff]
    %v1928 = vld [vmem:[#allocation16 + $0x15b8] sm:$0xff]
    %v1929 = vld [vmem:[#allocation16 + $0x15c0] sm:$0xff]
    %v1930 = vld [vmem:[#allocation16 + $0x15c8] sm:$0xff]
    %v1931 = vld [vmem:[#allocation16 + $0x15d0] sm:$0xff]
    %v1932 = vld [vmem:[#allocation16 + $0x15d8] sm:$0xff]
    %v1933 = vld [vmem:[#allocation16 + $0x15e0] sm:$0xff]
    %v1934 = vld [vmem:[#allocation16 + $0x15e8] sm:$0xff]
    %v1935 = vld [vmem:[#allocation16 + $0x15f0] sm:$0xff]
    %v1936 = vld [vmem:[#allocation16 + $0x15f8] sm:$0xff]
    %v1937 = vld [vmem:[#allocation16 + $0x1600] sm:$0xff]
    %v1938 = vld [vmem:[#allocation16 + $0x1608] sm:$0xff]
    %v1939 = vld [vmem:[#allocation16 + $0x1610] sm:$0xff]
    %v1940 = vld [vmem:[#allocation16 + $0x1618] sm:$0xff]
    %v1941 = vld [vmem:[#allocation16 + $0x1620] sm:$0xff]
    %v1942 = vld [vmem:[#allocation16 + $0x1628] sm:$0xff]
    %v1943 = vld [vmem:[#allocation16 + $0x1630] sm:$0xff]
    %v1944 = vld [vmem:[#allocation16 + $0x1638] sm:$0xff]
    %v1945 = vld [vmem:[#allocation16 + $0x1640] sm:$0xff]
    %v1946 = vld [vmem:[#allocation16 + $0x1648] sm:$0xff]
    %v1947 = vld [vmem:[#allocation16 + $0x1650] sm:$0xff]
    %v1948 = vld [vmem:[#allocation16 + $0x1658] sm:$0xff]
    %v1949 = vld [vmem:[#allocation16 + $0x1660] sm:$0xff]
    %v1950 = vld [vmem:[#allocation16 + $0x1668] sm:$0xff]
    %v1951 = vld [vmem:[#allocation16 + $0x1670] sm:$0xff]
    %v1952 = vld [vmem:[#allocation16 + $0x1678] sm:$0xff]
    %v1953 = vld [vmem:[#allocation16 + $0x1680] sm:$0xff]
    %v1954 = vld [vmem:[#allocation16 + $0x1688] sm:$0xff]
    %v1955 = vld [vmem:[#allocation16 + $0x1690] sm:$0xff]
    %v1956 = vld [vmem:[#allocation16 + $0x1698] sm:$0xff]
    %v1957 = vld [vmem:[#allocation16 + $0x16a0] sm:$0xff]
    %v1958 = vld [vmem:[#allocation16 + $0x16a8] sm:$0xff]
    %v1959 = vld [vmem:[#allocation16 + $0x16b0] sm:$0xff]
    %v1960 = vld [vmem:[#allocation16 + $0x16b8] sm:$0xff]
    %v1961 = vld [vmem:[#allocation16 + $0x16c0] sm:$0xff]
    %v1962 = vld [vmem:[#allocation16 + $0x16c8] sm:$0xff]
    %v1963 = vld [vmem:[#allocation16 + $0x16d0] sm:$0xff]
    %v1964 = vld [vmem:[#allocation16 + $0x16d8] sm:$0xff]
    %v1965 = vld [vmem:[#allocation16 + $0x16e0] sm:$0xff]
    %v1966 = vld [vmem:[#allocation16 + $0x16e8] sm:$0xff]
    %v1967 = vld [vmem:[#allocation16 + $0x16f0] sm:$0xff]
    %v1968 = vld [vmem:[#allocation16 + $0x16f8] sm:$0xff]
    %v1969 = vld [vmem:[#allocation16 + $0x1700] sm:$0xff]
    %v1970 = vld [vmem:[#allocation16 + $0x1708] sm:$0xff]
    %v1971 = vld [vmem:[#allocation16 + $0x1710] sm:$0xff]
    %v1972 = vld [vmem:[#allocation16 + $0x1718] sm:$0xff]
    %v1973 = vld [vmem:[#allocation16 + $0x1720] sm:$0xff]
    %v1974 = vld [vmem:[#allocation16 + $0x1728] sm:$0xff]
    %v1975 = vld [vmem:[#allocation16 + $0x1730] sm:$0xff]
    %v1976 = vld [vmem:[#allocation16 + $0x1738] sm:$0xff]
    %v1977 = vld [vmem:[#allocation16 + $0x1740] sm:$0xff]
    %v1978 = vld [vmem:[#allocation16 + $0x1748] sm:$0xff]
    %v1979 = vld [vmem:[#allocation16 + $0x1750] sm:$0xff]
    %v1980 = vld [vmem:[#allocation16 + $0x1758] sm:$0xff]
    %v1981 = vld [vmem:[#allocation16 + $0x1760] sm:$0xff]
    %v1982 = vld [vmem:[#allocation16 + $0x1768] sm:$0xff]
    %v1983 = vld [vmem:[#allocation16 + $0x1770] sm:$0xff]
    %v1984 = vld [vmem:[#allocation16 + $0x1778] sm:$0xff]
    %v1985 = vld [vmem:[#allocation16 + $0x1780] sm:$0xff]
    %v1986 = vld [vmem:[#allocation16 + $0x1788] sm:$0xff]
    %v1987 = vld [vmem:[#allocation16 + $0x1790] sm:$0xff]
    %v1988 = vld [vmem:[#allocation16 + $0x1798] sm:$0xff]
    %v1989 = vld [vmem:[#allocation16 + $0x17a0] sm:$0xff]
    %v1990 = vld [vmem:[#allocation16 + $0x17a8] sm:$0xff]
    %v1991 = vld [vmem:[#allocation16 + $0x17b0] sm:$0xff]
    %v1992 = vld [vmem:[#allocation16 + $0x17b8] sm:$0xff]
    %v1993 = vld [vmem:[#allocation16 + $0x17c0] sm:$0xff]
    %v1994 = vld [vmem:[#allocation16 + $0x17c8] sm:$0xff]
    %v1995 = vld [vmem:[#allocation16 + $0x17d0] sm:$0xff]
    %v1996 = vld [vmem:[#allocation16 + $0x17d8] sm:$0xff]
    %v1997 = vld [vmem:[#allocation16 + $0x17e0] sm:$0xff]
    %v1998 = vld [vmem:[#allocation16 + $0x17e8] sm:$0xff]
    %v1999 = vld [vmem:[#allocation16 + $0x17f0] sm:$0xff]
    %v2000 = vld [vmem:[#allocation16 + $0x17f8] sm:$0xff]
    %v2001 = vld [vmem:[#allocation16 + $0x1800] sm:$0xff]
    %v2002 = vld [vmem:[#allocation16 + $0x1808] sm:$0xff]
    %v2003 = vld [vmem:[#allocation16 + $0x1810] sm:$0xff]
    %v2004 = vld [vmem:[#allocation16 + $0x1818] sm:$0xff]
    %v2005 = vld [vmem:[#allocation16 + $0x1820] sm:$0xff]
    %v2006 = vld [vmem:[#allocation16 + $0x1828] sm:$0xff]
    %v2007 = vld [vmem:[#allocation16 + $0x1830] sm:$0xff]
    %v2008 = vld [vmem:[#allocation16 + $0x1838] sm:$0xff]
    %v2009 = vld [vmem:[#allocation16 + $0x1840] sm:$0xff]
    %v2010 = vld [vmem:[#allocation16 + $0x1848] sm:$0xff]
    %v2011 = vld [vmem:[#allocation16 + $0x1850] sm:$0xff]
    %v2012 = vld [vmem:[#allocation16 + $0x1858] sm:$0xff]
    %v2013 = vld [vmem:[#allocation16 + $0x1860] sm:$0xff]
    %v2014 = vld [vmem:[#allocation16 + $0x1868] sm:$0xff]
    %v2015 = vld [vmem:[#allocation16 + $0x1870] sm:$0xff]
    %v2016 = vld [vmem:[#allocation16 + $0x1878] sm:$0xff]
    %v2017 = vld [vmem:[#allocation16 + $0x1880] sm:$0xff]
    %v2018 = vld [vmem:[#allocation16 + $0x1888] sm:$0xff]
    %v2019 = vld [vmem:[#allocation16 + $0x1890] sm:$0xff]
    %v2020 = vld [vmem:[#allocation16 + $0x1898] sm:$0xff]
    %v2021 = vld [vmem:[#allocation16 + $0x18a0] sm:$0xff]
    %v2022 = vld [vmem:[#allocation16 + $0x18a8] sm:$0xff]
    %v2023 = vld [vmem:[#allocation16 + $0x18b0] sm:$0xff]
    %v2024 = vld [vmem:[#allocation16 + $0x18b8] sm:$0xff]
    %v2025 = vld [vmem:[#allocation16 + $0x18c0] sm:$0xff]
    %v2026 = vld [vmem:[#allocation16 + $0x18c8] sm:$0xff]
    %v2027 = vld [vmem:[#allocation16 + $0x18d0] sm:$0xff]
    %v2028 = vld [vmem:[#allocation16 + $0x18d8] sm:$0xff]
    %v2029 = vld [vmem:[#allocation16 + $0x18e0] sm:$0xff]
    %v2030 = vld [vmem:[#allocation16 + $0x18e8] sm:$0xff]
    %v2031 = vld [vmem:[#allocation16 + $0x18f0] sm:$0xff]
    %v2032 = vld [vmem:[#allocation16 + $0x18f8] sm:$0xff]
    %v2033 = vld [vmem:[#allocation21] sm:$0x3]
    %v2034 = vld [vmem:[#allocation18] sm:$0xff]
    %v2035 = vld [vmem:[#allocation18 + $0x8] sm:$0xff]
    %v2036 = vld [vmem:[#allocation18 + $0x10] sm:$0xff]
    %v2037 = vld [vmem:[#allocation18 + $0x18] sm:$0xff]
    %v2038 = vld [vmem:[#allocation18 + $0x20] sm:$0xff]
    %v2039 = vld [vmem:[#allocation18 + $0x28] sm:$0xff]
    %v2040 = vld [vmem:[#allocation18 + $0x30] sm:$0xff]
    %v2041 = vld [vmem:[#allocation18 + $0x38] sm:$0xff]
    %v2042 = vld [vmem:[#allocation18 + $0x40] sm:$0xff]
    %v2043 = vld [vmem:[#allocation18 + $0x48] sm:$0xff]
    %v2044 = vld [vmem:[#allocation18 + $0x50] sm:$0xff]
    %v2045 = vld [vmem:[#allocation18 + $0x58] sm:$0xff]
    %v2046 = vld [vmem:[#allocation18 + $0x60] sm:$0xff]
    %v2047 = vld [vmem:[#allocation18 + $0x68] sm:$0xff]
    %v2048 = vld [vmem:[#allocation18 + $0x70] sm:$0xff]
    %v2049 = vld [vmem:[#allocation18 + $0x78] sm:$0xff]
    %v2050 = vld [vmem:[#allocation18 + $0x80] sm:$0xff]
    %v2051 = vld [vmem:[#allocation18 + $0x88] sm:$0xff]
    %v2052 = vld [vmem:[#allocation18 + $0x90] sm:$0xff]
    %v2053 = vld [vmem:[#allocation18 + $0x98] sm:$0xff]
    %v2054 = vld [vmem:[#allocation18 + $0xa0] sm:$0xff]
    %v2055 = vld [vmem:[#allocation18 + $0xa8] sm:$0xff]
    %v2056 = vld [vmem:[#allocation18 + $0xb0] sm:$0xff]
    %v2057 = vld [vmem:[#allocation18 + $0xb8] sm:$0xff]
    %v2058 = vld [vmem:[#allocation18 + $0xc0] sm:$0xff]
    %v2059 = vld [vmem:[#allocation18 + $0xc8] sm:$0xff]
    %v2060 = vld [vmem:[#allocation18 + $0xd0] sm:$0xff]
    %v2061 = vld [vmem:[#allocation18 + $0xd8] sm:$0xff]
    %v2062 = vld [vmem:[#allocation18 + $0xe0] sm:$0xff]
    %v2063 = vld [vmem:[#allocation18 + $0xe8] sm:$0xff]
    %v2064 = vld [vmem:[#allocation18 + $0xf0] sm:$0xff]
    %v2065 = vld [vmem:[#allocation18 + $0xf8] sm:$0xff]
    %v2066 = vld [vmem:[#allocation18 + $0x100] sm:$0xff]
    %v2067 = vld [vmem:[#allocation18 + $0x108] sm:$0xff]
    %v2068 = vld [vmem:[#allocation18 + $0x110] sm:$0xff]
    %v2069 = vld [vmem:[#allocation18 + $0x118] sm:$0xff]
    %v2070 = vld [vmem:[#allocation18 + $0x120] sm:$0xff]
    %v2071 = vld [vmem:[#allocation18 + $0x128] sm:$0xff]
    %v2072 = vld [vmem:[#allocation18 + $0x130] sm:$0xff]
    %v2073 = vld [vmem:[#allocation18 + $0x138] sm:$0xff]
    %v2074 = vld [vmem:[#allocation18 + $0x140] sm:$0xff]
    %v2075 = vld [vmem:[#allocation18 + $0x148] sm:$0xff]
    %v2076 = vld [vmem:[#allocation18 + $0x150] sm:$0xff]
    %v2077 = vld [vmem:[#allocation18 + $0x158] sm:$0xff]
    %v2078 = vld [vmem:[#allocation18 + $0x160] sm:$0xff]
    %v2079 = vld [vmem:[#allocation18 + $0x168] sm:$0xff]
    %v2080 = vld [vmem:[#allocation18 + $0x170] sm:$0xff]
    %v2081 = vld [vmem:[#allocation18 + $0x178] sm:$0xff]
    %v2082 = vld [vmem:[#allocation18 + $0x180] sm:$0xff]
    %v2083 = vld [vmem:[#allocation18 + $0x188] sm:$0xff]
    %v2084 = vld [vmem:[#allocation18 + $0x190] sm:$0xff]
    %v2085 = vld [vmem:[#allocation18 + $0x198] sm:$0xff]
    %v2086 = vld [vmem:[#allocation18 + $0x1a0] sm:$0xff]
    %v2087 = vld [vmem:[#allocation18 + $0x1a8] sm:$0xff]
    %v2088 = vld [vmem:[#allocation18 + $0x1b0] sm:$0xff]
    %v2089 = vld [vmem:[#allocation18 + $0x1b8] sm:$0xff]
    %v2090 = vld [vmem:[#allocation18 + $0x1c0] sm:$0xff]
    %v2091 = vld [vmem:[#allocation18 + $0x1c8] sm:$0xff]
    %v2092 = vld [vmem:[#allocation18 + $0x1d0] sm:$0xff]
    %v2093 = vld [vmem:[#allocation18 + $0x1d8] sm:$0xff]
    %v2094 = vld [vmem:[#allocation18 + $0x1e0] sm:$0xff]
    %v2095 = vld [vmem:[#allocation18 + $0x1e8] sm:$0xff]
    %v2096 = vld [vmem:[#allocation18 + $0x1f0] sm:$0xff]
    %v2097 = vld [vmem:[#allocation18 + $0x1f8] sm:$0xff]
    %2098 = vmatprep.subr.mxu0 %v2035
    %2099 = vmatpush1.msra.mxu0 %v2034
    %2100 = vmatprep.subr.mxu0 %v2039
    %2101 = vmatpush1.msra.mxu0 %v2038
    %2102 = vmatprep.subr.mxu0 %v2043
    %2103 = vmatpush1.msra.mxu0 %v2042
    %2104 = vmatprep.subr.mxu0 %v2047
    %2105 = vmatpush1.msra.mxu0 %v2046
    %2106 = vmatprep.subr.mxu0 %v2051
    %2107 = vmatpush1.msra.mxu0 %v2050
    %2108 = vmatprep.subr.mxu0 %v2055
    %2109 = vmatpush1.msra.mxu0 %v2054
    %2110 = vmatprep.subr.mxu0 %v2059
    %2111 = vmatpush1.msra.mxu0 %v2058
    %2112 = vmatprep.subr.mxu0 %v2063
    %2113 = vmatpush1.msra.mxu0 %v2062
    %2114 = vmatprep.subr.mxu0 %v2067
    %2115 = vmatpush1.msra.mxu0 %v2066
    %2116 = vmatprep.subr.mxu0 %v2071
    %2117 = vmatpush1.msra.mxu0 %v2070
    %2118 = vmatprep.subr.mxu0 %v2075
    %2119 = vmatpush1.msra.mxu0 %v2074
    %2120 = vmatprep.subr.mxu0 %v2079
    %2121 = vmatpush1.msra.mxu0 %v2078
    %2122 = vmatprep.subr.mxu0 %v2083
    %2123 = vmatpush1.msra.mxu0 %v2082
    %2124 = vmatprep.subr.mxu0 %v2087
    %2125 = vmatpush1.msra.mxu0 %v2086
    %2126 = vmatprep.subr.mxu0 %v2091
    %2127 = vmatpush1.msra.mxu0 %v2090
    %2128 = vmatprep.subr.mxu0 %v2095
    %2129 = vmatpush1.msra.mxu0 %v2094
    %2130 = vmatprep.subr.mxu0 0.0
    %2131 = vmatpush1.msra.mxu0 0.0
    %2132 = vmatprep.subr.mxu0 0.0
    %2133 = vmatpush1.msra.mxu0 0.0
    %2134 = vmatprep.subr.mxu0 0.0
    %2135 = vmatpush1.msra.mxu0 0.0
    %2136 = vmatprep.subr.mxu0 0.0
    %2137 = vmatpush1.msra.mxu0 0.0
    %2138 = vmatprep.subr.mxu0 0.0
    %2139 = vmatpush1.msra.mxu0 0.0
    %2140 = vmatprep.subr.mxu0 0.0
    %2141 = vmatpush1.msra.mxu0 0.0
    %2142 = vmatprep.subr.mxu0 0.0
    %2143 = vmatpush1.msra.mxu0 0.0
    %2144 = vmatprep.subr.mxu0 0.0
    %2145 = vmatpush1.msra.mxu0 0.0
    %2146 = vmatprep.subr.mxu0 0.0
    %2147 = vmatpush1.msra.mxu0 0.0
    %2148 = vmatprep.subr.mxu0 0.0
    %2149 = vmatpush1.msra.mxu0 0.0
    %2150 = vmatprep.subr.mxu0 0.0
    %2151 = vmatpush1.msra.mxu0 0.0
    %2152 = vmatprep.subr.mxu0 0.0
    %2153 = vmatpush1.msra.mxu0 0.0
    %2154 = vmatprep.subr.mxu0 0.0
    %2155 = vmatpush1.msra.mxu0 0.0
    %2156 = vmatprep.subr.mxu0 0.0
    %2157 = vmatpush1.msra.mxu0 0.0
    %2158 = vmatprep.subr.mxu0 0.0
    %2159 = vmatpush1.msra.mxu0 0.0
    %2160 = vmatprep.subr.mxu0 0.0
    %2161 = vmatpush1.msra.mxu0 0.0
    %2162 = vmatprep.mubr.f32.mxu0 0.0
    %2163 = vmatmul.mubr.f32.gmra.mrb[0].mxu0 %v2033
    %v2164 = vpop.f32.mrb[0].mxu0
    %v2165 = vadd.f32 0.0, %v2164
    %v2166 = vpop.f32.mrb[0].mxu0
    %v2167 = vadd.f32 0.0, %v2166
    %2168 = vdwg.mxu0
    %2169 = vmatprep.subr.mxu0 %v2037
    %2170 = vmatpush1.msra.mxu0 %v2036
    %2171 = vmatprep.subr.mxu0 %v2041
    %2172 = vmatpush1.msra.mxu0 %v2040
    %2173 = vmatprep.subr.mxu0 %v2045
    %2174 = vmatpush1.msra.mxu0 %v2044
    %2175 = vmatprep.subr.mxu0 %v2049
    %2176 = vmatpush1.msra.mxu0 %v2048
    %2177 = vmatprep.subr.mxu0 %v2053
    %2178 = vmatpush1.msra.mxu0 %v2052
    %2179 = vmatprep.subr.mxu0 %v2057
    %2180 = vmatpush1.msra.mxu0 %v2056
    %2181 = vmatprep.subr.mxu0 %v2061
    %2182 = vmatpush1.msra.mxu0 %v2060
    %2183 = vmatprep.subr.mxu0 %v2065
    %2184 = vmatpush1.msra.mxu0 %v2064
    %2185 = vmatprep.subr.mxu0 %v2069
    %2186 = vmatpush1.msra.mxu0 %v2068
    %2187 = vmatprep.subr.mxu0 %v2073
    %2188 = vmatpush1.msra.mxu0 %v2072
    %2189 = vmatprep.subr.mxu0 %v2077
    %2190 = vmatpush1.msra.mxu0 %v2076
    %2191 = vmatprep.subr.mxu0 %v2081
    %2192 = vmatpush1.msra.mxu0 %v2080
    %2193 = vmatprep.subr.mxu0 %v2085
    %2194 = vmatpush1.msra.mxu0 %v2084
    %2195 = vmatprep.subr.mxu0 %v2089
    %2196 = vmatpush1.msra.mxu0 %v2088
    %2197 = vmatprep.subr.mxu0 %v2093
    %2198 = vmatpush1.msra.mxu0 %v2092
    %2199 = vmatprep.subr.mxu0 %v2097
    %2200 = vmatpush1.msra.mxu0 %v2096
    %2201 = vmatprep.subr.mxu0 0.0
    %2202 = vmatpush1.msra.mxu0 0.0
    %2203 = vmatprep.subr.mxu0 0.0
    %2204 = vmatpush1.msra.mxu0 0.0
    %2205 = vmatprep.subr.mxu0 0.0
    %2206 = vmatpush1.msra.mxu0 0.0
    %2207 = vmatprep.subr.mxu0 0.0
    %2208 = vmatpush1.msra.mxu0 0.0
    %2209 = vmatprep.subr.mxu0 0.0
    %2210 = vmatpush1.msra.mxu0 0.0
    %2211 = vmatprep.subr.mxu0 0.0
    %2212 = vmatpush1.msra.mxu0 0.0
    %2213 = vmatprep.subr.mxu0 0.0
    %2214 = vmatpush1.msra.mxu0 0.0
    %2215 = vmatprep.subr.mxu0 0.0
    %2216 = vmatpush1.msra.mxu0 0.0
    %2217 = vmatprep.subr.mxu0 0.0
    %2218 = vmatpush1.msra.mxu0 0.0
    %2219 = vmatprep.subr.mxu0 0.0
    %2220 = vmatpush1.msra.mxu0 0.0
    %2221 = vmatprep.subr.mxu0 0.0
    %2222 = vmatpush1.msra.mxu0 0.0
    %2223 = vmatprep.subr.mxu0 0.0
    %2224 = vmatpush1.msra.mxu0 0.0
    %2225 = vmatprep.subr.mxu0 0.0
    %2226 = vmatpush1.msra.mxu0 0.0
    %2227 = vmatprep.subr.mxu0 0.0
    %2228 = vmatpush1.msra.mxu0 0.0
    %2229 = vmatprep.subr.mxu0 0.0
    %2230 = vmatpush1.msra.mxu0 0.0
    %2231 = vmatprep.subr.mxu0 0.0
    %2232 = vmatpush1.msra.mxu0 0.0
    %2233 = vmatprep.mubr.f32.mxu0 0.0
    %2234 = vmatmul.mubr.f32.gmra.mrb[0].mxu0 %v2033
    %v2235 = vpop.f32.mrb[0].mxu0
    %v2236 = vadd.f32 0.0, %v2235
    %v2237 = vpop.f32.mrb[0].mxu0
    %v2238 = vadd.f32 0.0, %v2237
    %2239 = vdwg.mxu0
    %v2244 = vcombine.high %v1229, %v1229
    %v2246 = vunpack.c.l.s4 1983009808
    %v2247 = vunpack.c.0.s8 %v2246
    %v2248 = vlaneseq
    %v2249 = vshrl.u32 %v2248, 7
    %v2250 = vsub.s32 %v2247, %v2249
    %v2251 = vrot.slane %v1229, %v2250
    %v2253 = vunpack.c.l.s4 1983009808
    %v2254 = vunpack.c.0.s8 %v2253
    %v2255 = vlaneseq
    %v2256 = vshrl.u32 %v2255, 7
    %v2257 = vsub.s32 %v2254, %v2256
    %v2258 = vrot.slane %v2244, %v2257
    %v2259 = vcombine.high %v2251, %v2251
    %v2260 = vcombine.high %v2258, %v2258
    %v2261 = vcombine.high %v1230, %v1230
    %v2263 = vunpack.c.l.s4 1983009808
    %v2264 = vunpack.c.0.s8 %v2263
    %v2265 = vlaneseq
    %v2266 = vshrl.u32 %v2265, 7
    %v2267 = vsub.s32 %v2264, %v2266
    %v2268 = vrot.slane %v1230, %v2267
    %v2270 = vunpack.c.l.s4 1983009808
    %v2271 = vunpack.c.0.s8 %v2270
    %v2272 = vlaneseq
    %v2273 = vshrl.u32 %v2272, 7
    %v2274 = vsub.s32 %v2271, %v2273
    %v2275 = vrot.slane %v2261, %v2274
    %v2276 = vcombine.high %v2268, %v2268
    %v2277 = vcombine.high %v2275, %v2275
    %v2278 = vcombine.high %v1231, %v1231
    %v2280 = vunpack.c.l.s4 1983009808
    %v2281 = vunpack.c.0.s8 %v2280
    %v2282 = vlaneseq
    %v2283 = vshrl.u32 %v2282, 7
    %v2284 = vsub.s32 %v2281, %v2283
    %v2285 = vrot.slane %v1231, %v2284
    %v2287 = vunpack.c.l.s4 1983009808
    %v2288 = vunpack.c.0.s8 %v2287
    %v2289 = vlaneseq
    %v2290 = vshrl.u32 %v2289, 7
    %v2291 = vsub.s32 %v2288, %v2290
    %v2292 = vrot.slane %v2278, %v2291
    %v2293 = vcombine.high %v2285, %v2285
    %v2294 = vcombine.high %v2292, %v2292
    %v2296 = vunpack.c.l.s4 1983009808
    %v2297 = vunpack.c.0.s8 %v2296
    %v2298 = vlaneseq
    %v2299 = vshrl.u32 %v2298, 7
    %v2300 = vsub.s32 %v2297, %v2299
    %v2301 = vrot.slane %v1232, %v2300
    %v2314 = vsel %vm525, %v2301, 0
    %2316 = vmatprep.subr.mxu0 %v1234
    %2317 = vmatpush1.msra.mxu0 %v1233
    %2318 = vmatprep.subr.mxu0 %v1238
    %2319 = vmatpush1.msra.mxu0 %v1237
    %2320 = vmatprep.subr.mxu0 %v1242
    %2321 = vmatpush1.msra.mxu0 %v1241
    %2322 = vmatprep.subr.mxu0 %v1246
    %2323 = vmatpush1.msra.mxu0 %v1245
    %2324 = vmatprep.subr.mxu0 %v1250
    %2325 = vmatpush1.msra.mxu0 %v1249
    %2326 = vmatprep.subr.mxu0 %v1254
    %2327 = vmatpush1.msra.mxu0 %v1253
    %2328 = vmatprep.subr.mxu0 %v1258
    %2329 = vmatpush1.msra.mxu0 %v1257
    %2330 = vmatprep.subr.mxu0 %v1262
    %2331 = vmatpush1.msra.mxu0 %v1261
    %2332 = vmatprep.subr.mxu0 %v1266
    %2333 = vmatpush1.msra.mxu0 %v1265
    %2334 = vmatprep.subr.mxu0 %v1270
    %2335 = vmatpush1.msra.mxu0 %v1269
    %2336 = vmatprep.subr.mxu0 %v1274
    %2337 = vmatpush1.msra.mxu0 %v1273
    %2338 = vmatprep.subr.mxu0 %v1278
    %2339 = vmatpush1.msra.mxu0 %v1277
    %2340 = vmatprep.subr.mxu0 %v1282
    %2341 = vmatpush1.msra.mxu0 %v1281
    %2342 = vmatprep.subr.mxu0 %v1286
    %2343 = vmatpush1.msra.mxu0 %v1285
    %2344 = vmatprep.subr.mxu0 %v1290
    %2345 = vmatpush1.msra.mxu0 %v1289
    %2346 = vmatprep.subr.mxu0 %v1294
    %2347 = vmatpush1.msra.mxu0 %v1293
    %2348 = vmatprep.subr.mxu0 %v1298
    %2349 = vmatpush1.msra.mxu0 %v1297
    %2350 = vmatprep.subr.mxu0 %v1302
    %2351 = vmatpush1.msra.mxu0 %v1301
    %2352 = vmatprep.subr.mxu0 %v1306
    %2353 = vmatpush1.msra.mxu0 %v1305
    %2354 = vmatprep.subr.mxu0 %v1310
    %2355 = vmatpush1.msra.mxu0 %v1309
    %2356 = vmatprep.subr.mxu0 %v1314
    %2357 = vmatpush1.msra.mxu0 %v1313
    %2358 = vmatprep.subr.mxu0 %v1318
    %2359 = vmatpush1.msra.mxu0 %v1317
    %2360 = vmatprep.subr.mxu0 %v1322
    %2361 = vmatpush1.msra.mxu0 %v1321
    %2362 = vmatprep.subr.mxu0 %v1326
    %2363 = vmatpush1.msra.mxu0 %v1325
    %2364 = vmatprep.subr.mxu0 %v1330
    %2365 = vmatpush1.msra.mxu0 %v1329
    %2366 = vmatprep.subr.mxu0 %v1334
    %2367 = vmatpush1.msra.mxu0 %v1333
    %2368 = vmatprep.subr.mxu0 %v1338
    %2369 = vmatpush1.msra.mxu0 %v1337
    %2370 = vmatprep.subr.mxu0 %v1342
    %2371 = vmatpush1.msra.mxu0 %v1341
    %2372 = vmatprep.subr.mxu0 %v1346
    %2373 = vmatpush1.msra.mxu0 %v1345
    %2374 = vmatprep.subr.mxu0 %v1350
    %2375 = vmatpush1.msra.mxu0 %v1349
    %2376 = vmatprep.subr.mxu0 %v1354
    %2377 = vmatpush1.msra.mxu0 %v1353
    %2378 = vmatprep.subr.mxu0 %v1358
    %2379 = vmatpush1.msra.mxu0 %v1357
    %2380 = vmatprep.mubr.f32.mxu0 %v2259
    %2381 = vmatmul.mubr.f32.gmra.mrb[0].mxu0 %v2251
    %v2382 = vpop.f32.mrb[0].mxu0
    %v2383 = vadd.f32 %v2165, %v2382
    %v2384 = vpop.f32.mrb[0].mxu0
    %v2385 = vadd.f32 %v2167, %v2384
    %2386 = vdwg.mxu0
    %2387 = vmatprep.subr.mxu0 %v1362
    %2388 = vmatpush1.msra.mxu0 %v1361
    %2389 = vmatprep.subr.mxu0 %v1366
    %2390 = vmatpush1.msra.mxu0 %v1365
    %2391 = vmatprep.subr.mxu0 %v1370
    %2392 = vmatpush1.msra.mxu0 %v1369
    %2393 = vmatprep.subr.mxu0 %v1374
    %2394 = vmatpush1.msra.mxu0 %v1373
    %2395 = vmatprep.subr.mxu0 %v1378
    %2396 = vmatpush1.msra.mxu0 %v1377
    %2397 = vmatprep.subr.mxu0 %v1382
    %2398 = vmatpush1.msra.mxu0 %v1381
    %2399 = vmatprep.subr.mxu0 %v1386
    %2400 = vmatpush1.msra.mxu0 %v1385
    %2401 = vmatprep.subr.mxu0 %v1390
    %2402 = vmatpush1.msra.mxu0 %v1389
    %2403 = vmatprep.subr.mxu0 %v1394
    %2404 = vmatpush1.msra.mxu0 %v1393
    %2405 = vmatprep.subr.mxu0 %v1398
    %2406 = vmatpush1.msra.mxu0 %v1397
    %2407 = vmatprep.subr.mxu0 %v1402
    %2408 = vmatpush1.msra.mxu0 %v1401
    %2409 = vmatprep.subr.mxu0 %v1406
    %2410 = vmatpush1.msra.mxu0 %v1405
    %2411 = vmatprep.subr.mxu0 %v1410
    %2412 = vmatpush1.msra.mxu0 %v1409
    %2413 = vmatprep.subr.mxu0 %v1414
    %2414 = vmatpush1.msra.mxu0 %v1413
    %2415 = vmatprep.subr.mxu0 %v1418
    %2416 = vmatpush1.msra.mxu0 %v1417
    %2417 = vmatprep.subr.mxu0 %v1422
    %2418 = vmatpush1.msra.mxu0 %v1421
    %2419 = vmatprep.subr.mxu0 %v1426
    %2420 = vmatpush1.msra.mxu0 %v1425
    %2421 = vmatprep.subr.mxu0 %v1430
    %2422 = vmatpush1.msra.mxu0 %v1429
    %2423 = vmatprep.subr.mxu0 %v1434
    %2424 = vmatpush1.msra.mxu0 %v1433
    %2425 = vmatprep.subr.mxu0 %v1438
    %2426 = vmatpush1.msra.mxu0 %v1437
    %2427 = vmatprep.subr.mxu0 %v1442
    %2428 = vmatpush1.msra.mxu0 %v1441
    %2429 = vmatprep.subr.mxu0 %v1446
    %2430 = vmatpush1.msra.mxu0 %v1445
    %2431 = vmatprep.subr.mxu0 %v1450
    %2432 = vmatpush1.msra.mxu0 %v1449
    %2433 = vmatprep.subr.mxu0 %v1454
    %2434 = vmatpush1.msra.mxu0 %v1453
    %2435 = vmatprep.subr.mxu0 %v1458
    %2436 = vmatpush1.msra.mxu0 %v1457
    %2437 = vmatprep.subr.mxu0 %v1462
    %2438 = vmatpush1.msra.mxu0 %v1461
    %2439 = vmatprep.subr.mxu0 %v1466
    %2440 = vmatpush1.msra.mxu0 %v1465
    %2441 = vmatprep.subr.mxu0 %v1470
    %2442 = vmatpush1.msra.mxu0 %v1469
    %2443 = vmatprep.subr.mxu0 %v1474
    %2444 = vmatpush1.msra.mxu0 %v1473
    %2445 = vmatprep.subr.mxu0 %v1478
    %2446 = vmatpush1.msra.mxu0 %v1477
    %2447 = vmatprep.subr.mxu0 %v1482
    %2448 = vmatpush1.msra.mxu0 %v1481
    %2449 = vmatprep.subr.mxu0 %v1486
    %2450 = vmatpush1.msra.mxu0 %v1485
    %2451 = vmatprep.mubr.f32.mxu0 %v2260
    %2452 = vmatmul.mubr.f32.gmra.mrb[0].mxu0 %v2258
    %v2453 = vpop.f32.mrb[0].mxu0
    %v2454 = vadd.f32 %v2383, %v2453
    %v2455 = vpop.f32.mrb[0].mxu0
    %v2456 = vadd.f32 %v2385, %v2455
    %2457 = vdwg.mxu0
    %2458 = vmatprep.subr.mxu0 %v1490
    %2459 = vmatpush1.msra.mxu0 %v1489
    %2460 = vmatprep.subr.mxu0 %v1494
    %2461 = vmatpush1.msra.mxu0 %v1493
    %2462 = vmatprep.subr.mxu0 %v1498
    %2463 = vmatpush1.msra.mxu0 %v1497
    %2464 = vmatprep.subr.mxu0 %v1502
    %2465 = vmatpush1.msra.mxu0 %v1501
    %2466 = vmatprep.subr.mxu0 %v1506
    %2467 = vmatpush1.msra.mxu0 %v1505
    %2468 = vmatprep.subr.mxu0 %v1510
    %2469 = vmatpush1.msra.mxu0 %v1509
    %2470 = vmatprep.subr.mxu0 %v1514
    %2471 = vmatpush1.msra.mxu0 %v1513
    %2472 = vmatprep.subr.mxu0 %v1518
    %2473 = vmatpush1.msra.mxu0 %v1517
    %2474 = vmatprep.subr.mxu0 %v1522
    %2475 = vmatpush1.msra.mxu0 %v1521
    %2476 = vmatprep.subr.mxu0 %v1526
    %2477 = vmatpush1.msra.mxu0 %v1525
    %2478 = vmatprep.subr.mxu0 %v1530
    %2479 = vmatpush1.msra.mxu0 %v1529
    %2480 = vmatprep.subr.mxu0 %v1534
    %2481 = vmatpush1.msra.mxu0 %v1533
    %2482 = vmatprep.subr.mxu0 %v1538
    %2483 = vmatpush1.msra.mxu0 %v1537
    %2484 = vmatprep.subr.mxu0 %v1542
    %2485 = vmatpush1.msra.mxu0 %v1541
    %2486 = vmatprep.subr.mxu0 %v1546
    %2487 = vmatpush1.msra.mxu0 %v1545
    %2488 = vmatprep.subr.mxu0 %v1550
    %2489 = vmatpush1.msra.mxu0 %v1549
    %2490 = vmatprep.subr.mxu0 %v1554
    %2491 = vmatpush1.msra.mxu0 %v1553
    %2492 = vmatprep.subr.mxu0 %v1558
    %2493 = vmatpush1.msra.mxu0 %v1557
    %2494 = vmatprep.subr.mxu0 %v1562
    %2495 = vmatpush1.msra.mxu0 %v1561
    %2496 = vmatprep.subr.mxu0 %v1566
    %2497 = vmatpush1.msra.mxu0 %v1565
    %2498 = vmatprep.subr.mxu0 %v1570
    %2499 = vmatpush1.msra.mxu0 %v1569
    %2500 = vmatprep.subr.mxu0 %v1574
    %2501 = vmatpush1.msra.mxu0 %v1573
    %2502 = vmatprep.subr.mxu0 %v1578
    %2503 = vmatpush1.msra.mxu0 %v1577
    %2504 = vmatprep.subr.mxu0 %v1582
    %2505 = vmatpush1.msra.mxu0 %v1581
    %2506 = vmatprep.subr.mxu0 %v1586
    %2507 = vmatpush1.msra.mxu0 %v1585
    %2508 = vmatprep.subr.mxu0 %v1590
    %2509 = vmatpush1.msra.mxu0 %v1589
    %2510 = vmatprep.subr.mxu0 %v1594
    %2511 = vmatpush1.msra.mxu0 %v1593
    %2512 = vmatprep.subr.mxu0 %v1598
    %2513 = vmatpush1.msra.mxu0 %v1597
    %2514 = vmatprep.subr.mxu0 %v1602
    %2515 = vmatpush1.msra.mxu0 %v1601
    %2516 = vmatprep.subr.mxu0 %v1606
    %2517 = vmatpush1.msra.mxu0 %v1605
    %2518 = vmatprep.subr.mxu0 %v1610
    %2519 = vmatpush1.msra.mxu0 %v1609
    %2520 = vmatprep.subr.mxu0 %v1614
    %2521 = vmatpush1.msra.mxu0 %v1613
    %2522 = vmatprep.mubr.f32.mxu0 %v2276
    %2523 = vmatmul.mubr.f32.gmra.mrb[0].mxu0 %v2268
    %v2524 = vpop.f32.mrb[0].mxu0
    %v2525 = vadd.f32 %v2454, %v2524
    %v2526 = vpop.f32.mrb[0].mxu0
    %v2527 = vadd.f32 %v2456, %v2526
    %2528 = vdwg.mxu0
    %2529 = vmatprep.subr.mxu0 %v1618
    %2530 = vmatpush1.msra.mxu0 %v1617
    %2531 = vmatprep.subr.mxu0 %v1622
    %2532 = vmatpush1.msra.mxu0 %v1621
    %2533 = vmatprep.subr.mxu0 %v1626
    %2534 = vmatpush1.msra.mxu0 %v1625
    %2535 = vmatprep.subr.mxu0 %v1630
    %2536 = vmatpush1.msra.mxu0 %v1629
    %2537 = vmatprep.subr.mxu0 %v1634
    %2538 = vmatpush1.msra.mxu0 %v1633
    %2539 = vmatprep.subr.mxu0 %v1638
    %2540 = vmatpush1.msra.mxu0 %v1637
    %2541 = vmatprep.subr.mxu0 %v1642
    %2542 = vmatpush1.msra.mxu0 %v1641
    %2543 = vmatprep.subr.mxu0 %v1646
    %2544 = vmatpush1.msra.mxu0 %v1645
    %2545 = vmatprep.subr.mxu0 %v1650
    %2546 = vmatpush1.msra.mxu0 %v1649
    %2547 = vmatprep.subr.mxu0 %v1654
    %2548 = vmatpush1.msra.mxu0 %v1653
    %2549 = vmatprep.subr.mxu0 %v1658
    %2550 = vmatpush1.msra.mxu0 %v1657
    %2551 = vmatprep.subr.mxu0 %v1662
    %2552 = vmatpush1.msra.mxu0 %v1661
    %2553 = vmatprep.subr.mxu0 %v1666
    %2554 = vmatpush1.msra.mxu0 %v1665
    %2555 = vmatprep.subr.mxu0 %v1670
    %2556 = vmatpush1.msra.mxu0 %v1669
    %2557 = vmatprep.subr.mxu0 %v1674
    %2558 = vmatpush1.msra.mxu0 %v1673
    %2559 = vmatprep.subr.mxu0 %v1678
    %2560 = vmatpush1.msra.mxu0 %v1677
    %2561 = vmatprep.subr.mxu0 %v1682
    %2562 = vmatpush1.msra.mxu0 %v1681
    %2563 = vmatprep.subr.mxu0 %v1686
    %2564 = vmatpush1.msra.mxu0 %v1685
    %2565 = vmatprep.subr.mxu0 %v1690
    %2566 = vmatpush1.msra.mxu0 %v1689
    %2567 = vmatprep.subr.mxu0 %v1694
    %2568 = vmatpush1.msra.mxu0 %v1693
    %2569 = vmatprep.subr.mxu0 %v1698
    %2570 = vmatpush1.msra.mxu0 %v1697
    %2571 = vmatprep.subr.mxu0 %v1702
    %2572 = vmatpush1.msra.mxu0 %v1701
    %2573 = vmatprep.subr.mxu0 %v1706
    %2574 = vmatpush1.msra.mxu0 %v1705
    %2575 = vmatprep.subr.mxu0 %v1710
    %2576 = vmatpush1.msra.mxu0 %v1709
    %2577 = vmatprep.subr.mxu0 %v1714
    %2578 = vmatpush1.msra.mxu0 %v1713
    %2579 = vmatprep.subr.mxu0 %v1718
    %2580 = vmatpush1.msra.mxu0 %v1717
    %2581 = vmatprep.subr.mxu0 %v1722
    %2582 = vmatpush1.msra.mxu0 %v1721
    %2583 = vmatprep.subr.mxu0 %v1726
    %2584 = vmatpush1.msra.mxu0 %v1725
    %2585 = vmatprep.subr.mxu0 %v1730
    %2586 = vmatpush1.msra.mxu0 %v1729
    %2587 = vmatprep.subr.mxu0 %v1734
    %2588 = vmatpush1.msra.mxu0 %v1733
    %2589 = vmatprep.subr.mxu0 %v1738
    %2590 = vmatpush1.msra.mxu0 %v1737
    %2591 = vmatprep.subr.mxu0 %v1742
    %2592 = vmatpush1.msra.mxu0 %v1741
    %2593 = vmatprep.mubr.f32.mxu0 %v2277
    %2594 = vmatmul.mubr.f32.gmra.mrb[0].mxu0 %v2275
    %v2595 = vpop.f32.mrb[0].mxu0
    %v2596 = vadd.f32 %v2525, %v2595
    %v2597 = vpop.f32.mrb[0].mxu0
    %v2598 = vadd.f32 %v2527, %v2597
    %2599 = vdwg.mxu0
    %2600 = vmatprep.subr.mxu0 %v1746
    %2601 = vmatpush1.msra.mxu0 %v1745
    %2602 = vmatprep.subr.mxu0 %v1750
    %2603 = vmatpush1.msra.mxu0 %v1749
    %2604 = vmatprep.subr.mxu0 %v1754
    %2605 = vmatpush1.msra.mxu0 %v1753
    %2606 = vmatprep.subr.mxu0 %v1758
    %2607 = vmatpush1.msra.mxu0 %v1757
    %2608 = vmatprep.subr.mxu0 %v1762
    %2609 = vmatpush1.msra.mxu0 %v1761
    %2610 = vmatprep.subr.mxu0 %v1766
    %2611 = vmatpush1.msra.mxu0 %v1765
    %2612 = vmatprep.subr.mxu0 %v1770
    %2613 = vmatpush1.msra.mxu0 %v1769
    %2614 = vmatprep.subr.mxu0 %v1774
    %2615 = vmatpush1.msra.mxu0 %v1773
    %2616 = vmatprep.subr.mxu0 %v1778
    %2617 = vmatpush1.msra.mxu0 %v1777
    %2618 = vmatprep.subr.mxu0 %v1782
    %2619 = vmatpush1.msra.mxu0 %v1781
    %2620 = vmatprep.subr.mxu0 %v1786
    %2621 = vmatpush1.msra.mxu0 %v1785
    %2622 = vmatprep.subr.mxu0 %v1790
    %2623 = vmatpush1.msra.mxu0 %v1789
    %2624 = vmatprep.subr.mxu0 %v1794
    %2625 = vmatpush1.msra.mxu0 %v1793
    %2626 = vmatprep.subr.mxu0 %v1798
    %2627 = vmatpush1.msra.mxu0 %v1797
    %2628 = vmatprep.subr.mxu0 %v1802
    %2629 = vmatpush1.msra.mxu0 %v1801
    %2630 = vmatprep.subr.mxu0 %v1806
    %2631 = vmatpush1.msra.mxu0 %v1805
    %2632 = vmatprep.subr.mxu0 %v1810
    %2633 = vmatpush1.msra.mxu0 %v1809
    %2634 = vmatprep.subr.mxu0 %v1814
    %2635 = vmatpush1.msra.mxu0 %v1813
    %2636 = vmatprep.subr.mxu0 %v1818
    %2637 = vmatpush1.msra.mxu0 %v1817
    %2638 = vmatprep.subr.mxu0 %v1822
    %2639 = vmatpush1.msra.mxu0 %v1821
    %2640 = vmatprep.subr.mxu0 %v1826
    %2641 = vmatpush1.msra.mxu0 %v1825
    %2642 = vmatprep.subr.mxu0 %v1830
    %2643 = vmatpush1.msra.mxu0 %v1829
    %2644 = vmatprep.subr.mxu0 %v1834
    %2645 = vmatpush1.msra.mxu0 %v1833
    %2646 = vmatprep.subr.mxu0 %v1838
    %2647 = vmatpush1.msra.mxu0 %v1837
    %2648 = vmatprep.subr.mxu0 %v1842
    %2649 = vmatpush1.msra.mxu0 %v1841
    %2650 = vmatprep.subr.mxu0 %v1846
    %2651 = vmatpush1.msra.mxu0 %v1845
    %2652 = vmatprep.subr.mxu0 %v1850
    %2653 = vmatpush1.msra.mxu0 %v1849
    %2654 = vmatprep.subr.mxu0 %v1854
    %2655 = vmatpush1.msra.mxu0 %v1853
    %2656 = vmatprep.subr.mxu0 %v1858
    %2657 = vmatpush1.msra.mxu0 %v1857
    %2658 = vmatprep.subr.mxu0 %v1862
    %2659 = vmatpush1.msra.mxu0 %v1861
    %2660 = vmatprep.subr.mxu0 %v1866
    %2661 = vmatpush1.msra.mxu0 %v1865
    %2662 = vmatprep.subr.mxu0 %v1870
    %2663 = vmatpush1.msra.mxu0 %v1869
    %2664 = vmatprep.mubr.f32.mxu0 %v2293
    %2665 = vmatmul.mubr.f32.gmra.mrb[0].mxu0 %v2285
    %v2666 = vpop.f32.mrb[0].mxu0
    %v2667 = vadd.f32 %v2596, %v2666
    %v2668 = vpop.f32.mrb[0].mxu0
    %v2669 = vadd.f32 %v2598, %v2668
    %2670 = vdwg.mxu0
    %2671 = vmatprep.subr.mxu0 %v1874
    %2672 = vmatpush1.msra.mxu0 %v1873
    %2673 = vmatprep.subr.mxu0 %v1878
    %2674 = vmatpush1.msra.mxu0 %v1877
    %2675 = vmatprep.subr.mxu0 %v1882
    %2676 = vmatpush1.msra.mxu0 %v1881
    %2677 = vmatprep.subr.mxu0 %v1886
    %2678 = vmatpush1.msra.mxu0 %v1885
    %2679 = vmatprep.subr.mxu0 %v1890
    %2680 = vmatpush1.msra.mxu0 %v1889
    %2681 = vmatprep.subr.mxu0 %v1894
    %2682 = vmatpush1.msra.mxu0 %v1893
    %2683 = vmatprep.subr.mxu0 %v1898
    %2684 = vmatpush1.msra.mxu0 %v1897
    %2685 = vmatprep.subr.mxu0 %v1902
    %2686 = vmatpush1.msra.mxu0 %v1901
    %2687 = vmatprep.subr.mxu0 %v1906
    %2688 = vmatpush1.msra.mxu0 %v1905
    %2689 = vmatprep.subr.mxu0 %v1910
    %2690 = vmatpush1.msra.mxu0 %v1909
    %2691 = vmatprep.subr.mxu0 %v1914
    %2692 = vmatpush1.msra.mxu0 %v1913
    %2693 = vmatprep.subr.mxu0 %v1918
    %2694 = vmatpush1.msra.mxu0 %v1917
    %2695 = vmatprep.subr.mxu0 %v1922
    %2696 = vmatpush1.msra.mxu0 %v1921
    %2697 = vmatprep.subr.mxu0 %v1926
    %2698 = vmatpush1.msra.mxu0 %v1925
    %2699 = vmatprep.subr.mxu0 %v1930
    %2700 = vmatpush1.msra.mxu0 %v1929
    %2701 = vmatprep.subr.mxu0 %v1934
    %2702 = vmatpush1.msra.mxu0 %v1933
    %2703 = vmatprep.subr.mxu0 %v1938
    %2704 = vmatpush1.msra.mxu0 %v1937
    %2705 = vmatprep.subr.mxu0 %v1942
    %2706 = vmatpush1.msra.mxu0 %v1941
    %2707 = vmatprep.subr.mxu0 %v1946
    %2708 = vmatpush1.msra.mxu0 %v1945
    %2709 = vmatprep.subr.mxu0 %v1950
    %2710 = vmatpush1.msra.mxu0 %v1949
    %2711 = vmatprep.subr.mxu0 %v1954
    %2712 = vmatpush1.msra.mxu0 %v1953
    %2713 = vmatprep.subr.mxu0 %v1958
    %2714 = vmatpush1.msra.mxu0 %v1957
    %2715 = vmatprep.subr.mxu0 %v1962
    %2716 = vmatpush1.msra.mxu0 %v1961
    %2717 = vmatprep.subr.mxu0 %v1966
    %2718 = vmatpush1.msra.mxu0 %v1965
    %2719 = vmatprep.subr.mxu0 %v1970
    %2720 = vmatpush1.msra.mxu0 %v1969
    %2721 = vmatprep.subr.mxu0 %v1974
    %2722 = vmatpush1.msra.mxu0 %v1973
    %2723 = vmatprep.subr.mxu0 %v1978
    %2724 = vmatpush1.msra.mxu0 %v1977
    %2725 = vmatprep.subr.mxu0 %v1982
    %2726 = vmatpush1.msra.mxu0 %v1981
    %2727 = vmatprep.subr.mxu0 %v1986
    %2728 = vmatpush1.msra.mxu0 %v1985
    %2729 = vmatprep.subr.mxu0 %v1990
    %2730 = vmatpush1.msra.mxu0 %v1989
    %2731 = vmatprep.subr.mxu0 %v1994
    %2732 = vmatpush1.msra.mxu0 %v1993
    %2733 = vmatprep.subr.mxu0 %v1998
    %2734 = vmatpush1.msra.mxu0 %v1997
    %2735 = vmatprep.mubr.f32.mxu0 %v2294
    %2736 = vmatmul.mubr.f32.gmra.mrb[0].mxu0 %v2292
    %v2737 = vpop.f32.mrb[0].mxu0
    %v2738 = vadd.f32 %v2667, %v2737
    %v2739 = vpop.f32.mrb[0].mxu0
    %v2740 = vadd.f32 %v2669, %v2739
    %2741 = vdwg.mxu0
    %2742 = vmatprep.subr.mxu0 %v2002
    %2743 = vmatpush1.msra.mxu0 %v2001
    %2744 = vmatprep.subr.mxu0 %v2006
    %2745 = vmatpush1.msra.mxu0 %v2005
    %2746 = vmatprep.subr.mxu0 %v2010
    %2747 = vmatpush1.msra.mxu0 %v2009
    %2748 = vmatprep.subr.mxu0 %v2014
    %2749 = vmatpush1.msra.mxu0 %v2013
    %2750 = vmatprep.subr.mxu0 %v2018
    %2751 = vmatpush1.msra.mxu0 %v2017
    %2752 = vmatprep.subr.mxu0 %v2022
    %2753 = vmatpush1.msra.mxu0 %v2021
    %2754 = vmatprep.subr.mxu0 %v2026
    %2755 = vmatpush1.msra.mxu0 %v2025
    %2756 = vmatprep.subr.mxu0 %v2030
    %2757 = vmatpush1.msra.mxu0 %v2029
    %2758 = vmatprep.subr.mxu0 0.0
    %2759 = vmatpush1.msra.mxu0 0.0
    %2760 = vmatprep.subr.mxu0 0.0
    %2761 = vmatpush1.msra.mxu0 0.0
    %2762 = vmatprep.subr.mxu0 0.0
    %2763 = vmatpush1.msra.mxu0 0.0
    %2764 = vmatprep.subr.mxu0 0.0
    %2765 = vmatpush1.msra.mxu0 0.0
    %2766 = vmatprep.subr.mxu0 0.0
    %2767 = vmatpush1.msra.mxu0 0.0
    %2768 = vmatprep.subr.mxu0 0.0
    %2769 = vmatpush1.msra.mxu0 0.0
    %2770 = vmatprep.subr.mxu0 0.0
    %2771 = vmatpush1.msra.mxu0 0.0
    %2772 = vmatprep.subr.mxu0 0.0
    %2773 = vmatpush1.msra.mxu0 0.0
    %2774 = vmatprep.subr.mxu0 0.0
    %2775 = vmatpush1.msra.mxu0 0.0
    %2776 = vmatprep.subr.mxu0 0.0
    %2777 = vmatpush1.msra.mxu0 0.0
    %2778 = vmatprep.subr.mxu0 0.0
    %2779 = vmatpush1.msra.mxu0 0.0
    %2780 = vmatprep.subr.mxu0 0.0
    %2781 = vmatpush1.msra.mxu0 0.0
    %2782 = vmatprep.subr.mxu0 0.0
    %2783 = vmatpush1.msra.mxu0 0.0
    %2784 = vmatprep.subr.mxu0 0.0
    %2785 = vmatpush1.msra.mxu0 0.0
    %2786 = vmatprep.subr.mxu0 0.0
    %2787 = vmatpush1.msra.mxu0 0.0
    %2788 = vmatprep.subr.mxu0 0.0
    %2789 = vmatpush1.msra.mxu0 0.0
    %2790 = vmatprep.subr.mxu0 0.0
    %2791 = vmatpush1.msra.mxu0 0.0
    %2792 = vmatprep.subr.mxu0 0.0
    %2793 = vmatpush1.msra.mxu0 0.0
    %2794 = vmatprep.subr.mxu0 0.0
    %2795 = vmatpush1.msra.mxu0 0.0
    %2796 = vmatprep.subr.mxu0 0.0
    %2797 = vmatpush1.msra.mxu0 0.0
    %2798 = vmatprep.subr.mxu0 0.0
    %2799 = vmatpush1.msra.mxu0 0.0
    %2800 = vmatprep.subr.mxu0 0.0
    %2801 = vmatpush1.msra.mxu0 0.0
    %2802 = vmatprep.subr.mxu0 0.0
    %2803 = vmatpush1.msra.mxu0 0.0
    %2804 = vmatprep.subr.mxu0 0.0
    %2805 = vmatpush1.msra.mxu0 0.0
    %2806 = vmatprep.mubr.f32.mxu0 0.0
    %2807 = vmatmul.mubr.f32.gmra.mrb[0].mxu0 %v2314
    %v2808 = vpop.f32.mrb[0].mxu0
    %v2809 = vadd.f32 %v2738, %v2808
    %v2810 = vpop.f32.mrb[0].mxu0
    %v2811 = vadd.f32 %v2740, %v2810
    %2812 = vdwg.mxu0
    %2813 = vmatprep.subr.mxu0 %v1236
    %2814 = vmatpush1.msra.mxu0 %v1235
    %2815 = vmatprep.subr.mxu0 %v1240
    %2816 = vmatpush1.msra.mxu0 %v1239
    %2817 = vmatprep.subr.mxu0 %v1244
    %2818 = vmatpush1.msra.mxu0 %v1243
    %2819 = vmatprep.subr.mxu0 %v1248
    %2820 = vmatpush1.msra.mxu0 %v1247
    %2821 = vmatprep.subr.mxu0 %v1252
    %2822 = vmatpush1.msra.mxu0 %v1251
    %2823 = vmatprep.subr.mxu0 %v1256
    %2824 = vmatpush1.msra.mxu0 %v1255
    %2825 = vmatprep.subr.mxu0 %v1260
    %2826 = vmatpush1.msra.mxu0 %v1259
    %2827 = vmatprep.subr.mxu0 %v1264
    %2828 = vmatpush1.msra.mxu0 %v1263
    %2829 = vmatprep.subr.mxu0 %v1268
    %2830 = vmatpush1.msra.mxu0 %v1267
    %2831 = vmatprep.subr.mxu0 %v1272
    %2832 = vmatpush1.msra.mxu0 %v1271
    %2833 = vmatprep.subr.mxu0 %v1276
    %2834 = vmatpush1.msra.mxu0 %v1275
    %2835 = vmatprep.subr.mxu0 %v1280
    %2836 = vmatpush1.msra.mxu0 %v1279
    %2837 = vmatprep.subr.mxu0 %v1284
    %2838 = vmatpush1.msra.mxu0 %v1283
    %2839 = vmatprep.subr.mxu0 %v1288
    %2840 = vmatpush1.msra.mxu0 %v1287
    %2841 = vmatprep.subr.mxu0 %v1292
    %2842 = vmatpush1.msra.mxu0 %v1291
    %2843 = vmatprep.subr.mxu0 %v1296
    %2844 = vmatpush1.msra.mxu0 %v1295
    %2845 = vmatprep.subr.mxu0 %v1300
    %2846 = vmatpush1.msra.mxu0 %v1299
    %2847 = vmatprep.subr.mxu0 %v1304
    %2848 = vmatpush1.msra.mxu0 %v1303
    %2849 = vmatprep.subr.mxu0 %v1308
    %2850 = vmatpush1.msra.mxu0 %v1307
    %2851 = vmatprep.subr.mxu0 %v1312
    %2852 = vmatpush1.msra.mxu0 %v1311
    %2853 = vmatprep.subr.mxu0 %v1316
    %2854 = vmatpush1.msra.mxu0 %v1315
    %2855 = vmatprep.subr.mxu0 %v1320
    %2856 = vmatpush1.msra.mxu0 %v1319
    %2857 = vmatprep.subr.mxu0 %v1324
    %2858 = vmatpush1.msra.mxu0 %v1323
    %2859 = vmatprep.subr.mxu0 %v1328
    %2860 = vmatpush1.msra.mxu0 %v1327
    %2861 = vmatprep.subr.mxu0 %v1332
    %2862 = vmatpush1.msra.mxu0 %v1331
    %2863 = vmatprep.subr.mxu0 %v1336
    %2864 = vmatpush1.msra.mxu0 %v1335
    %2865 = vmatprep.subr.mxu0 %v1340
    %2866 = vmatpush1.msra.mxu0 %v1339
    %2867 = vmatprep.subr.mxu0 %v1344
    %2868 = vmatpush1.msra.mxu0 %v1343
    %2869 = vmatprep.subr.mxu0 %v1348
    %2870 = vmatpush1.msra.mxu0 %v1347
    %2871 = vmatprep.subr.mxu0 %v1352
    %2872 = vmatpush1.msra.mxu0 %v1351
    %2873 = vmatprep.subr.mxu0 %v1356
    %2874 = vmatpush1.msra.mxu0 %v1355
    %2875 = vmatprep.subr.mxu0 %v1360
    %2876 = vmatpush1.msra.mxu0 %v1359
    %2877 = vmatprep.mubr.f32.mxu0 %v2259
    %2878 = vmatmul.mubr.f32.gmra.mrb[0].mxu0 %v2251
    %v2879 = vpop.f32.mrb[0].mxu0
    %v2880 = vadd.f32 %v2236, %v2879
    %v2881 = vpop.f32.mrb[0].mxu0
    %v2882 = vadd.f32 %v2238, %v2881
    %2883 = vdwg.mxu0
    %2884 = vmatprep.subr.mxu0 %v1364
    %2885 = vmatpush1.msra.mxu0 %v1363
    %2886 = vmatprep.subr.mxu0 %v1368
    %2887 = vmatpush1.msra.mxu0 %v1367
    %2888 = vmatprep.subr.mxu0 %v1372
    %2889 = vmatpush1.msra.mxu0 %v1371
    %2890 = vmatprep.subr.mxu0 %v1376
    %2891 = vmatpush1.msra.mxu0 %v1375
    %2892 = vmatprep.subr.mxu0 %v1380
    %2893 = vmatpush1.msra.mxu0 %v1379
    %2894 = vmatprep.subr.mxu0 %v1384
    %2895 = vmatpush1.msra.mxu0 %v1383
    %2896 = vmatprep.subr.mxu0 %v1388
    %2897 = vmatpush1.msra.mxu0 %v1387
    %2898 = vmatprep.subr.mxu0 %v1392
    %2899 = vmatpush1.msra.mxu0 %v1391
    %2900 = vmatprep.subr.mxu0 %v1396
    %2901 = vmatpush1.msra.mxu0 %v1395
    %2902 = vmatprep.subr.mxu0 %v1400
    %2903 = vmatpush1.msra.mxu0 %v1399
    %2904 = vmatprep.subr.mxu0 %v1404
    %2905 = vmatpush1.msra.mxu0 %v1403
    %2906 = vmatprep.subr.mxu0 %v1408
    %2907 = vmatpush1.msra.mxu0 %v1407
    %2908 = vmatprep.subr.mxu0 %v1412
    %2909 = vmatpush1.msra.mxu0 %v1411
    %2910 = vmatprep.subr.mxu0 %v1416
    %2911 = vmatpush1.msra.mxu0 %v1415
    %2912 = vmatprep.subr.mxu0 %v1420
    %2913 = vmatpush1.msra.mxu0 %v1419
    %2914 = vmatprep.subr.mxu0 %v1424
    %2915 = vmatpush1.msra.mxu0 %v1423
    %2916 = vmatprep.subr.mxu0 %v1428
    %2917 = vmatpush1.msra.mxu0 %v1427
    %2918 = vmatprep.subr.mxu0 %v1432
    %2919 = vmatpush1.msra.mxu0 %v1431
    %2920 = vmatprep.subr.mxu0 %v1436
    %2921 = vmatpush1.msra.mxu0 %v1435
    %2922 = vmatprep.subr.mxu0 %v1440
    %2923 = vmatpush1.msra.mxu0 %v1439
    %2924 = vmatprep.subr.mxu0 %v1444
    %2925 = vmatpush1.msra.mxu0 %v1443
    %2926 = vmatprep.subr.mxu0 %v1448
    %2927 = vmatpush1.msra.mxu0 %v1447
    %2928 = vmatprep.subr.mxu0 %v1452
    %2929 = vmatpush1.msra.mxu0 %v1451
    %2930 = vmatprep.subr.mxu0 %v1456
    %2931 = vmatpush1.msra.mxu0 %v1455
    %2932 = vmatprep.subr.mxu0 %v1460
    %2933 = vmatpush1.msra.mxu0 %v1459
    %2934 = vmatprep.subr.mxu0 %v1464
    %2935 = vmatpush1.msra.mxu0 %v1463
    %2936 = vmatprep.subr.mxu0 %v1468
    %2937 = vmatpush1.msra.mxu0 %v1467
    %2938 = vmatprep.subr.mxu0 %v1472
    %2939 = vmatpush1.msra.mxu0 %v1471
    %2940 = vmatprep.subr.mxu0 %v1476
    %2941 = vmatpush1.msra.mxu0 %v1475
    %2942 = vmatprep.subr.mxu0 %v1480
    %2943 = vmatpush1.msra.mxu0 %v1479
    %2944 = vmatprep.subr.mxu0 %v1484
    %2945 = vmatpush1.msra.mxu0 %v1483
    %2946 = vmatprep.subr.mxu0 %v1488
    %2947 = vmatpush1.msra.mxu0 %v1487
    %2948 = vmatprep.mubr.f32.mxu0 %v2260
    %2949 = vmatmul.mubr.f32.gmra.mrb[0].mxu0 %v2258
    %v2950 = vpop.f32.mrb[0].mxu0
    %v2951 = vadd.f32 %v2880, %v2950
    %v2952 = vpop.f32.mrb[0].mxu0
    %v2953 = vadd.f32 %v2882, %v2952
    %2954 = vdwg.mxu0
    %2955 = vmatprep.subr.mxu0 %v1492
    %2956 = vmatpush1.msra.mxu0 %v1491
    %2957 = vmatprep.subr.mxu0 %v1496
    %2958 = vmatpush1.msra.mxu0 %v1495
    %2959 = vmatprep.subr.mxu0 %v1500
    %2960 = vmatpush1.msra.mxu0 %v1499
    %2961 = vmatprep.subr.mxu0 %v1504
    %2962 = vmatpush1.msra.mxu0 %v1503
    %2963 = vmatprep.subr.mxu0 %v1508
    %2964 = vmatpush1.msra.mxu0 %v1507
    %2965 = vmatprep.subr.mxu0 %v1512
    %2966 = vmatpush1.msra.mxu0 %v1511
    %2967 = vmatprep.subr.mxu0 %v1516
    %2968 = vmatpush1.msra.mxu0 %v1515
    %2969 = vmatprep.subr.mxu0 %v1520
    %2970 = vmatpush1.msra.mxu0 %v1519
    %2971 = vmatprep.subr.mxu0 %v1524
    %2972 = vmatpush1.msra.mxu0 %v1523
    %2973 = vmatprep.subr.mxu0 %v1528
    %2974 = vmatpush1.msra.mxu0 %v1527
    %2975 = vmatprep.subr.mxu0 %v1532
    %2976 = vmatpush1.msra.mxu0 %v1531
    %2977 = vmatprep.subr.mxu0 %v1536
    %2978 = vmatpush1.msra.mxu0 %v1535
    %2979 = vmatprep.subr.mxu0 %v1540
    %2980 = vmatpush1.msra.mxu0 %v1539
    %2981 = vmatprep.subr.mxu0 %v1544
    %2982 = vmatpush1.msra.mxu0 %v1543
    %2983 = vmatprep.subr.mxu0 %v1548
    %2984 = vmatpush1.msra.mxu0 %v1547
    %2985 = vmatprep.subr.mxu0 %v1552
    %2986 = vmatpush1.msra.mxu0 %v1551
    %2987 = vmatprep.subr.mxu0 %v1556
    %2988 = vmatpush1.msra.mxu0 %v1555
    %2989 = vmatprep.subr.mxu0 %v1560
    %2990 = vmatpush1.msra.mxu0 %v1559
    %2991 = vmatprep.subr.mxu0 %v1564
    %2992 = vmatpush1.msra.mxu0 %v1563
    %2993 = vmatprep.subr.mxu0 %v1568
    %2994 = vmatpush1.msra.mxu0 %v1567
    %2995 = vmatprep.subr.mxu0 %v1572
    %2996 = vmatpush1.msra.mxu0 %v1571
    %2997 = vmatprep.subr.mxu0 %v1576
    %2998 = vmatpush1.msra.mxu0 %v1575
    %2999 = vmatprep.subr.mxu0 %v1580
    %3000 = vmatpush1.msra.mxu0 %v1579
    %3001 = vmatprep.subr.mxu0 %v1584
    %3002 = vmatpush1.msra.mxu0 %v1583
    %3003 = vmatprep.subr.mxu0 %v1588
    %3004 = vmatpush1.msra.mxu0 %v1587
    %3005 = vmatprep.subr.mxu0 %v1592
    %3006 = vmatpush1.msra.mxu0 %v1591
    %3007 = vmatprep.subr.mxu0 %v1596
    %3008 = vmatpush1.msra.mxu0 %v1595
    %3009 = vmatprep.subr.mxu0 %v1600
    %3010 = vmatpush1.msra.mxu0 %v1599
    %3011 = vmatprep.subr.mxu0 %v1604
    %3012 = vmatpush1.msra.mxu0 %v1603
    %3013 = vmatprep.subr.mxu0 %v1608
    %3014 = vmatpush1.msra.mxu0 %v1607
    %3015 = vmatprep.subr.mxu0 %v1612
    %3016 = vmatpush1.msra.mxu0 %v1611
    %3017 = vmatprep.subr.mxu0 %v1616
    %3018 = vmatpush1.msra.mxu0 %v1615
    %3019 = vmatprep.mubr.f32.mxu0 %v2276
    %3020 = vmatmul.mubr.f32.gmra.mrb[0].mxu0 %v2268
    %v3021 = vpop.f32.mrb[0].mxu0
    %v3022 = vadd.f32 %v2951, %v3021
    %v3023 = vpop.f32.mrb[0].mxu0
    %v3024 = vadd.f32 %v2953, %v3023
    %3025 = vdwg.mxu0
    %3026 = vmatprep.subr.mxu0 %v1620
    %3027 = vmatpush1.msra.mxu0 %v1619
    %3028 = vmatprep.subr.mxu0 %v1624
    %3029 = vmatpush1.msra.mxu0 %v1623
    %3030 = vmatprep.subr.mxu0 %v1628
    %3031 = vmatpush1.msra.mxu0 %v1627
    %3032 = vmatprep.subr.mxu0 %v1632
    %3033 = vmatpush1.msra.mxu0 %v1631
    %3034 = vmatprep.subr.mxu0 %v1636
    %3035 = vmatpush1.msra.mxu0 %v1635
    %3036 = vmatprep.subr.mxu0 %v1640
    %3037 = vmatpush1.msra.mxu0 %v1639
    %3038 = vmatprep.subr.mxu0 %v1644
    %3039 = vmatpush1.msra.mxu0 %v1643
    %3040 = vmatprep.subr.mxu0 %v1648
    %3041 = vmatpush1.msra.mxu0 %v1647
    %3042 = vmatprep.subr.mxu0 %v1652
    %3043 = vmatpush1.msra.mxu0 %v1651
    %3044 = vmatprep.subr.mxu0 %v1656
    %3045 = vmatpush1.msra.mxu0 %v1655
    %3046 = vmatprep.subr.mxu0 %v1660
    %3047 = vmatpush1.msra.mxu0 %v1659
    %3048 = vmatprep.subr.mxu0 %v1664
    %3049 = vmatpush1.msra.mxu0 %v1663
    %3050 = vmatprep.subr.mxu0 %v1668
    %3051 = vmatpush1.msra.mxu0 %v1667
    %3052 = vmatprep.subr.mxu0 %v1672
    %3053 = vmatpush1.msra.mxu0 %v1671
    %3054 = vmatprep.subr.mxu0 %v1676
    %3055 = vmatpush1.msra.mxu0 %v1675
    %3056 = vmatprep.subr.mxu0 %v1680
    %3057 = vmatpush1.msra.mxu0 %v1679
    %3058 = vmatprep.subr.mxu0 %v1684
    %3059 = vmatpush1.msra.mxu0 %v1683
    %3060 = vmatprep.subr.mxu0 %v1688
    %3061 = vmatpush1.msra.mxu0 %v1687
    %3062 = vmatprep.subr.mxu0 %v1692
    %3063 = vmatpush1.msra.mxu0 %v1691
    %3064 = vmatprep.subr.mxu0 %v1696
    %3065 = vmatpush1.msra.mxu0 %v1695
    %3066 = vmatprep.subr.mxu0 %v1700
    %3067 = vmatpush1.msra.mxu0 %v1699
    %3068 = vmatprep.subr.mxu0 %v1704
    %3069 = vmatpush1.msra.mxu0 %v1703
    %3070 = vmatprep.subr.mxu0 %v1708
    %3071 = vmatpush1.msra.mxu0 %v1707
    %3072 = vmatprep.subr.mxu0 %v1712
    %3073 = vmatpush1.msra.mxu0 %v1711
    %3074 = vmatprep.subr.mxu0 %v1716
    %3075 = vmatpush1.msra.mxu0 %v1715
    %3076 = vmatprep.subr.mxu0 %v1720
    %3077 = vmatpush1.msra.mxu0 %v1719
    %3078 = vmatprep.subr.mxu0 %v1724
    %3079 = vmatpush1.msra.mxu0 %v1723
    %3080 = vmatprep.subr.mxu0 %v1728
    %3081 = vmatpush1.msra.mxu0 %v1727
    %3082 = vmatprep.subr.mxu0 %v1732
    %3083 = vmatpush1.msra.mxu0 %v1731
    %3084 = vmatprep.subr.mxu0 %v1736
    %3085 = vmatpush1.msra.mxu0 %v1735
    %3086 = vmatprep.subr.mxu0 %v1740
    %3087 = vmatpush1.msra.mxu0 %v1739
    %3088 = vmatprep.subr.mxu0 %v1744
    %3089 = vmatpush1.msra.mxu0 %v1743
    %3090 = vmatprep.mubr.f32.mxu0 %v2277
    %3091 = vmatmul.mubr.f32.gmra.mrb[0].mxu0 %v2275
    %v3092 = vpop.f32.mrb[0].mxu0
    %v3093 = vadd.f32 %v3022, %v3092
    %v3094 = vpop.f32.mrb[0].mxu0
    %v3095 = vadd.f32 %v3024, %v3094
    %3096 = vdwg.mxu0
    %3097 = vmatprep.subr.mxu0 %v1748
    %3098 = vmatpush1.msra.mxu0 %v1747
    %3099 = vmatprep.subr.mxu0 %v1752
    %3100 = vmatpush1.msra.mxu0 %v1751
    %3101 = vmatprep.subr.mxu0 %v1756
    %3102 = vmatpush1.msra.mxu0 %v1755
    %3103 = vmatprep.subr.mxu0 %v1760
    %3104 = vmatpush1.msra.mxu0 %v1759
    %3105 = vmatprep.subr.mxu0 %v1764
    %3106 = vmatpush1.msra.mxu0 %v1763
    %3107 = vmatprep.subr.mxu0 %v1768
    %3108 = vmatpush1.msra.mxu0 %v1767
    %3109 = vmatprep.subr.mxu0 %v1772
    %3110 = vmatpush1.msra.mxu0 %v1771
    %3111 = vmatprep.subr.mxu0 %v1776
    %3112 = vmatpush1.msra.mxu0 %v1775
    %3113 = vmatprep.subr.mxu0 %v1780
    %3114 = vmatpush1.msra.mxu0 %v1779
    %3115 = vmatprep.subr.mxu0 %v1784
    %3116 = vmatpush1.msra.mxu0 %v1783
    %3117 = vmatprep.subr.mxu0 %v1788
    %3118 = vmatpush1.msra.mxu0 %v1787
    %3119 = vmatprep.subr.mxu0 %v1792
    %3120 = vmatpush1.msra.mxu0 %v1791
    %3121 = vmatprep.subr.mxu0 %v1796
    %3122 = vmatpush1.msra.mxu0 %v1795
    %3123 = vmatprep.subr.mxu0 %v1800
    %3124 = vmatpush1.msra.mxu0 %v1799
    %3125 = vmatprep.subr.mxu0 %v1804
    %3126 = vmatpush1.msra.mxu0 %v1803
    %3127 = vmatprep.subr.mxu0 %v1808
    %3128 = vmatpush1.msra.mxu0 %v1807
    %3129 = vmatprep.subr.mxu0 %v1812
    %3130 = vmatpush1.msra.mxu0 %v1811
    %3131 = vmatprep.subr.mxu0 %v1816
    %3132 = vmatpush1.msra.mxu0 %v1815
    %3133 = vmatprep.subr.mxu0 %v1820
    %3134 = vmatpush1.msra.mxu0 %v1819
    %3135 = vmatprep.subr.mxu0 %v1824
    %3136 = vmatpush1.msra.mxu0 %v1823
    %3137 = vmatprep.subr.mxu0 %v1828
    %3138 = vmatpush1.msra.mxu0 %v1827
    %3139 = vmatprep.subr.mxu0 %v1832
    %3140 = vmatpush1.msra.mxu0 %v1831
    %3141 = vmatprep.subr.mxu0 %v1836
    %3142 = vmatpush1.msra.mxu0 %v1835
    %3143 = vmatprep.subr.mxu0 %v1840
    %3144 = vmatpush1.msra.mxu0 %v1839
    %3145 = vmatprep.subr.mxu0 %v1844
    %3146 = vmatpush1.msra.mxu0 %v1843
    %3147 = vmatprep.subr.mxu0 %v1848
    %3148 = vmatpush1.msra.mxu0 %v1847
    %3149 = vmatprep.subr.mxu0 %v1852
    %3150 = vmatpush1.msra.mxu0 %v1851
    %3151 = vmatprep.subr.mxu0 %v1856
    %3152 = vmatpush1.msra.mxu0 %v1855
    %3153 = vmatprep.subr.mxu0 %v1860
    %3154 = vmatpush1.msra.mxu0 %v1859
    %3155 = vmatprep.subr.mxu0 %v1864
    %3156 = vmatpush1.msra.mxu0 %v1863
    %3157 = vmatprep.subr.mxu0 %v1868
    %3158 = vmatpush1.msra.mxu0 %v1867
    %3159 = vmatprep.subr.mxu0 %v1872
    %3160 = vmatpush1.msra.mxu0 %v1871
    %3161 = vmatprep.mubr.f32.mxu0 %v2293
    %3162 = vmatmul.mubr.f32.gmra.mrb[0].mxu0 %v2285
    %v3163 = vpop.f32.mrb[0].mxu0
    %v3164 = vadd.f32 %v3093, %v3163
    %v3165 = vpop.f32.mrb[0].mxu0
    %v3166 = vadd.f32 %v3095, %v3165
    %3167 = vdwg.mxu0
    %3168 = vmatprep.subr.mxu0 %v1876
    %3169 = vmatpush1.msra.mxu0 %v1875
    %3170 = vmatprep.subr.mxu0 %v1880
    %3171 = vmatpush1.msra.mxu0 %v1879
    %3172 = vmatprep.subr.mxu0 %v1884
    %3173 = vmatpush1.msra.mxu0 %v1883
    %3174 = vmatprep.subr.mxu0 %v1888
    %3175 = vmatpush1.msra.mxu0 %v1887
    %3176 = vmatprep.subr.mxu0 %v1892
    %3177 = vmatpush1.msra.mxu0 %v1891
    %3178 = vmatprep.subr.mxu0 %v1896
    %3179 = vmatpush1.msra.mxu0 %v1895
    %3180 = vmatprep.subr.mxu0 %v1900
    %3181 = vmatpush1.msra.mxu0 %v1899
    %3182 = vmatprep.subr.mxu0 %v1904
    %3183 = vmatpush1.msra.mxu0 %v1903
    %3184 = vmatprep.subr.mxu0 %v1908
    %3185 = vmatpush1.msra.mxu0 %v1907
    %3186 = vmatprep.subr.mxu0 %v1912
    %3187 = vmatpush1.msra.mxu0 %v1911
    %3188 = vmatprep.subr.mxu0 %v1916
    %3189 = vmatpush1.msra.mxu0 %v1915
    %3190 = vmatprep.subr.mxu0 %v1920
    %3191 = vmatpush1.msra.mxu0 %v1919
    %3192 = vmatprep.subr.mxu0 %v1924
    %3193 = vmatpush1.msra.mxu0 %v1923
    %3194 = vmatprep.subr.mxu0 %v1928
    %3195 = vmatpush1.msra.mxu0 %v1927
    %3196 = vmatprep.subr.mxu0 %v1932
    %3197 = vmatpush1.msra.mxu0 %v1931
    %3198 = vmatprep.subr.mxu0 %v1936
    %3199 = vmatpush1.msra.mxu0 %v1935
    %3200 = vmatprep.subr.mxu0 %v1940
    %3201 = vmatpush1.msra.mxu0 %v1939
    %3202 = vmatprep.subr.mxu0 %v1944
    %3203 = vmatpush1.msra.mxu0 %v1943
    %3204 = vmatprep.subr.mxu0 %v1948
    %3205 = vmatpush1.msra.mxu0 %v1947
    %3206 = vmatprep.subr.mxu0 %v1952
    %3207 = vmatpush1.msra.mxu0 %v1951
    %3208 = vmatprep.subr.mxu0 %v1956
    %3209 = vmatpush1.msra.mxu0 %v1955
    %3210 = vmatprep.subr.mxu0 %v1960
    %3211 = vmatpush1.msra.mxu0 %v1959
    %3212 = vmatprep.subr.mxu0 %v1964
    %3213 = vmatpush1.msra.mxu0 %v1963
    %3214 = vmatprep.subr.mxu0 %v1968
    %3215 = vmatpush1.msra.mxu0 %v1967
    %3216 = vmatprep.subr.mxu0 %v1972
    %3217 = vmatpush1.msra.mxu0 %v1971
    %3218 = vmatprep.subr.mxu0 %v1976
    %3219 = vmatpush1.msra.mxu0 %v1975
    %3220 = vmatprep.subr.mxu0 %v1980
    %3221 = vmatpush1.msra.mxu0 %v1979
    %3222 = vmatprep.subr.mxu0 %v1984
    %3223 = vmatpush1.msra.mxu0 %v1983
    %3224 = vmatprep.subr.mxu0 %v1988
    %3225 = vmatpush1.msra.mxu0 %v1987
    %3226 = vmatprep.subr.mxu0 %v1992
    %3227 = vmatpush1.msra.mxu0 %v1991
    %3228 = vmatprep.subr.mxu0 %v1996
    %3229 = vmatpush1.msra.mxu0 %v1995
    %3230 = vmatprep.subr.mxu0 %v2000
    %3231 = vmatpush1.msra.mxu0 %v1999
    %3232 = vmatprep.mubr.f32.mxu0 %v2294
    %3233 = vmatmul.mubr.f32.gmra.mrb[0].mxu0 %v2292
    %v3234 = vpop.f32.mrb[0].mxu0
    %v3235 = vadd.f32 %v3164, %v3234
    %v3236 = vpop.f32.mrb[0].mxu0
    %v3237 = vadd.f32 %v3166, %v3236
    %3238 = vdwg.mxu0
    %3239 = vmatprep.subr.mxu0 %v2004
    %3240 = vmatpush1.msra.mxu0 %v2003
    %3241 = vmatprep.subr.mxu0 %v2008
    %3242 = vmatpush1.msra.mxu0 %v2007
    %3243 = vmatprep.subr.mxu0 %v2012
    %3244 = vmatpush1.msra.mxu0 %v2011
    %3245 = vmatprep.subr.mxu0 %v2016
    %3246 = vmatpush1.msra.mxu0 %v2015
    %3247 = vmatprep.subr.mxu0 %v2020
    %3248 = vmatpush1.msra.mxu0 %v2019
    %3249 = vmatprep.subr.mxu0 %v2024
    %3250 = vmatpush1.msra.mxu0 %v2023
    %3251 = vmatprep.subr.mxu0 %v2028
    %3252 = vmatpush1.msra.mxu0 %v2027
    %3253 = vmatprep.subr.mxu0 %v2032
    %3254 = vmatpush1.msra.mxu0 %v2031
    %3255 = vmatprep.subr.mxu0 0.0
    %3256 = vmatpush1.msra.mxu0 0.0
    %3257 = vmatprep.subr.mxu0 0.0
    %3258 = vmatpush1.msra.mxu0 0.0
    %3259 = vmatprep.subr.mxu0 0.0
    %3260 = vmatpush1.msra.mxu0 0.0
    %3261 = vmatprep.subr.mxu0 0.0
    %3262 = vmatpush1.msra.mxu0 0.0
    %3263 = vmatprep.subr.mxu0 0.0
    %3264 = vmatpush1.msra.mxu0 0.0
    %3265 = vmatprep.subr.mxu0 0.0
    %3266 = vmatpush1.msra.mxu0 0.0
    %3267 = vmatprep.subr.mxu0 0.0
    %3268 = vmatpush1.msra.mxu0 0.0
    %3269 = vmatprep.subr.mxu0 0.0
    %3270 = vmatpush1.msra.mxu0 0.0
    %3271 = vmatprep.subr.mxu0 0.0
    %3272 = vmatpush1.msra.mxu0 0.0
    %3273 = vmatprep.subr.mxu0 0.0
    %3274 = vmatpush1.msra.mxu0 0.0
    %3275 = vmatprep.subr.mxu0 0.0
    %3276 = vmatpush1.msra.mxu0 0.0
    %3277 = vmatprep.subr.mxu0 0.0
    %3278 = vmatpush1.msra.mxu0 0.0
    %3279 = vmatprep.subr.mxu0 0.0
    %3280 = vmatpush1.msra.mxu0 0.0
    %3281 = vmatprep.subr.mxu0 0.0
    %3282 = vmatpush1.msra.mxu0 0.0
    %3283 = vmatprep.subr.mxu0 0.0
    %3284 = vmatpush1.msra.mxu0 0.0
    %3285 = vmatprep.subr.mxu0 0.0
    %3286 = vmatpush1.msra.mxu0 0.0
    %3287 = vmatprep.subr.mxu0 0.0
    %3288 = vmatpush1.msra.mxu0 0.0
    %3289 = vmatprep.subr.mxu0 0.0
    %3290 = vmatpush1.msra.mxu0 0.0
    %3291 = vmatprep.subr.mxu0 0.0
    %3292 = vmatpush1.msra.mxu0 0.0
    %3293 = vmatprep.subr.mxu0 0.0
    %3294 = vmatpush1.msra.mxu0 0.0
    %3295 = vmatprep.subr.mxu0 0.0
    %3296 = vmatpush1.msra.mxu0 0.0
    %3297 = vmatprep.subr.mxu0 0.0
    %3298 = vmatpush1.msra.mxu0 0.0
    %3299 = vmatprep.subr.mxu0 0.0
    %3300 = vmatpush1.msra.mxu0 0.0
    %3301 = vmatprep.subr.mxu0 0.0
    %3302 = vmatpush1.msra.mxu0 0.0
    %3303 = vmatprep.mubr.f32.mxu0 0.0
    %3304 = vmatmul.mubr.f32.gmra.mrb[0].mxu0 %v2314
    %v3305 = vpop.f32.mrb[0].mxu0
    %v3306 = vadd.f32 %v3235, %v3305
    %v3307 = vpop.f32.mrb[0].mxu0
    %v3308 = vadd.f32 %v3237, %v3307
    %3309 = vdwg.mxu0
    %v3310 = vld [vmem:[#allocation19] sm:$0xf]
    %v3312 = vlaneseq
    %v3313 = vshrl.u32 %v3312, 7
    %v3314 = vsub.s32 0, %v3313
    %v3315 = vrot.slane %v3310, %v3314
    %v3316 = vlaneseq
    %v3317 = vshrl.u32 %v3316, 7
    %v3318 = vsub.s32 1, %v3317
    %v3319 = vrot.slane %v3310, %v3318
    %v3320 = vlaneseq
    %v3321 = vshrl.u32 %v3320, 7
    %v3322 = vsub.s32 2, %v3321
    %v3323 = vrot.slane %v3310, %v3322
    %v3324 = vlaneseq
    %v3325 = vshrl.u32 %v3324, 7
    %v3326 = vsub.s32 3, %v3325
    %v3327 = vrot.slane %v3310, %v3326
    %v3332 = vadd.f32 %v2809, %v3315
    %v3333 = vadd.f32 %v2811, %v3319
    %v3334 = vadd.f32 %v3306, %v3323
    %v3335 = vadd.f32 %v3308, %v3327
    %v3336 = vxor.u32 %v3332, 2147483648
    %v3337 = vmul.f32 %v3336, 1.442695
    %v3338 = vpow.pop %v3337
    %v3339 = vadd.f32 %v3338, 1.0
    %v3340 = vrcp.pop %v3339
    %v3341 = vmul.f32 1.0, %v3340
    %v3342 = vxor.u32 %v3333, 2147483648
    %v3343 = vmul.f32 %v3342, 1.442695
    %v3344 = vpow.pop %v3343
    %v3345 = vadd.f32 %v3344, 1.0
    %v3346 = vrcp.pop %v3345
    %v3347 = vmul.f32 1.0, %v3346
    %v3348 = vtanh.pop %v3334
    %v3349 = vxor.u32 %v3335, 2147483648
    %v3350 = vmul.f32 %v3349, 1.442695
    %v3351 = vpow.pop %v3350
    %v3352 = vadd.f32 %v3351, 1.0
    %v3353 = vrcp.pop %v3352
    %v3354 = vmul.f32 1.0, %v3353
    %v3355 = vld [vmem:[#allocation22] sm:$0x3]
    %v3356 = vmul.f32 %v3347, %v3355
    %v3357 = vmul.f32 %v3341, %v3348
    %v3358 = vadd.f32 %v3356, %v3357
    %v3359 = vtanh.pop %v3358
    %v3360 = vmul.f32 %v3354, %v3359
    %3361 = vst [vmem:[#allocation26] sm:$0x3] %v3360
    %3362 = vst [vmem:[#allocation28] sm:$0x3] %v3358
    %v3363 = vld [vmem:[%s14] sm:$0xff]
    %v3364 = vld [vmem:[%s14 + $0x8] sm:$0xff]
    %v3365 = vld [vmem:[%s14 + $0x10] sm:$0xff]
    %v3366 = vld [vmem:[%s14 + $0x18] sm:$0xff]
    %v3367 = vld [vmem:[%s14 + $0x20] sm:$0xff]
    %v3368 = vld [vmem:[%s14 + $0x28] sm:$0xff]
    %v3369 = vld [vmem:[%s14 + $0x30] sm:$0xff]
    %v3370 = vld [vmem:[%s14 + $0x38] sm:$0xff]
    %v3371 = vld [vmem:[%s14 + $0x40] sm:$0xff]
    %v3372 = vld [vmem:[%s14 + $0x48] sm:$0xff]
    %v3373 = vld [vmem:[%s14 + $0x50] sm:$0xff]
    %v3374 = vld [vmem:[%s14 + $0x58] sm:$0xff]
    %v3375 = vld [vmem:[%s14 + $0x60] sm:$0xff]
    %v3376 = vld [vmem:[%s14 + $0x68] sm:$0xff]
    %v3377 = vld [vmem:[%s14 + $0x70] sm:$0xff]
    %v3378 = vld [vmem:[%s14 + $0x78] sm:$0xff]
    %v3379 = vld [vmem:[#allocation24] sm:$0x1]
    %v3381 = vlaneseq
    %v3382 = vshrl.u32 %v3381, 7
    %v3383 = vsub.s32 0, %v3382
    %v3384 = vrot.slane %v3379, %v3383
    %3386 = vmatprep.subr.mxu0 0.0
    %3387 = vmatpush1.msra.mxu0 %v3363
    %3388 = vmatprep.subr.mxu0 0.0
    %3389 = vmatpush1.msra.mxu0 %v3364
    %3390 = vmatprep.subr.mxu0 0.0
    %3391 = vmatpush1.msra.mxu0 %v3365
    %3392 = vmatprep.subr.mxu0 0.0
    %3393 = vmatpush1.msra.mxu0 %v3366
    %3394 = vmatprep.subr.mxu0 0.0
    %3395 = vmatpush1.msra.mxu0 %v3367
    %3396 = vmatprep.subr.mxu0 0.0
    %3397 = vmatpush1.msra.mxu0 %v3368
    %3398 = vmatprep.subr.mxu0 0.0
    %3399 = vmatpush1.msra.mxu0 %v3369
    %3400 = vmatprep.subr.mxu0 0.0
    %3401 = vmatpush1.msra.mxu0 %v3370
    %3402 = vmatprep.subr.mxu0 0.0
    %3403 = vmatpush1.msra.mxu0 %v3371
    %3404 = vmatprep.subr.mxu0 0.0
    %3405 = vmatpush1.msra.mxu0 %v3372
    %3406 = vmatprep.subr.mxu0 0.0
    %3407 = vmatpush1.msra.mxu0 %v3373
    %3408 = vmatprep.subr.mxu0 0.0
    %3409 = vmatpush1.msra.mxu0 %v3374
    %3410 = vmatprep.subr.mxu0 0.0
    %3411 = vmatpush1.msra.mxu0 %v3375
    %3412 = vmatprep.subr.mxu0 0.0
    %3413 = vmatpush1.msra.mxu0 %v3376
    %3414 = vmatprep.subr.mxu0 0.0
    %3415 = vmatpush1.msra.mxu0 %v3377
    %3416 = vmatprep.subr.mxu0 0.0
    %3417 = vmatpush1.msra.mxu0 %v3378
    %3418 = vmatprep.subr.mxu0 0.0
    %3419 = vmatpush1.msra.mxu0 0.0
    %3420 = vmatprep.subr.mxu0 0.0
    %3421 = vmatpush1.msra.mxu0 0.0
    %3422 = vmatprep.subr.mxu0 0.0
    %3423 = vmatpush1.msra.mxu0 0.0
    %3424 = vmatprep.subr.mxu0 0.0
    %3425 = vmatpush1.msra.mxu0 0.0
    %3426 = vmatprep.subr.mxu0 0.0
    %3427 = vmatpush1.msra.mxu0 0.0
    %3428 = vmatprep.subr.mxu0 0.0
    %3429 = vmatpush1.msra.mxu0 0.0
    %3430 = vmatprep.subr.mxu0 0.0
    %3431 = vmatpush1.msra.mxu0 0.0
    %3432 = vmatprep.subr.mxu0 0.0
    %3433 = vmatpush1.msra.mxu0 0.0
    %3434 = vmatprep.subr.mxu0 0.0
    %3435 = vmatpush1.msra.mxu0 0.0
    %3436 = vmatprep.subr.mxu0 0.0
    %3437 = vmatpush1.msra.mxu0 0.0
    %3438 = vmatprep.subr.mxu0 0.0
    %3439 = vmatpush1.msra.mxu0 0.0
    %3440 = vmatprep.subr.mxu0 0.0
    %3441 = vmatpush1.msra.mxu0 0.0
    %3442 = vmatprep.subr.mxu0 0.0
    %3443 = vmatpush1.msra.mxu0 0.0
    %3444 = vmatprep.subr.mxu0 0.0
    %3445 = vmatpush1.msra.mxu0 0.0
    %3446 = vmatprep.subr.mxu0 0.0
    %3447 = vmatpush1.msra.mxu0 0.0
    %3448 = vmatprep.subr.mxu0 0.0
    %3449 = vmatpush1.msra.mxu0 0.0
    %3450 = vmatprep.mubr.f32.mxu0 0.0
    %3451 = vmatmul.mubr.f32.gmra.mrb[0].mxu0 %v3360
    %v3452 = vpop.f32.mrb[0].mxu0
    %v3453 = vadd.f32 %v3384, %v3452
    %v3454 = vpop.f32.mrb[0].mxu0
    %3455 = vdwg.mxu0
    %v3456 = vlaneseq
    %v3457 = vand.u32 %v3456, 127
    %v3458 = vand.u32 2147483647, %v3453
    %v3459 = vadd.f32 %v3458, 1.0
    %v3460 = vrcp.pop %v3459
    %v3461 = vmul.f32 %v3453, %v3460
    %vm3462 = vcmp.ge.s32.totalorder %v3457, 1
    %vm3463 = vcmp.lt.s32.totalorder %v3457, 7
    %vm3464 = vmand %vm3462, %vm3463
    %v3465 = vsel %vm3464, %v3461, %v3453
    %vm3466 = vcmask 115712
    %3467 = vst.msk [vmem:[#allocation25] sm:$0x3] %vm3466, %v3465
    // Predicated region
    $region118: #{tpu_custom_call.1} parent=1 // pred_check
      _
    $region119: #{tpu_custom_call.1} parent=1 // pred_check_branch
      %3469 = sbr.rel (0) target = $region121
    $region120: #{tpu_custom_call.1} parent=1 // pred_region
      %s3471 = ssub.s32 32, 32
      %3472 = vsyncadd [#allocation6], %s3471
      %s3474 = sshll.u32 [#allocation25], 4
      %s3475 = int_to_ptr.vmem [resolvable:$true] %s3474
      %3477 = dma.vmem_to_hbm [thread:$0]  %s3475, 32, %s16, [#allocation6]
    $region121: #{tpu_custom_call.1} parent=1 // pred_fallthru
      _
    // Predicated region
    $region122: #{tpu_custom_call.1} parent=1 // pred_check
      _
    $region123: #{tpu_custom_call.1} parent=1 // pred_check_branch
      %3479 = sbr.rel (0) target = $region125
    $region124: #{tpu_custom_call.1} parent=1 // pred_region
      %s3481 = ssub.s32 32, 32
      %3482 = vsyncadd [#allocation27], %s3481
      %s3484 = sshll.u32 [#allocation26], 4
      %s3485 = int_to_ptr.vmem [resolvable:$true] %s3484
      %3487 = dma.vmem_to_hbm [thread:$0]  %s3485, 32, %s17, [#allocation27]
    $region125: #{tpu_custom_call.1} parent=1 // pred_fallthru
      _
    // Predicated region
    $region126: #{tpu_custom_call.1} parent=1 // pred_check
      _
    $region127: #{tpu_custom_call.1} parent=1 // pred_check_branch
      %3489 = sbr.rel (0) target = $region129
    $region128: #{tpu_custom_call.1} parent=1 // pred_region
      %s3491 = ssub.s32 32, 32
      %3492 = vsyncadd [#allocation27], %s3491
      %s3494 = sshll.u32 [#allocation28], 4
      %s3495 = int_to_ptr.vmem [resolvable:$true] %s3494
      %3497 = dma.vmem_to_hbm [thread:$0]  %s3495, 32, %s18, [#allocation27]
    $region129: #{tpu_custom_call.1} parent=1 // pred_fallthru
      _
    // Predicated region
    $region130: #{tpu_custom_call.1} parent=1 // pred_check
      _
    $region131: #{tpu_custom_call.1} parent=1 // pred_check_branch
      %3499 = sbr.rel (0) target = $region133
    $region132: #{tpu_custom_call.1} parent=1 // pred_region
      %3500 = dma.done [#allocation6], 32
    $region133: #{tpu_custom_call.1} parent=1 // pred_fallthru
      _
    // Predicated region
    $region134: #{tpu_custom_call.1} parent=1 // pred_check
      _
    $region135: #{tpu_custom_call.1} parent=1 // pred_check_branch
      %3502 = sbr.rel (0) target = $region137
    $region136: #{tpu_custom_call.1} parent=1 // pred_region
      %3503 = dma.done [#allocation27], 32
    $region137: #{tpu_custom_call.1} parent=1 // pred_fallthru
      _
    // Predicated region
    $region138: #{tpu_custom_call.1} parent=1 // pred_check
      _
    $region139: #{tpu_custom_call.1} parent=1 // pred_check_branch
      %3505 = sbr.rel (0) target = $region141
    $region140: #{tpu_custom_call.1} parent=1 // pred_region
      %3506 = dma.done [#allocation27], 32
    $region141: #{tpu_custom_call.1} parent=1 // pred_fallthru
      _
    %3507 = vsyncpa [#allocation5], 1
    %3508 = vsyncpa [#allocation8], 1
    %3509 = vsyncpa [#allocation11], 1
    %3510 = vsyncpa [#allocation14], 1
    %3511 = vsyncpa [#allocation17], 1
    %3512 = vsyncpa [#allocation20], 1
    %3513 = vsyncpa [#allocation23], 1
    %3514 = vsyncpa [#allocation6], 1
    %3515 = vsyncpa [#allocation27], 1

</llo_original>
